<compile_context>
chip_gen: v5e
topology: v5e:2x2
jax: 0.10.0
libtpu: 0.0.40
codegen_flags: <defaults>
</compile_context>

<pallas_src>
import jax
import jax.numpy as jnp
from jax.experimental import pallas as pl
from jax.experimental.pallas import tpu as pltpu
import numpy as np

EPS = 1e-5


def _layernorm(x, gamma, beta):
    mu = jnp.mean(x, axis=-1, keepdims=True)
    xc = x - mu
    var = jnp.mean(xc * xc, axis=-1, keepdims=True)
    return xc * jax.lax.rsqrt(var + EPS) * gamma + beta


def fusion_kernel(
    x_ref,                       # (3, TB, E) f32  stacked [text; audio; video] tile
    wqkv_ref, bqkv_ref,          # (E, 3E) bf16 (Q-cols pre-scaled), (1, 3E) f32
    msum_ref, mexp_ref,          # (E, H) bf16, (H, E) bf16  0/1 head-membership
    wo_ref, bo_ref,              # (E, E) bf16, (1, E) f32
    g1_ref, be1_ref,             # (1, E) f32
    w1_ref, bp1_ref,             # (3, E, 2E) bf16, (1, 2E) f32
    w2_ref, bp2_ref,             # (2E, E) bf16, (1, E) f32
    g2_ref, be2_ref,             # (1, E) f32
    out_ref,                     # (TB, E) f32
):
    E = msum_ref.shape[0]
    H = msum_ref.shape[1]
    TB = out_ref.shape[0]

    x2 = x_ref[...].reshape(3 * TB, E)                                 # (3TB, E) f32

    # ---- fused QKV projection: one bf16 MXU matmul (scale folded into W_q) ----
    qkv = jnp.dot(x2.astype(jnp.bfloat16), wqkv_ref[...],
                  preferred_element_type=jnp.float32) + bqkv_ref[...]  # (3TB, 3E)
    q3 = qkv[:, :E].reshape(3, TB, E).astype(jnp.bfloat16)
    k3 = qkv[:, E:2 * E].reshape(3, TB, E).astype(jnp.bfloat16)
    v3 = qkv[:, 2 * E:].reshape(3, TB, E)                              # f32

    # ---- attention scores: all 9 (query, key) token pairs in ONE bf16 matmul ----
    prod = (q3[:, None, :, :] * k3[None, :, :, :]).reshape(9 * TB, E)  # bf16
    s = jnp.dot(prod, msum_ref[...],
                preferred_element_type=jnp.float32).reshape(3, 3, TB, H)

    # softmax over the key-token axis (axis=1), statistics in f32
    m = jnp.max(s, axis=1, keepdims=True)
    e = jnp.exp(s - m)
    denom = jnp.sum(e, axis=1, keepdims=True)
    p = (e * pl.reciprocal(denom, approx=True)).astype(jnp.bfloat16)   # (3,3,TB,H)

    # ---- weighted value sum, unrolled over the 3 key tokens (small live f32) ----
    attn = jnp.zeros((3 * TB, E), jnp.float32)
    for kt in range(3):
        pk = jnp.dot(p[:, kt].reshape(3 * TB, H), mexp_ref[...],
                     preferred_element_type=jnp.float32).reshape(3, TB, E)
        attn = attn + (pk * v3[kt][None, :, :]).reshape(3 * TB, E)

    # ---- fused output projection + residual + LayerNorm1 ----
    attn = jnp.dot(attn.astype(jnp.bfloat16), wo_ref[...],
                   preferred_element_type=jnp.float32) + bo_ref[...]
    y = _layernorm(x2 + attn, g1_ref[...], be1_ref[...])               # (3TB, E)
    y3 = y.reshape(3, TB, E).astype(jnp.bfloat16)

    # ---- pooling MLP: relu(concat(y_t, y_a, y_v) @ W1 + b1) @ W2 + b2 ----
    h = (jnp.dot(y3[0], w1_ref[0], preferred_element_type=jnp.float32)
         + jnp.dot(y3[1], w1_ref[1], preferred_element_type=jnp.float32)
         + jnp.dot(y3[2], w1_ref[2], preferred_element_type=jnp.float32)
         + bp1_ref[...])
    h = jnp.maximum(h, 0.0)
    o = jnp.dot(h.astype(jnp.bfloat16), w2_ref[...],
                preferred_element_type=jnp.float32) + bp2_ref[...]

    out_ref[...] = _layernorm(o, g2_ref[...], be2_ref[...]).astype(out_ref.dtype)


def _round_up(n, m):
    return ((n + m - 1) // m) * m


def auto_attention_fusion(text, audio, video, params, *, tile_b=None,
                          vmem_limit_bytes=None):
    """Pallas-backed eval-mode forward.  text/audio/video: (B, E) float32."""
    B, E = text.shape
    H = int(params["num_heads"])

    x = jnp.stack([text, audio, video], axis=0).astype(jnp.float32)    # (3, B, E)

    # Generation-aware VMEM capacity (per TensorCore); conservative fallback.
    try:
        vmem_cap = int(pltpu.get_tpu_info().vmem_capacity_bytes)
    except Exception:
        vmem_cap = 64 << 20                       # v7x-sized, safe everywhere

    # Batch tile: multiple of 8 sublanes, generation-aware default, and at least
    # two grid steps when the batch allows (so v7x's two TCs both get work).
    tb_cap = _round_up(B, 8)
    if tile_b is None:
        tile_b = 128 if vmem_cap <= (64 << 20) else 256
    tile_b = _round_up(max(8, min(int(tile_b), tb_cap)), 8)
    if tb_cap >= 16 and tile_b > tb_cap // 2:
        tile_b = max(8, ((tb_cap // 2) // 8) * 8)

    Bp = _round_up(B, tile_b)
    if Bp != B:
        x = jnp.pad(x, ((0, 0), (0, Bp - B), (0, 0)))
    grid = (Bp // tile_b,)

    weights = (
        params["wqkv"], params["bqkv"], params["msum"], params["mexp"],
        params["wo"], params["bo"], params["g1"], params["be1"],
        params["w1"], params["bp1"], params["w2"], params["bp2"],
        params["g2"], params["be2"],
    )

    weight_bytes = sum(int(np.prod(w.shape)) * w.dtype.itemsize for w in weights)
    act_bytes = 44 * tile_b * E * 4               # upper bound on live intermediates
    io_bytes = 2 * (3 + 1) * tile_b * E * 4       # double-buffered x / out tiles
    if vmem_limit_bytes is None:
        need = weight_bytes + act_bytes + io_bytes + (8 << 20)
        vmem_limit_bytes = int(min(max(need, 32 << 20), vmem_cap - (4 << 20)))

    cost = pl.CostEstimate(
        flops=int(Bp) * (40 * E * E + 36 * E * H),
        transcendentals=int(Bp) * (12 * H + 4),
        bytes_accessed=int(weight_bytes + 4 * (3 * Bp * E + Bp * E)),
    )

    def _run(resident_weights):
        if resident_weights:
            # Single VMEM-resident copy of each weight, no per-step double-buffer.
            w_specs = [pl.BlockSpec(memory_space=pltpu.MemorySpace.VMEM)
                       for _ in weights]
        else:
            # Fallback: full-array block with a constant index_map (weights still
            # stay put across grid steps, but are double-buffered).
            w_specs = [pl.BlockSpec(w.shape, (lambda i, _r=len(w.shape): (0,) * _r))
                       for w in weights]
        in_specs = [pl.BlockSpec((3, tile_b, E), lambda i: (0, i, 0))] + w_specs
        out_specs = pl.BlockSpec((tile_b, E), lambda i: (i, 0))
        return pl.pallas_call(
            fusion_kernel,
            out_shape=jax.ShapeDtypeStruct((Bp, E), jnp.float32),
            grid=grid,
            in_specs=in_specs,
            out_specs=out_specs,
            compiler_params=pltpu.CompilerParams(
                dimension_semantics=("parallel",),
                vmem_limit_bytes=vmem_limit_bytes,
            ),
            cost_estimate=cost,
        )(x, *weights)

    try:
        out = _run(resident_weights=True)
    except Exception:
        out = _run(resident_weights=False)

    return out[:B] if Bp != B else out


# ----------------------------- reference & test harness -----------------------------

def _bf16_dot(x, w):
    return jnp.dot(x.astype(jnp.bfloat16), jnp.asarray(w).astype(jnp.bfloat16),
                   preferred_element_type=jnp.float32)


def _ln(z, g, b):
    mu = jnp.mean(z, axis=-1, keepdims=True)
    zc = z - mu
    var = jnp.mean(zc * zc, axis=-1, keepdims=True)
    return zc * jax.lax.rsqrt(var + EPS) * g + b


def ref_forward(text, audio, video, params):
    """Pure-JAX reference mirroring the PyTorch module (eval mode) with the same
    mixed-precision policy (bf16 matmul operands, f32 accumulate / norms / softmax).
    The 1/sqrt(head_dim) scale is already folded into the Q columns of wqkv."""
    B, E = text.shape
    H = int(params["num_heads"])
    hd = E // H

    x = jnp.stack([text, audio, video], axis=1)                        # (B, 3, E)
    x2 = x.reshape(B * 3, E)

    qkv = (_bf16_dot(x2, params["wqkv"]) + params["bqkv"]).reshape(B, 3, 3 * E)
    q = qkv[..., :E]                                                   # pre-scaled
    k = qkv[..., E:2 * E]
    v = qkv[..., 2 * E:]

    def split(z):
        return z.reshape(B, 3, H, hd).transpose(0, 2, 1, 3)            # (B, H, 3, hd)

    qh, kh, vh = split(q), split(k), split(v)
    s = jnp.einsum('bhqd,bhkd->bhqk', qh, kh)
    p = jax.nn.softmax(s, axis=-1)
    o = jnp.einsum('bhqk,bhkd->bhqd', p, vh).transpose(0, 2, 1, 3).reshape(B, 3, E)
    o = (_bf16_dot(o.reshape(B * 3, E), params["wo"])
         + params["bo"]).reshape(B, 3, E)

    y = _ln(x + o, params["g1"], params["be1"])                        # (B, 3, E)
    pooled = y.reshape(B, 3 * E)
    w1 = jnp.asarray(params["w1"]).reshape(3 * E, 2 * E)
    h = jnp.maximum(_bf16_dot(pooled, w1) + params["bp1"], 0.0)
    out = _bf16_dot(h, params["w2"]) + params["bp2"]
    return _ln(out, params["g2"], params["be2"])


def make_params(key, E, H):
    hd = E // H
    scale = 1.0 / float(hd) ** 0.5
    ks = jax.random.split(key, 16)

    def w(k, shape, s=0.05):
        return jax.random.normal(k, shape, jnp.float32) * s

    # head-membership matrices: msum[e, h] = 1 iff feature e belongs to head h
    head_of_feature = np.arange(E) // hd
    msum = np.zeros((E, H), np.float32)
    msum[np.arange(E), head_of_feature] = 1.0

    wq, wk, wv = w(ks[0], (E, E)), w(ks[1], (E, E)), w(ks[2], (E, E))
    bq, bk, bv = w(ks[3], (1, E), 0.02), w(ks[4], (1, E), 0.02), w(ks[5], (1, E), 0.02)
    # fold the 1/sqrt(head_dim) scale into the Q columns (one-time host transform)
    wq, bq = wq * scale, bq * scale

    return dict(
        num_heads=H,
        wqkv=jnp.concatenate([wq, wk, wv], axis=1).astype(jnp.bfloat16),   # (E, 3E)
        bqkv=jnp.concatenate([bq, bk, bv], axis=1),                        # (1, 3E)
        msum=jnp.asarray(msum).astype(jnp.bfloat16),                       # exact 0/1
        mexp=jnp.asarray(msum.T).astype(jnp.bfloat16),
        wo=w(ks[6], (E, E)).astype(jnp.bfloat16), bo=w(ks[7], (1, E), 0.02),
        g1=1.0 + w(ks[8], (1, E), 0.02), be1=w(ks[9], (1, E), 0.02),
        w1=jnp.stack([w(ks[10], (E, 2 * E)), w(ks[11], (E, 2 * E)),
                      w(ks[12], (E, 2 * E))], axis=0).astype(jnp.bfloat16),  # (3, E, 2E)
        bp1=w(ks[13], (1, 2 * E), 0.02),
        w2=w(ks[14], (2 * E, E)).astype(jnp.bfloat16), bp2=w(ks[15], (1, E), 0.02),
        g2=jnp.ones((1, E), jnp.float32), be2=jnp.zeros((1, E), jnp.float32),
    )


if __name__ == "__main__":
    # small but lane-dense synthetic shapes (E multiple of 128; prod would be E=768, H=4)
    B, E, H = 16, 128, 4

    key = jax.random.PRNGKey(0)
    k_t, k_a, k_v, k_p = jax.random.split(key, 4)
    text = jax.random.normal(k_t, (B, E), jnp.float32)
    audio = jax.random.normal(k_a, (B, E), jnp.float32)
    video = jax.random.normal(k_v, (B, E), jnp.float32)
    params = make_params(k_p, E, H)

    # auto tile_b -> 8 here (>= 2 grid steps), exercising the batch pipeline
    out = auto_attention_fusion(text, audio, video, params)
    out = jax.block_until_ready(out)

    ref = jax.block_until_ready(ref_forward(text, audio, video, params))
    np.testing.assert_allclose(np.asarray(out), np.asarray(ref), atol=2e-2, rtol=2e-2)

    print("KERNEL_OK")
</pallas_src>

<mosaic_0001>
module attributes {stable_mosaic.version = 11 : i64} {
  func.func @fusion_kernel(%arg0: i32, %arg1: memref<3x8x128xf32, #tpu.memory_space<vmem>>, %arg2: memref<128x384xbf16, #tpu.memory_space<vmem>>, %arg3: memref<1x384xf32, #tpu.memory_space<vmem>>, %arg4: memref<128x4xbf16, #tpu.memory_space<vmem>>, %arg5: memref<4x128xbf16, #tpu.memory_space<vmem>>, %arg6: memref<128x128xbf16, #tpu.memory_space<vmem>>, %arg7: memref<1x128xf32, #tpu.memory_space<vmem>>, %arg8: memref<1x128xf32, #tpu.memory_space<vmem>>, %arg9: memref<1x128xf32, #tpu.memory_space<vmem>>, %arg10: memref<3x128x256xbf16, #tpu.memory_space<vmem>>, %arg11: memref<1x256xf32, #tpu.memory_space<vmem>>, %arg12: memref<256x128xbf16, #tpu.memory_space<vmem>>, %arg13: memref<1x128xf32, #tpu.memory_space<vmem>>, %arg14: memref<1x128xf32, #tpu.memory_space<vmem>>, %arg15: memref<1x128xf32, #tpu.memory_space<vmem>>, %arg16: memref<8x128xf32, #tpu.memory_space<vmem>>) attributes {dimension_semantics = [#tpu.dimension_semantics<parallel>], iteration_bounds = array<i64: 2>, scalar_prefetch = 0 : i64, scratch_operands = 0 : i64, tpu.core_type = #tpu.core_type<tc>, window_params = [{transform_indices = @transform_0, window_bounds = array<i64: 3, 8, 128>}, {pipeline_mode = #tpu.pipeline_mode<synchronous>, transform_indices = @transform_1, window_bounds = array<i64: 128, 384>}, {pipeline_mode = #tpu.pipeline_mode<synchronous>, transform_indices = @transform_2, window_bounds = array<i64: 1, 384>}, {pipeline_mode = #tpu.pipeline_mode<synchronous>, transform_indices = @transform_3, window_bounds = array<i64: 128, 4>}, {pipeline_mode = #tpu.pipeline_mode<synchronous>, transform_indices = @transform_4, window_bounds = array<i64: 4, 128>}, {pipeline_mode = #tpu.pipeline_mode<synchronous>, transform_indices = @transform_5, window_bounds = array<i64: 128, 128>}, {pipeline_mode = #tpu.pipeline_mode<synchronous>, transform_indices = @transform_6, window_bounds = array<i64: 1, 128>}, {pipeline_mode = #tpu.pipeline_mode<synchronous>, transform_indices = @transform_7, window_bounds = array<i64: 1, 128>}, {pipeline_mode = #tpu.pipeline_mode<synchronous>, transform_indices = @transform_8, window_bounds = array<i64: 1, 128>}, {pipeline_mode = #tpu.pipeline_mode<synchronous>, transform_indices = @transform_9, window_bounds = array<i64: 3, 128, 256>}, {pipeline_mode = #tpu.pipeline_mode<synchronous>, transform_indices = @transform_10, window_bounds = array<i64: 1, 256>}, {pipeline_mode = #tpu.pipeline_mode<synchronous>, transform_indices = @transform_11, window_bounds = array<i64: 256, 128>}, {pipeline_mode = #tpu.pipeline_mode<synchronous>, transform_indices = @transform_12, window_bounds = array<i64: 1, 128>}, {pipeline_mode = #tpu.pipeline_mode<synchronous>, transform_indices = @transform_13, window_bounds = array<i64: 1, 128>}, {pipeline_mode = #tpu.pipeline_mode<synchronous>, transform_indices = @transform_14, window_bounds = array<i64: 1, 128>}, {transform_indices = @transform_15, window_bounds = array<i64: 8, 128>}]} {
    %c0 = arith.constant 0 : index
    %c0_0 = arith.constant 0 : index
    %c0_1 = arith.constant 0 : index
    %0 = vector.load %arg1[%c0, %c0_0, %c0_1] : memref<3x8x128xf32, #tpu.memory_space<vmem>>, vector<3x8x128xf32>
    %1 = vector.shape_cast %0 : vector<3x8x128xf32> to vector<24x128xf32>
    %2 = arith.truncf %1 : vector<24x128xf32> to vector<24x128xbf16>
    %c0_2 = arith.constant 0 : index
    %c0_3 = arith.constant 0 : index
    %3 = vector.load %arg2[%c0_2, %c0_3] : memref<128x384xbf16, #tpu.memory_space<vmem>>, vector<128x384xbf16>
    %cst = arith.constant dense<0.000000e+00> : vector<24x384xf32>
    %4 = tpu.matmul %2, %3, %cst {dimension_numbers = #tpu.dot_dimension_numbers<[1], [0], [0], [1], [0, 0, 1, 1], [], []>} : vector<24x128xbf16>, vector<128x384xbf16>, vector<24x384xf32> -> vector<24x384xf32>
    %c0_4 = arith.constant 0 : index
    %c0_5 = arith.constant 0 : index
    %5 = vector.load %arg3[%c0_4, %c0_5] : memref<1x384xf32, #tpu.memory_space<vmem>>, vector<1x384xf32>
    %6 = vector.broadcast %5 : vector<1x384xf32> to vector<24x384xf32>
    %7 = arith.addf %4, %6 : vector<24x384xf32>
    %8 = vector.extract_strided_slice %7 {offsets = [0, 0], sizes = [24, 128], strides = [1, 1]} : vector<24x384xf32> to vector<24x128xf32>
    %9 = vector.shape_cast %8 : vector<24x128xf32> to vector<3x8x128xf32>
    %10 = arith.truncf %9 : vector<3x8x128xf32> to vector<3x8x128xbf16>
    %11 = vector.extract_strided_slice %7 {offsets = [0, 128], sizes = [24, 128], strides = [1, 1]} : vector<24x384xf32> to vector<24x128xf32>
    %12 = vector.shape_cast %11 : vector<24x128xf32> to vector<3x8x128xf32>
    %13 = arith.truncf %12 : vector<3x8x128xf32> to vector<3x8x128xbf16>
    %14 = vector.extract_strided_slice %7 {offsets = [0, 256], sizes = [24, 128], strides = [1, 1]} : vector<24x384xf32> to vector<24x128xf32>
    %15 = vector.shape_cast %14 : vector<24x128xf32> to vector<3x8x128xf32>
    %16 = vector.shape_cast %10 : vector<3x8x128xbf16> to vector<3x1x8x128xbf16>
    %17 = vector.shape_cast %13 : vector<3x8x128xbf16> to vector<1x3x8x128xbf16>
    %18 = vector.broadcast %16 : vector<3x1x8x128xbf16> to vector<3x3x8x128xbf16>
    %19 = vector.broadcast %17 : vector<1x3x8x128xbf16> to vector<3x3x8x128xbf16>
    %20 = arith.mulf %18, %19 : vector<3x3x8x128xbf16>
    %21 = vector.shape_cast %20 : vector<3x3x8x128xbf16> to vector<72x128xbf16>
    %c0_6 = arith.constant 0 : index
    %c0_7 = arith.constant 0 : index
    %22 = vector.load %arg4[%c0_6, %c0_7] : memref<128x4xbf16, #tpu.memory_space<vmem>>, vector<128x4xbf16>
    %cst_8 = arith.constant dense<0.000000e+00> : vector<72x4xf32>
    %23 = tpu.matmul %21, %22, %cst_8 {dimension_numbers = #tpu.dot_dimension_numbers<[1], [0], [0], [1], [0, 0, 1, 1], [], []>} : vector<72x128xbf16>, vector<128x4xbf16>, vector<72x4xf32> -> vector<72x4xf32>
    %24 = vector.shape_cast %23 : vector<72x4xf32> to vector<3x3x8x4xf32>
    %cst_9 = arith.constant dense<0xFF800000> : vector<3x8x4xf32>
    %25 = vector.multi_reduction <maximumf>, %24, %cst_9 [1] : vector<3x3x8x4xf32> to vector<3x8x4xf32>
    %26 = vector.shape_cast %25 : vector<3x8x4xf32> to vector<3x1x8x4xf32>
    %27 = vector.broadcast %26 : vector<3x1x8x4xf32> to vector<3x3x8x4xf32>
    %28 = arith.subf %24, %27 : vector<3x3x8x4xf32>
    %29 = math.exp %28 : vector<3x3x8x4xf32>
    %cst_10 = arith.constant dense<0.000000e+00> : vector<3x8x4xf32>
    %30 = vector.multi_reduction <add>, %29, %cst_10 [1] : vector<3x3x8x4xf32> to vector<3x8x4xf32>
    %31 = vector.shape_cast %30 : vector<3x8x4xf32> to vector<3x1x8x4xf32>
    %32 = tpu.reciprocal %31 {approx = true} : vector<3x1x8x4xf32> -> vector<3x1x8x4xf32>
    %33 = vector.broadcast %32 : vector<3x1x8x4xf32> to vector<3x3x8x4xf32>
    %34 = arith.mulf %29, %33 : vector<3x3x8x4xf32>
    %35 = arith.truncf %34 : vector<3x3x8x4xf32> to vector<3x3x8x4xbf16>
    %cst_11 = arith.constant 0.000000e+00 : f32
    %36 = vector.broadcast %cst_11 : f32 to vector<24x128xf32>
    %37 = vector.extract_strided_slice %35 {offsets = [0, 0, 0, 0], sizes = [3, 1, 8, 4], strides = [1, 1, 1, 1]} : vector<3x3x8x4xbf16> to vector<3x1x8x4xbf16>
    %38 = vector.shape_cast %37 : vector<3x1x8x4xbf16> to vector<3x8x4xbf16>
    %39 = vector.shape_cast %38 : vector<3x8x4xbf16> to vector<24x4xbf16>
    %c0_12 = arith.constant 0 : index
    %c0_13 = arith.constant 0 : index
    %40 = vector.load %arg5[%c0_12, %c0_13] : memref<4x128xbf16, #tpu.memory_space<vmem>>, vector<4x128xbf16>
    %cst_14 = arith.constant dense<0.000000e+00> : vector<24x128xf32>
    %41 = tpu.matmul %39, %40, %cst_14 {dimension_numbers = #tpu.dot_dimension_numbers<[1], [0], [0], [1], [0, 0, 1, 1], [], []>} : vector<24x4xbf16>, vector<4x128xbf16>, vector<24x128xf32> -> vector<24x128xf32>
    %42 = vector.shape_cast %41 : vector<24x128xf32> to vector<3x8x128xf32>
    %43 = vector.extract_strided_slice %15 {offsets = [0, 0, 0], sizes = [1, 8, 128], strides = [1, 1, 1]} : vector<3x8x128xf32> to vector<1x8x128xf32>
    %44 = vector.shape_cast %43 : vector<1x8x128xf32> to vector<8x128xf32>
    %45 = vector.shape_cast %44 : vector<8x128xf32> to vector<1x8x128xf32>
    %46 = vector.broadcast %45 : vector<1x8x128xf32> to vector<3x8x128xf32>
    %47 = arith.mulf %42, %46 : vector<3x8x128xf32>
    %48 = vector.shape_cast %47 : vector<3x8x128xf32> to vector<24x128xf32>
    %49 = arith.addf %36, %48 : vector<24x128xf32>
    %50 = vector.extract_strided_slice %35 {offsets = [0, 1, 0, 0], sizes = [3, 1, 8, 4], strides = [1, 1, 1, 1]} : vector<3x3x8x4xbf16> to vector<3x1x8x4xbf16>
    %51 = vector.shape_cast %50 : vector<3x1x8x4xbf16> to vector<3x8x4xbf16>
    %52 = vector.shape_cast %51 : vector<3x8x4xbf16> to vector<24x4xbf16>
    %c0_15 = arith.constant 0 : index
    %c0_16 = arith.constant 0 : index
    %53 = vector.load %arg5[%c0_15, %c0_16] : memref<4x128xbf16, #tpu.memory_space<vmem>>, vector<4x128xbf16>
    %cst_17 = arith.constant dense<0.000000e+00> : vector<24x128xf32>
    %54 = tpu.matmul %52, %53, %cst_17 {dimension_numbers = #tpu.dot_dimension_numbers<[1], [0], [0], [1], [0, 0, 1, 1], [], []>} : vector<24x4xbf16>, vector<4x128xbf16>, vector<24x128xf32> -> vector<24x128xf32>
    %55 = vector.shape_cast %54 : vector<24x128xf32> to vector<3x8x128xf32>
    %56 = vector.extract_strided_slice %15 {offsets = [1, 0, 0], sizes = [1, 8, 128], strides = [1, 1, 1]} : vector<3x8x128xf32> to vector<1x8x128xf32>
    %57 = vector.shape_cast %56 : vector<1x8x128xf32> to vector<8x128xf32>
    %58 = vector.shape_cast %57 : vector<8x128xf32> to vector<1x8x128xf32>
    %59 = vector.broadcast %58 : vector<1x8x128xf32> to vector<3x8x128xf32>
    %60 = arith.mulf %55, %59 : vector<3x8x128xf32>
    %61 = vector.shape_cast %60 : vector<3x8x128xf32> to vector<24x128xf32>
    %62 = arith.addf %49, %61 : vector<24x128xf32>
    %63 = vector.extract_strided_slice %35 {offsets = [0, 2, 0, 0], sizes = [3, 1, 8, 4], strides = [1, 1, 1, 1]} : vector<3x3x8x4xbf16> to vector<3x1x8x4xbf16>
    %64 = vector.shape_cast %63 : vector<3x1x8x4xbf16> to vector<3x8x4xbf16>
    %65 = vector.shape_cast %64 : vector<3x8x4xbf16> to vector<24x4xbf16>
    %c0_18 = arith.constant 0 : index
    %c0_19 = arith.constant 0 : index
    %66 = vector.load %arg5[%c0_18, %c0_19] : memref<4x128xbf16, #tpu.memory_space<vmem>>, vector<4x128xbf16>
    %cst_20 = arith.constant dense<0.000000e+00> : vector<24x128xf32>
    %67 = tpu.matmul %65, %66, %cst_20 {dimension_numbers = #tpu.dot_dimension_numbers<[1], [0], [0], [1], [0, 0, 1, 1], [], []>} : vector<24x4xbf16>, vector<4x128xbf16>, vector<24x128xf32> -> vector<24x128xf32>
    %68 = vector.shape_cast %67 : vector<24x128xf32> to vector<3x8x128xf32>
    %69 = vector.extract_strided_slice %15 {offsets = [2, 0, 0], sizes = [1, 8, 128], strides = [1, 1, 1]} : vector<3x8x128xf32> to vector<1x8x128xf32>
    %70 = vector.shape_cast %69 : vector<1x8x128xf32> to vector<8x128xf32>
    %71 = vector.shape_cast %70 : vector<8x128xf32> to vector<1x8x128xf32>
    %72 = vector.broadcast %71 : vector<1x8x128xf32> to vector<3x8x128xf32>
    %73 = arith.mulf %68, %72 : vector<3x8x128xf32>
    %74 = vector.shape_cast %73 : vector<3x8x128xf32> to vector<24x128xf32>
    %75 = arith.addf %62, %74 : vector<24x128xf32>
    %76 = arith.truncf %75 : vector<24x128xf32> to vector<24x128xbf16>
    %c0_21 = arith.constant 0 : index
    %c0_22 = arith.constant 0 : index
    %77 = vector.load %arg6[%c0_21, %c0_22] : memref<128x128xbf16, #tpu.memory_space<vmem>>, vector<128x128xbf16>
    %cst_23 = arith.constant dense<0.000000e+00> : vector<24x128xf32>
    %78 = tpu.matmul %76, %77, %cst_23 {dimension_numbers = #tpu.dot_dimension_numbers<[1], [0], [0], [1], [0, 0, 1, 1], [], []>} : vector<24x128xbf16>, vector<128x128xbf16>, vector<24x128xf32> -> vector<24x128xf32>
    %c0_24 = arith.constant 0 : index
    %c0_25 = arith.constant 0 : index
    %79 = vector.load %arg7[%c0_24, %c0_25] : memref<1x128xf32, #tpu.memory_space<vmem>>, vector<1x128xf32>
    %80 = vector.broadcast %79 : vector<1x128xf32> to vector<24x128xf32>
    %81 = arith.addf %78, %80 : vector<24x128xf32>
    %82 = arith.addf %1, %81 : vector<24x128xf32>
    %c0_26 = arith.constant 0 : index
    %c0_27 = arith.constant 0 : index
    %83 = vector.load %arg8[%c0_26, %c0_27] : memref<1x128xf32, #tpu.memory_space<vmem>>, vector<1x128xf32>
    %c0_28 = arith.constant 0 : index
    %c0_29 = arith.constant 0 : index
    %84 = vector.load %arg9[%c0_28, %c0_29] : memref<1x128xf32, #tpu.memory_space<vmem>>, vector<1x128xf32>
    %cst_30 = arith.constant dense<0.000000e+00> : vector<24xf32>
    %85 = vector.multi_reduction <add>, %82, %cst_30 [1] : vector<24x128xf32> to vector<24xf32>
    %86 = vector.shape_cast %85 : vector<24xf32> to vector<24x1xf32>
    %cst_31 = arith.constant 1.280000e+02 : f32
    %87 = vector.broadcast %cst_31 : f32 to vector<24x1xf32>
    %88 = arith.divf %86, %87 : vector<24x1xf32>
    %89 = vector.broadcast %88 : vector<24x1xf32> to vector<24x128xf32>
    %90 = arith.subf %82, %89 : vector<24x128xf32>
    %91 = arith.mulf %90, %90 : vector<24x128xf32>
    %cst_32 = arith.constant dense<0.000000e+00> : vector<24xf32>
    %92 = vector.multi_reduction <add>, %91, %cst_32 [1] : vector<24x128xf32> to vector<24xf32>
    %93 = vector.shape_cast %92 : vector<24xf32> to vector<24x1xf32>
    %cst_33 = arith.constant 1.280000e+02 : f32
    %94 = vector.broadcast %cst_33 : f32 to vector<24x1xf32>
    %95 = arith.divf %93, %94 : vector<24x1xf32>
    %cst_34 = arith.constant 9.99999974E-6 : f32
    %96 = vector.broadcast %cst_34 : f32 to vector<24x1xf32>
    %97 = arith.addf %95, %96 : vector<24x1xf32>
    %98 = math.rsqrt %97 : vector<24x1xf32>
    %99 = vector.broadcast %98 : vector<24x1xf32> to vector<24x128xf32>
    %100 = arith.mulf %90, %99 : vector<24x128xf32>
    %101 = vector.broadcast %83 : vector<1x128xf32> to vector<24x128xf32>
    %102 = arith.mulf %100, %101 : vector<24x128xf32>
    %103 = vector.broadcast %84 : vector<1x128xf32> to vector<24x128xf32>
    %104 = arith.addf %102, %103 : vector<24x128xf32>
    %105 = vector.shape_cast %104 : vector<24x128xf32> to vector<3x8x128xf32>
    %106 = arith.truncf %105 : vector<3x8x128xf32> to vector<3x8x128xbf16>
    %107 = vector.extract_strided_slice %106 {offsets = [0, 0, 0], sizes = [1, 8, 128], strides = [1, 1, 1]} : vector<3x8x128xbf16> to vector<1x8x128xbf16>
    %108 = vector.shape_cast %107 : vector<1x8x128xbf16> to vector<8x128xbf16>
    %c0_35 = arith.constant 0 : index
    %c0_36 = arith.constant 0 : index
    %c0_37 = arith.constant 0 : index
    %109 = vector.load %arg10[%c0_35, %c0_36, %c0_37] : memref<3x128x256xbf16, #tpu.memory_space<vmem>>, vector<1x128x256xbf16>
    %110 = vector.shape_cast %109 : vector<1x128x256xbf16> to vector<128x256xbf16>
    %cst_38 = arith.constant dense<0.000000e+00> : vector<8x256xf32>
    %111 = tpu.matmul %108, %110, %cst_38 {dimension_numbers = #tpu.dot_dimension_numbers<[1], [0], [0], [1], [0, 0, 1, 1], [], []>} : vector<8x128xbf16>, vector<128x256xbf16>, vector<8x256xf32> -> vector<8x256xf32>
    %112 = vector.extract_strided_slice %106 {offsets = [1, 0, 0], sizes = [1, 8, 128], strides = [1, 1, 1]} : vector<3x8x128xbf16> to vector<1x8x128xbf16>
    %113 = vector.shape_cast %112 : vector<1x8x128xbf16> to vector<8x128xbf16>
    %c1 = arith.constant 1 : index
    %c0_39 = arith.constant 0 : index
    %c0_40 = arith.constant 0 : index
    %114 = vector.load %arg10[%c1, %c0_39, %c0_40] : memref<3x128x256xbf16, #tpu.memory_space<vmem>>, vector<1x128x256xbf16>
    %115 = vector.shape_cast %114 : vector<1x128x256xbf16> to vector<128x256xbf16>
    %cst_41 = arith.constant dense<0.000000e+00> : vector<8x256xf32>
    %116 = tpu.matmul %113, %115, %cst_41 {dimension_numbers = #tpu.dot_dimension_numbers<[1], [0], [0], [1], [0, 0, 1, 1], [], []>} : vector<8x128xbf16>, vector<128x256xbf16>, vector<8x256xf32> -> vector<8x256xf32>
    %117 = arith.addf %111, %116 : vector<8x256xf32>
    %118 = vector.extract_strided_slice %106 {offsets = [2, 0, 0], sizes = [1, 8, 128], strides = [1, 1, 1]} : vector<3x8x128xbf16> to vector<1x8x128xbf16>
    %119 = vector.shape_cast %118 : vector<1x8x128xbf16> to vector<8x128xbf16>
    %c2 = arith.constant 2 : index
    %c0_42 = arith.constant 0 : index
    %c0_43 = arith.constant 0 : index
    %120 = vector.load %arg10[%c2, %c0_42, %c0_43] : memref<3x128x256xbf16, #tpu.memory_space<vmem>>, vector<1x128x256xbf16>
    %121 = vector.shape_cast %120 : vector<1x128x256xbf16> to vector<128x256xbf16>
    %cst_44 = arith.constant dense<0.000000e+00> : vector<8x256xf32>
    %122 = tpu.matmul %119, %121, %cst_44 {dimension_numbers = #tpu.dot_dimension_numbers<[1], [0], [0], [1], [0, 0, 1, 1], [], []>} : vector<8x128xbf16>, vector<128x256xbf16>, vector<8x256xf32> -> vector<8x256xf32>
    %123 = arith.addf %117, %122 : vector<8x256xf32>
    %c0_45 = arith.constant 0 : index
    %c0_46 = arith.constant 0 : index
    %124 = vector.load %arg11[%c0_45, %c0_46] : memref<1x256xf32, #tpu.memory_space<vmem>>, vector<1x256xf32>
    %125 = vector.broadcast %124 : vector<1x256xf32> to vector<8x256xf32>
    %126 = arith.addf %123, %125 : vector<8x256xf32>
    %cst_47 = arith.constant 0.000000e+00 : f32
    %127 = vector.broadcast %cst_47 : f32 to vector<8x256xf32>
    %128 = arith.maximumf %126, %127 : vector<8x256xf32>
    %129 = arith.truncf %128 : vector<8x256xf32> to vector<8x256xbf16>
    %c0_48 = arith.constant 0 : index
    %c0_49 = arith.constant 0 : index
    %130 = vector.load %arg12[%c0_48, %c0_49] : memref<256x128xbf16, #tpu.memory_space<vmem>>, vector<256x128xbf16>
    %cst_50 = arith.constant dense<0.000000e+00> : vector<8x128xf32>
    %131 = tpu.matmul %129, %130, %cst_50 {dimension_numbers = #tpu.dot_dimension_numbers<[1], [0], [0], [1], [0, 0, 1, 1], [], []>} : vector<8x256xbf16>, vector<256x128xbf16>, vector<8x128xf32> -> vector<8x128xf32>
    %c0_51 = arith.constant 0 : index
    %c0_52 = arith.constant 0 : index
    %132 = vector.load %arg13[%c0_51, %c0_52] : memref<1x128xf32, #tpu.memory_space<vmem>>, vector<1x128xf32>
    %133 = vector.broadcast %132 : vector<1x128xf32> to vector<8x128xf32>
    %134 = arith.addf %131, %133 : vector<8x128xf32>
    %c0_53 = arith.constant 0 : index
    %c0_54 = arith.constant 0 : index
    %135 = vector.load %arg14[%c0_53, %c0_54] : memref<1x128xf32, #tpu.memory_space<vmem>>, vector<1x128xf32>
    %c0_55 = arith.constant 0 : index
    %c0_56 = arith.constant 0 : index
    %136 = vector.load %arg15[%c0_55, %c0_56] : memref<1x128xf32, #tpu.memory_space<vmem>>, vector<1x128xf32>
    %cst_57 = arith.constant dense<0.000000e+00> : vector<8xf32>
    %137 = vector.multi_reduction <add>, %134, %cst_57 [1] : vector<8x128xf32> to vector<8xf32>
    %138 = vector.shape_cast %137 : vector<8xf32> to vector<8x1xf32>
    %cst_58 = arith.constant 1.280000e+02 : f32
    %139 = vector.broadcast %cst_58 : f32 to vector<8x1xf32>
    %140 = arith.divf %138, %139 : vector<8x1xf32>
    %141 = vector.broadcast %140 : vector<8x1xf32> to vector<8x128xf32>
    %142 = arith.subf %134, %141 : vector<8x128xf32>
    %143 = arith.mulf %142, %142 : vector<8x128xf32>
    %cst_59 = arith.constant dense<0.000000e+00> : vector<8xf32>
    %144 = vector.multi_reduction <add>, %143, %cst_59 [1] : vector<8x128xf32> to vector<8xf32>
    %145 = vector.shape_cast %144 : vector<8xf32> to vector<8x1xf32>
    %cst_60 = arith.constant 1.280000e+02 : f32
    %146 = vector.broadcast %cst_60 : f32 to vector<8x1xf32>
    %147 = arith.divf %145, %146 : vector<8x1xf32>
    %cst_61 = arith.constant 9.99999974E-6 : f32
    %148 = vector.broadcast %cst_61 : f32 to vector<8x1xf32>
    %149 = arith.addf %147, %148 : vector<8x1xf32>
    %150 = math.rsqrt %149 : vector<8x1xf32>
    %151 = vector.broadcast %150 : vector<8x1xf32> to vector<8x128xf32>
    %152 = arith.mulf %142, %151 : vector<8x128xf32>
    %153 = vector.broadcast %135 : vector<1x128xf32> to vector<8x128xf32>
    %154 = arith.mulf %152, %153 : vector<8x128xf32>
    %155 = vector.broadcast %136 : vector<1x128xf32> to vector<8x128xf32>
    %156 = arith.addf %154, %155 : vector<8x128xf32>
    %c0_62 = arith.constant 0 : index
    %c0_63 = arith.constant 0 : index
    %157 = vector.load %arg16[%c0_62, %c0_63] : memref<8x128xf32, #tpu.memory_space<vmem>>, vector<8x128xf32>
    tpu.vector_store %arg16[%c0_62, %c0_63], %156 {strides = array<i32>} : memref<8x128xf32, #tpu.memory_space<vmem>>, vector<8x128xf32>,
    return
  }
  func.func @transform_0(%arg0: i32) -> (i32, i32, i32) {
    %c0_i32 = arith.constant 0 : i32
    %c0_i32_0 = arith.constant 0 : i32
    %c0_i32_1 = arith.constant 0 : i32
    return %c0_i32, %arg0, %c0_i32_0 : i32, i32, i32
  }
  func.func @transform_1(%arg0: i32) -> (i32, i32) {
    %c0_i32 = arith.constant 0 : i32
    %c0_i32_0 = arith.constant 0 : i32
    %c0_i32_1 = arith.constant 0 : i32
    return %c0_i32, %c0_i32_0 : i32, i32
  }
  func.func @transform_2(%arg0: i32) -> (i32, i32) {
    %c0_i32 = arith.constant 0 : i32
    %c0_i32_0 = arith.constant 0 : i32
    %c0_i32_1 = arith.constant 0 : i32
    return %c0_i32, %c0_i32_0 : i32, i32
  }
  func.func @transform_3(%arg0: i32) -> (i32, i32) {
    %c0_i32 = arith.constant 0 : i32
    %c0_i32_0 = arith.constant 0 : i32
    %c0_i32_1 = arith.constant 0 : i32
    return %c0_i32, %c0_i32_0 : i32, i32
  }
  func.func @transform_4(%arg0: i32) -> (i32, i32) {
    %c0_i32 = arith.constant 0 : i32
    %c0_i32_0 = arith.constant 0 : i32
    %c0_i32_1 = arith.constant 0 : i32
    return %c0_i32, %c0_i32_0 : i32, i32
  }
  func.func @transform_5(%arg0: i32) -> (i32, i32) {
    %c0_i32 = arith.constant 0 : i32
    %c0_i32_0 = arith.constant 0 : i32
    %c0_i32_1 = arith.constant 0 : i32
    return %c0_i32, %c0_i32_0 : i32, i32
  }
  func.func @transform_6(%arg0: i32) -> (i32, i32) {
    %c0_i32 = arith.constant 0 : i32
    %c0_i32_0 = arith.constant 0 : i32
    %c0_i32_1 = arith.constant 0 : i32
    return %c0_i32, %c0_i32_0 : i32, i32
  }
  func.func @transform_7(%arg0: i32) -> (i32, i32) {
    %c0_i32 = arith.constant 0 : i32
    %c0_i32_0 = arith.constant 0 : i32
    %c0_i32_1 = arith.constant 0 : i32
    return %c0_i32, %c0_i32_0 : i32, i32
  }
  func.func @transform_8(%arg0: i32) -> (i32, i32) {
    %c0_i32 = arith.constant 0 : i32
    %c0_i32_0 = arith.constant 0 : i32
    %c0_i32_1 = arith.constant 0 : i32
    return %c0_i32, %c0_i32_0 : i32, i32
  }
  func.func @transform_9(%arg0: i32) -> (i32, i32, i32) {
    %c0_i32 = arith.constant 0 : i32
    %c0_i32_0 = arith.constant 0 : i32
    %c0_i32_1 = arith.constant 0 : i32
    %c0_i32_2 = arith.constant 0 : i32
    return %c0_i32, %c0_i32_0, %c0_i32_1 : i32, i32, i32
  }
  func.func @transform_10(%arg0: i32) -> (i32, i32) {
    %c0_i32 = arith.constant 0 : i32
    %c0_i32_0 = arith.constant 0 : i32
    %c0_i32_1 = arith.constant 0 : i32
    return %c0_i32, %c0_i32_0 : i32, i32
  }
  func.func @transform_11(%arg0: i32) -> (i32, i32) {
    %c0_i32 = arith.constant 0 : i32
    %c0_i32_0 = arith.constant 0 : i32
    %c0_i32_1 = arith.constant 0 : i32
    return %c0_i32, %c0_i32_0 : i32, i32
  }
  func.func @transform_12(%arg0: i32) -> (i32, i32) {
    %c0_i32 = arith.constant 0 : i32
    %c0_i32_0 = arith.constant 0 : i32
    %c0_i32_1 = arith.constant 0 : i32
    return %c0_i32, %c0_i32_0 : i32, i32
  }
  func.func @transform_13(%arg0: i32) -> (i32, i32) {
    %c0_i32 = arith.constant 0 : i32
    %c0_i32_0 = arith.constant 0 : i32
    %c0_i32_1 = arith.constant 0 : i32
    return %c0_i32, %c0_i32_0 : i32, i32
  }
  func.func @transform_14(%arg0: i32) -> (i32, i32) {
    %c0_i32 = arith.constant 0 : i32
    %c0_i32_0 = arith.constant 0 : i32
    %c0_i32_1 = arith.constant 0 : i32
    return %c0_i32, %c0_i32_0 : i32, i32
  }
  func.func @transform_15(%arg0: i32) -> (i32, i32) {
    %c0_i32 = arith.constant 0 : i32
    %c0_i32_0 = arith.constant 0 : i32
    return %arg0, %c0_i32 : i32, i32
  }
}

module attributes {stable_mosaic.version = 11 : i64} {
  func.func @fusion_kernel(%arg0: i32, %arg1: memref<3x8x128xf32, #tpu.memory_space<vmem>>, %arg2: memref<128x384xbf16, #tpu.memory_space<vmem>>, %arg3: memref<1x384xf32, #tpu.memory_space<vmem>>, %arg4: memref<128x4xbf16, #tpu.memory_space<vmem>>, %arg5: memref<4x128xbf16, #tpu.memory_space<vmem>>, %arg6: memref<128x128xbf16, #tpu.memory_space<vmem>>, %arg7: memref<1x128xf32, #tpu.memory_space<vmem>>, %arg8: memref<1x128xf32, #tpu.memory_space<vmem>>, %arg9: memref<1x128xf32, #tpu.memory_space<vmem>>, %arg10: memref<3x128x256xbf16, #tpu.memory_space<vmem>>, %arg11: memref<1x256xf32, #tpu.memory_space<vmem>>, %arg12: memref<256x128xbf16, #tpu.memory_space<vmem>>, %arg13: memref<1x128xf32, #tpu.memory_space<vmem>>, %arg14: memref<1x128xf32, #tpu.memory_space<vmem>>, %arg15: memref<1x128xf32, #tpu.memory_space<vmem>>, %arg16: memref<8x128xf32, #tpu.memory_space<vmem>>) attributes {dimension_semantics = [#tpu.dimension_semantics<parallel>], iteration_bounds = array<i64: 2>, scalar_prefetch = 0 : i64, scratch_operands = 0 : i64, tpu.core_type = #tpu.core_type<tc>, window_params = [{transform_indices = @transform_0, window_bounds = array<i64: 3, 8, 128>}, {pipeline_mode = #tpu.pipeline_mode<synchronous>, transform_indices = @transform_1, window_bounds = array<i64: 128, 384>}, {pipeline_mode = #tpu.pipeline_mode<synchronous>, transform_indices = @transform_2, window_bounds = array<i64: 1, 384>}, {pipeline_mode = #tpu.pipeline_mode<synchronous>, transform_indices = @transform_3, window_bounds = array<i64: 128, 4>}, {pipeline_mode = #tpu.pipeline_mode<synchronous>, transform_indices = @transform_4, window_bounds = array<i64: 4, 128>}, {pipeline_mode = #tpu.pipeline_mode<synchronous>, transform_indices = @transform_5, window_bounds = array<i64: 128, 128>}, {pipeline_mode = #tpu.pipeline_mode<synchronous>, transform_indices = @transform_6, window_bounds = array<i64: 1, 128>}, {pipeline_mode = #tpu.pipeline_mode<synchronous>, transform_indices = @transform_7, window_bounds = array<i64: 1, 128>}, {pipeline_mode = #tpu.pipeline_mode<synchronous>, transform_indices = @transform_8, window_bounds = array<i64: 1, 128>}, {pipeline_mode = #tpu.pipeline_mode<synchronous>, transform_indices = @transform_9, window_bounds = array<i64: 3, 128, 256>}, {pipeline_mode = #tpu.pipeline_mode<synchronous>, transform_indices = @transform_10, window_bounds = array<i64: 1, 256>}, {pipeline_mode = #tpu.pipeline_mode<synchronous>, transform_indices = @transform_11, window_bounds = array<i64: 256, 128>}, {pipeline_mode = #tpu.pipeline_mode<synchronous>, transform_indices = @transform_12, window_bounds = array<i64: 1, 128>}, {pipeline_mode = #tpu.pipeline_mode<synchronous>, transform_indices = @transform_13, window_bounds = array<i64: 1, 128>}, {pipeline_mode = #tpu.pipeline_mode<synchronous>, transform_indices = @transform_14, window_bounds = array<i64: 1, 128>}, {transform_indices = @transform_15, window_bounds = array<i64: 8, 128>}]} {
    %c0 = arith.constant 0 : index
    %c0_0 = arith.constant 0 : index
    %c0_1 = arith.constant 0 : index
    %0 = vector.load %arg1[%c0, %c0_0, %c0_1] : memref<3x8x128xf32, #tpu.memory_space<vmem>>, vector<3x8x128xf32>
    %1 = vector.shape_cast %0 : vector<3x8x128xf32> to vector<24x128xf32>
    %2 = arith.truncf %1 : vector<24x128xf32> to vector<24x128xbf16>
    %c0_2 = arith.constant 0 : index
    %c0_3 = arith.constant 0 : index
    %3 = vector.load %arg2[%c0_2, %c0_3] : memref<128x384xbf16, #tpu.memory_space<vmem>>, vector<128x384xbf16>
    %cst = arith.constant dense<0.000000e+00> : vector<24x384xf32>
    %4 = tpu.matmul %2, %3, %cst {dimension_numbers = #tpu.dot_dimension_numbers<[1], [0], [0], [1], [0, 0, 1, 1], [], []>} : vector<24x128xbf16>, vector<128x384xbf16>, vector<24x384xf32> -> vector<24x384xf32>
    %c0_4 = arith.constant 0 : index
    %c0_5 = arith.constant 0 : index
    %5 = vector.load %arg3[%c0_4, %c0_5] : memref<1x384xf32, #tpu.memory_space<vmem>>, vector<1x384xf32>
    %6 = vector.broadcast %5 : vector<1x384xf32> to vector<24x384xf32>
    %7 = arith.addf %4, %6 : vector<24x384xf32>
    %8 = vector.extract_strided_slice %7 {offsets = [0, 0], sizes = [24, 128], strides = [1, 1]} : vector<24x384xf32> to vector<24x128xf32>
    %9 = vector.shape_cast %8 : vector<24x128xf32> to vector<3x8x128xf32>
    %10 = arith.truncf %9 : vector<3x8x128xf32> to vector<3x8x128xbf16>
    %11 = vector.extract_strided_slice %7 {offsets = [0, 128], sizes = [24, 128], strides = [1, 1]} : vector<24x384xf32> to vector<24x128xf32>
    %12 = vector.shape_cast %11 : vector<24x128xf32> to vector<3x8x128xf32>
    %13 = arith.truncf %12 : vector<3x8x128xf32> to vector<3x8x128xbf16>
    %14 = vector.extract_strided_slice %7 {offsets = [0, 256], sizes = [24, 128], strides = [1, 1]} : vector<24x384xf32> to vector<24x128xf32>
    %15 = vector.shape_cast %14 : vector<24x128xf32> to vector<3x8x128xf32>
    %16 = vector.shape_cast %10 : vector<3x8x128xbf16> to vector<3x1x8x128xbf16>
    %17 = vector.shape_cast %13 : vector<3x8x128xbf16> to vector<1x3x8x128xbf16>
    %18 = vector.broadcast %16 : vector<3x1x8x128xbf16> to vector<3x3x8x128xbf16>
    %19 = vector.broadcast %17 : vector<1x3x8x128xbf16> to vector<3x3x8x128xbf16>
    %20 = arith.mulf %18, %19 : vector<3x3x8x128xbf16>
    %21 = vector.shape_cast %20 : vector<3x3x8x128xbf16> to vector<72x128xbf16>
    %c0_6 = arith.constant 0 : index
    %c0_7 = arith.constant 0 : index
    %22 = vector.load %arg4[%c0_6, %c0_7] : memref<128x4xbf16, #tpu.memory_space<vmem>>, vector<128x4xbf16>
    %cst_8 = arith.constant dense<0.000000e+00> : vector<72x4xf32>
    %23 = tpu.matmul %21, %22, %cst_8 {dimension_numbers = #tpu.dot_dimension_numbers<[1], [0], [0], [1], [0, 0, 1, 1], [], []>} : vector<72x128xbf16>, vector<128x4xbf16>, vector<72x4xf32> -> vector<72x4xf32>
    %24 = vector.shape_cast %23 : vector<72x4xf32> to vector<3x3x8x4xf32>
    %cst_9 = arith.constant dense<0xFF800000> : vector<3x8x4xf32>
    %25 = vector.multi_reduction <maximumf>, %24, %cst_9 [1] : vector<3x3x8x4xf32> to vector<3x8x4xf32>
    %26 = vector.shape_cast %25 : vector<3x8x4xf32> to vector<3x1x8x4xf32>
    %27 = vector.broadcast %26 : vector<3x1x8x4xf32> to vector<3x3x8x4xf32>
    %28 = arith.subf %24, %27 : vector<3x3x8x4xf32>
    %29 = math.exp %28 : vector<3x3x8x4xf32>
    %cst_10 = arith.constant dense<0.000000e+00> : vector<3x8x4xf32>
    %30 = vector.multi_reduction <add>, %29, %cst_10 [1] : vector<3x3x8x4xf32> to vector<3x8x4xf32>
    %31 = vector.shape_cast %30 : vector<3x8x4xf32> to vector<3x1x8x4xf32>
    %32 = tpu.reciprocal %31 {approx = true} : vector<3x1x8x4xf32> -> vector<3x1x8x4xf32>
    %33 = vector.broadcast %32 : vector<3x1x8x4xf32> to vector<3x3x8x4xf32>
    %34 = arith.mulf %29, %33 : vector<3x3x8x4xf32>
    %35 = arith.truncf %34 : vector<3x3x8x4xf32> to vector<3x3x8x4xbf16>
    %cst_11 = arith.constant 0.000000e+00 : f32
    %36 = vector.broadcast %cst_11 : f32 to vector<24x128xf32>
    %37 = vector.extract_strided_slice %35 {offsets = [0, 0, 0, 0], sizes = [3, 1, 8, 4], strides = [1, 1, 1, 1]} : vector<3x3x8x4xbf16> to vector<3x1x8x4xbf16>
    %38 = vector.shape_cast %37 : vector<3x1x8x4xbf16> to vector<3x8x4xbf16>
    %39 = vector.shape_cast %38 : vector<3x8x4xbf16> to vector<24x4xbf16>
    %c0_12 = arith.constant 0 : index
    %c0_13 = arith.constant 0 : index
    %40 = vector.load %arg5[%c0_12, %c0_13] : memref<4x128xbf16, #tpu.memory_space<vmem>>, vector<4x128xbf16>
    %cst_14 = arith.constant dense<0.000000e+00> : vector<24x128xf32>
    %41 = tpu.matmul %39, %40, %cst_14 {dimension_numbers = #tpu.dot_dimension_numbers<[1], [0], [0], [1], [0, 0, 1, 1], [], []>} : vector<24x4xbf16>, vector<4x128xbf16>, vector<24x128xf32> -> vector<24x128xf32>
    %42 = vector.shape_cast %41 : vector<24x128xf32> to vector<3x8x128xf32>
    %43 = vector.extract_strided_slice %15 {offsets = [0, 0, 0], sizes = [1, 8, 128], strides = [1, 1, 1]} : vector<3x8x128xf32> to vector<1x8x128xf32>
    %44 = vector.shape_cast %43 : vector<1x8x128xf32> to vector<8x128xf32>
    %45 = vector.shape_cast %44 : vector<8x128xf32> to vector<1x8x128xf32>
    %46 = vector.broadcast %45 : vector<1x8x128xf32> to vector<3x8x128xf32>
    %47 = arith.mulf %42, %46 : vector<3x8x128xf32>
    %48 = vector.shape_cast %47 : vector<3x8x128xf32> to vector<24x128xf32>
    %49 = arith.addf %36, %48 : vector<24x128xf32>
    %50 = vector.extract_strided_slice %35 {offsets = [0, 1, 0, 0], sizes = [3, 1, 8, 4], strides = [1, 1, 1, 1]} : vector<3x3x8x4xbf16> to vector<3x1x8x4xbf16>
    %51 = vector.shape_cast %50 : vector<3x1x8x4xbf16> to vector<3x8x4xbf16>
    %52 = vector.shape_cast %51 : vector<3x8x4xbf16> to vector<24x4xbf16>
    %c0_15 = arith.constant 0 : index
    %c0_16 = arith.constant 0 : index
    %53 = vector.load %arg5[%c0_15, %c0_16] : memref<4x128xbf16, #tpu.memory_space<vmem>>, vector<4x128xbf16>
    %cst_17 = arith.constant dense<0.000000e+00> : vector<24x128xf32>
    %54 = tpu.matmul %52, %53, %cst_17 {dimension_numbers = #tpu.dot_dimension_numbers<[1], [0], [0], [1], [0, 0, 1, 1], [], []>} : vector<24x4xbf16>, vector<4x128xbf16>, vector<24x128xf32> -> vector<24x128xf32>
    %55 = vector.shape_cast %54 : vector<24x128xf32> to vector<3x8x128xf32>
    %56 = vector.extract_strided_slice %15 {offsets = [1, 0, 0], sizes = [1, 8, 128], strides = [1, 1, 1]} : vector<3x8x128xf32> to vector<1x8x128xf32>
    %57 = vector.shape_cast %56 : vector<1x8x128xf32> to vector<8x128xf32>
    %58 = vector.shape_cast %57 : vector<8x128xf32> to vector<1x8x128xf32>
    %59 = vector.broadcast %58 : vector<1x8x128xf32> to vector<3x8x128xf32>
    %60 = arith.mulf %55, %59 : vector<3x8x128xf32>
    %61 = vector.shape_cast %60 : vector<3x8x128xf32> to vector<24x128xf32>
    %62 = arith.addf %49, %61 : vector<24x128xf32>
    %63 = vector.extract_strided_slice %35 {offsets = [0, 2, 0, 0], sizes = [3, 1, 8, 4], strides = [1, 1, 1, 1]} : vector<3x3x8x4xbf16> to vector<3x1x8x4xbf16>
    %64 = vector.shape_cast %63 : vector<3x1x8x4xbf16> to vector<3x8x4xbf16>
    %65 = vector.shape_cast %64 : vector<3x8x4xbf16> to vector<24x4xbf16>
    %c0_18 = arith.constant 0 : index
    %c0_19 = arith.constant 0 : index
    %66 = vector.load %arg5[%c0_18, %c0_19] : memref<4x128xbf16, #tpu.memory_space<vmem>>, vector<4x128xbf16>
    %cst_20 = arith.constant dense<0.000000e+00> : vector<24x128xf32>
    %67 = tpu.matmul %65, %66, %cst_20 {dimension_numbers = #tpu.dot_dimension_numbers<[1], [0], [0], [1], [0, 0, 1, 1], [], []>} : vector<24x4xbf16>, vector<4x128xbf16>, vector<24x128xf32> -> vector<24x128xf32>
    %68 = vector.shape_cast %67 : vector<24x128xf32> to vector<3x8x128xf32>
    %69 = vector.extract_strided_slice %15 {offsets = [2, 0, 0], sizes = [1, 8, 128], strides = [1, 1, 1]} : vector<3x8x128xf32> to vector<1x8x128xf32>
    %70 = vector.shape_cast %69 : vector<1x8x128xf32> to vector<8x128xf32>
    %71 = vector.shape_cast %70 : vector<8x128xf32> to vector<1x8x128xf32>
    %72 = vector.broadcast %71 : vector<1x8x128xf32> to vector<3x8x128xf32>
    %73 = arith.mulf %68, %72 : vector<3x8x128xf32>
    %74 = vector.shape_cast %73 : vector<3x8x128xf32> to vector<24x128xf32>
    %75 = arith.addf %62, %74 : vector<24x128xf32>
    %76 = arith.truncf %75 : vector<24x128xf32> to vector<24x128xbf16>
    %c0_21 = arith.constant 0 : index
    %c0_22 = arith.constant 0 : index
    %77 = vector.load %arg6[%c0_21, %c0_22] : memref<128x128xbf16, #tpu.memory_space<vmem>>, vector<128x128xbf16>
    %cst_23 = arith.constant dense<0.000000e+00> : vector<24x128xf32>
    %78 = tpu.matmul %76, %77, %cst_23 {dimension_numbers = #tpu.dot_dimension_numbers<[1], [0], [0], [1], [0, 0, 1, 1], [], []>} : vector<24x128xbf16>, vector<128x128xbf16>, vector<24x128xf32> -> vector<24x128xf32>
    %c0_24 = arith.constant 0 : index
    %c0_25 = arith.constant 0 : index
    %79 = vector.load %arg7[%c0_24, %c0_25] : memref<1x128xf32, #tpu.memory_space<vmem>>, vector<1x128xf32>
    %80 = vector.broadcast %79 : vector<1x128xf32> to vector<24x128xf32>
    %81 = arith.addf %78, %80 : vector<24x128xf32>
    %82 = arith.addf %1, %81 : vector<24x128xf32>
    %c0_26 = arith.constant 0 : index
    %c0_27 = arith.constant 0 : index
    %83 = vector.load %arg8[%c0_26, %c0_27] : memref<1x128xf32, #tpu.memory_space<vmem>>, vector<1x128xf32>
    %c0_28 = arith.constant 0 : index
    %c0_29 = arith.constant 0 : index
    %84 = vector.load %arg9[%c0_28, %c0_29] : memref<1x128xf32, #tpu.memory_space<vmem>>, vector<1x128xf32>
    %cst_30 = arith.constant dense<0.000000e+00> : vector<24xf32>
    %85 = vector.multi_reduction <add>, %82, %cst_30 [1] : vector<24x128xf32> to vector<24xf32>
    %86 = vector.shape_cast %85 : vector<24xf32> to vector<24x1xf32>
    %cst_31 = arith.constant 1.280000e+02 : f32
    %87 = vector.broadcast %cst_31 : f32 to vector<24x1xf32>
    %88 = arith.divf %86, %87 : vector<24x1xf32>
    %89 = vector.broadcast %88 : vector<24x1xf32> to vector<24x128xf32>
    %90 = arith.subf %82, %89 : vector<24x128xf32>
    %91 = arith.mulf %90, %90 : vector<24x128xf32>
    %cst_32 = arith.constant dense<0.000000e+00> : vector<24xf32>
    %92 = vector.multi_reduction <add>, %91, %cst_32 [1] : vector<24x128xf32> to vector<24xf32>
    %93 = vector.shape_cast %92 : vector<24xf32> to vector<24x1xf32>
    %cst_33 = arith.constant 1.280000e+02 : f32
    %94 = vector.broadcast %cst_33 : f32 to vector<24x1xf32>
    %95 = arith.divf %93, %94 : vector<24x1xf32>
    %cst_34 = arith.constant 9.99999974E-6 : f32
    %96 = vector.broadcast %cst_34 : f32 to vector<24x1xf32>
    %97 = arith.addf %95, %96 : vector<24x1xf32>
    %98 = math.rsqrt %97 : vector<24x1xf32>
    %99 = vector.broadcast %98 : vector<24x1xf32> to vector<24x128xf32>
    %100 = arith.mulf %90, %99 : vector<24x128xf32>
    %101 = vector.broadcast %83 : vector<1x128xf32> to vector<24x128xf32>
    %102 = arith.mulf %100, %101 : vector<24x128xf32>
    %103 = vector.broadcast %84 : vector<1x128xf32> to vector<24x128xf32>
    %104 = arith.addf %102, %103 : vector<24x128xf32>
    %105 = vector.shape_cast %104 : vector<24x128xf32> to vector<3x8x128xf32>
    %106 = arith.truncf %105 : vector<3x8x128xf32> to vector<3x8x128xbf16>
    %107 = vector.extract_strided_slice %106 {offsets = [0, 0, 0], sizes = [1, 8, 128], strides = [1, 1, 1]} : vector<3x8x128xbf16> to vector<1x8x128xbf16>
    %108 = vector.shape_cast %107 : vector<1x8x128xbf16> to vector<8x128xbf16>
    %c0_35 = arith.constant 0 : index
    %c0_36 = arith.constant 0 : index
    %c0_37 = arith.constant 0 : index
    %109 = vector.load %arg10[%c0_35, %c0_36, %c0_37] : memref<3x128x256xbf16, #tpu.memory_space<vmem>>, vector<1x128x256xbf16>
    %110 = vector.shape_cast %109 : vector<1x128x256xbf16> to vector<128x256xbf16>
    %cst_38 = arith.constant dense<0.000000e+00> : vector<8x256xf32>
    %111 = tpu.matmul %108, %110, %cst_38 {dimension_numbers = #tpu.dot_dimension_numbers<[1], [0], [0], [1], [0, 0, 1, 1], [], []>} : vector<8x128xbf16>, vector<128x256xbf16>, vector<8x256xf32> -> vector<8x256xf32>
    %112 = vector.extract_strided_slice %106 {offsets = [1, 0, 0], sizes = [1, 8, 128], strides = [1, 1, 1]} : vector<3x8x128xbf16> to vector<1x8x128xbf16>
    %113 = vector.shape_cast %112 : vector<1x8x128xbf16> to vector<8x128xbf16>
    %c1 = arith.constant 1 : index
    %c0_39 = arith.constant 0 : index
    %c0_40 = arith.constant 0 : index
    %114 = vector.load %arg10[%c1, %c0_39, %c0_40] : memref<3x128x256xbf16, #tpu.memory_space<vmem>>, vector<1x128x256xbf16>
    %115 = vector.shape_cast %114 : vector<1x128x256xbf16> to vector<128x256xbf16>
    %cst_41 = arith.constant dense<0.000000e+00> : vector<8x256xf32>
    %116 = tpu.matmul %113, %115, %cst_41 {dimension_numbers = #tpu.dot_dimension_numbers<[1], [0], [0], [1], [0, 0, 1, 1], [], []>} : vector<8x128xbf16>, vector<128x256xbf16>, vector<8x256xf32> -> vector<8x256xf32>
    %117 = arith.addf %111, %116 : vector<8x256xf32>
    %118 = vector.extract_strided_slice %106 {offsets = [2, 0, 0], sizes = [1, 8, 128], strides = [1, 1, 1]} : vector<3x8x128xbf16> to vector<1x8x128xbf16>
    %119 = vector.shape_cast %118 : vector<1x8x128xbf16> to vector<8x128xbf16>
    %c2 = arith.constant 2 : index
    %c0_42 = arith.constant 0 : index
    %c0_43 = arith.constant 0 : index
    %120 = vector.load %arg10[%c2, %c0_42, %c0_43] : memref<3x128x256xbf16, #tpu.memory_space<vmem>>, vector<1x128x256xbf16>
    %121 = vector.shape_cast %120 : vector<1x128x256xbf16> to vector<128x256xbf16>
    %cst_44 = arith.constant dense<0.000000e+00> : vector<8x256xf32>
    %122 = tpu.matmul %119, %121, %cst_44 {dimension_numbers = #tpu.dot_dimension_numbers<[1], [0], [0], [1], [0, 0, 1, 1], [], []>} : vector<8x128xbf16>, vector<128x256xbf16>, vector<8x256xf32> -> vector<8x256xf32>
    %123 = arith.addf %117, %122 : vector<8x256xf32>
    %c0_45 = arith.constant 0 : index
    %c0_46 = arith.constant 0 : index
    %124 = vector.load %arg11[%c0_45, %c0_46] : memref<1x256xf32, #tpu.memory_space<vmem>>, vector<1x256xf32>
    %125 = vector.broadcast %124 : vector<1x256xf32> to vector<8x256xf32>
    %126 = arith.addf %123, %125 : vector<8x256xf32>
    %cst_47 = arith.constant 0.000000e+00 : f32
    %127 = vector.broadcast %cst_47 : f32 to vector<8x256xf32>
    %128 = arith.maximumf %126, %127 : vector<8x256xf32>
    %129 = arith.truncf %128 : vector<8x256xf32> to vector<8x256xbf16>
    %c0_48 = arith.constant 0 : index
    %c0_49 = arith.constant 0 : index
    %130 = vector.load %arg12[%c0_48, %c0_49] : memref<256x128xbf16, #tpu.memory_space<vmem>>, vector<256x128xbf16>
    %cst_50 = arith.constant dense<0.000000e+00> : vector<8x128xf32>
    %131 = tpu.matmul %129, %130, %cst_50 {dimension_numbers = #tpu.dot_dimension_numbers<[1], [0], [0], [1], [0, 0, 1, 1], [], []>} : vector<8x256xbf16>, vector<256x128xbf16>, vector<8x128xf32> -> vector<8x128xf32>
    %c0_51 = arith.constant 0 : index
    %c0_52 = arith.constant 0 : index
    %132 = vector.load %arg13[%c0_51, %c0_52] : memref<1x128xf32, #tpu.memory_space<vmem>>, vector<1x128xf32>
    %133 = vector.broadcast %132 : vector<1x128xf32> to vector<8x128xf32>
    %134 = arith.addf %131, %133 : vector<8x128xf32>
    %c0_53 = arith.constant 0 : index
    %c0_54 = arith.constant 0 : index
    %135 = vector.load %arg14[%c0_53, %c0_54] : memref<1x128xf32, #tpu.memory_space<vmem>>, vector<1x128xf32>
    %c0_55 = arith.constant 0 : index
    %c0_56 = arith.constant 0 : index
    %136 = vector.load %arg15[%c0_55, %c0_56] : memref<1x128xf32, #tpu.memory_space<vmem>>, vector<1x128xf32>
    %cst_57 = arith.constant dense<0.000000e+00> : vector<8xf32>
    %137 = vector.multi_reduction <add>, %134, %cst_57 [1] : vector<8x128xf32> to vector<8xf32>
    %138 = vector.shape_cast %137 : vector<8xf32> to vector<8x1xf32>
    %cst_58 = arith.constant 1.280000e+02 : f32
    %139 = vector.broadcast %cst_58 : f32 to vector<8x1xf32>
    %140 = arith.divf %138, %139 : vector<8x1xf32>
    %141 = vector.broadcast %140 : vector<8x1xf32> to vector<8x128xf32>
    %142 = arith.subf %134, %141 : vector<8x128xf32>
    %143 = arith.mulf %142, %142 : vector<8x128xf32>
    %cst_59 = arith.constant dense<0.000000e+00> : vector<8xf32>
    %144 = vector.multi_reduction <add>, %143, %cst_59 [1] : vector<8x128xf32> to vector<8xf32>
    %145 = vector.shape_cast %144 : vector<8xf32> to vector<8x1xf32>
    %cst_60 = arith.constant 1.280000e+02 : f32
    %146 = vector.broadcast %cst_60 : f32 to vector<8x1xf32>
    %147 = arith.divf %145, %146 : vector<8x1xf32>
    %cst_61 = arith.constant 9.99999974E-6 : f32
    %148 = vector.broadcast %cst_61 : f32 to vector<8x1xf32>
    %149 = arith.addf %147, %148 : vector<8x1xf32>
    %150 = math.rsqrt %149 : vector<8x1xf32>
    %151 = vector.broadcast %150 : vector<8x1xf32> to vector<8x128xf32>
    %152 = arith.mulf %142, %151 : vector<8x128xf32>
    %153 = vector.broadcast %135 : vector<1x128xf32> to vector<8x128xf32>
    %154 = arith.mulf %152, %153 : vector<8x128xf32>
    %155 = vector.broadcast %136 : vector<1x128xf32> to vector<8x128xf32>
    %156 = arith.addf %154, %155 : vector<8x128xf32>
    %c0_62 = arith.constant 0 : index
    %c0_63 = arith.constant 0 : index
    %157 = vector.load %arg16[%c0_62, %c0_63] : memref<8x128xf32, #tpu.memory_space<vmem>>, vector<8x128xf32>
    tpu.vector_store %arg16[%c0_62, %c0_63], %156 {strides = array<i32>} : memref<8x128xf32, #tpu.memory_space<vmem>>, vector<8x128xf32>,
    return
  }
  func.func @transform_0(%arg0: i32) -> (i32, i32, i32) {
    %c0_i32 = arith.constant 0 : i32
    %c0_i32_0 = arith.constant 0 : i32
    %c0_i32_1 = arith.constant 0 : i32
    return %c0_i32, %arg0, %c0_i32_0 : i32, i32, i32
  }
  func.func @transform_1(%arg0: i32) -> (i32, i32) {
    %c0_i32 = arith.constant 0 : i32
    %c0_i32_0 = arith.constant 0 : i32
    %c0_i32_1 = arith.constant 0 : i32
    return %c0_i32, %c0_i32_0 : i32, i32
  }
  func.func @transform_2(%arg0: i32) -> (i32, i32) {
    %c0_i32 = arith.constant 0 : i32
    %c0_i32_0 = arith.constant 0 : i32
    %c0_i32_1 = arith.constant 0 : i32
    return %c0_i32, %c0_i32_0 : i32, i32
  }
  func.func @transform_3(%arg0: i32) -> (i32, i32) {
    %c0_i32 = arith.constant 0 : i32
    %c0_i32_0 = arith.constant 0 : i32
    %c0_i32_1 = arith.constant 0 : i32
    return %c0_i32, %c0_i32_0 : i32, i32
  }
  func.func @transform_4(%arg0: i32) -> (i32, i32) {
    %c0_i32 = arith.constant 0 : i32
    %c0_i32_0 = arith.constant 0 : i32
    %c0_i32_1 = arith.constant 0 : i32
    return %c0_i32, %c0_i32_0 : i32, i32
  }
  func.func @transform_5(%arg0: i32) -> (i32, i32) {
    %c0_i32 = arith.constant 0 : i32
    %c0_i32_0 = arith.constant 0 : i32
    %c0_i32_1 = arith.constant 0 : i32
    return %c0_i32, %c0_i32_0 : i32, i32
  }
  func.func @transform_6(%arg0: i32) -> (i32, i32) {
    %c0_i32 = arith.constant 0 : i32
    %c0_i32_0 = arith.constant 0 : i32
    %c0_i32_1 = arith.constant 0 : i32
    return %c0_i32, %c0_i32_0 : i32, i32
  }
  func.func @transform_7(%arg0: i32) -> (i32, i32) {
    %c0_i32 = arith.constant 0 : i32
    %c0_i32_0 = arith.constant 0 : i32
    %c0_i32_1 = arith.constant 0 : i32
    return %c0_i32, %c0_i32_0 : i32, i32
  }
  func.func @transform_8(%arg0: i32) -> (i32, i32) {
    %c0_i32 = arith.constant 0 : i32
    %c0_i32_0 = arith.constant 0 : i32
    %c0_i32_1 = arith.constant 0 : i32
    return %c0_i32, %c0_i32_0 : i32, i32
  }
  func.func @transform_9(%arg0: i32) -> (i32, i32, i32) {
    %c0_i32 = arith.constant 0 : i32
    %c0_i32_0 = arith.constant 0 : i32
    %c0_i32_1 = arith.constant 0 : i32
    %c0_i32_2 = arith.constant 0 : i32
    return %c0_i32, %c0_i32_0, %c0_i32_1 : i32, i32, i32
  }
  func.func @transform_10(%arg0: i32) -> (i32, i32) {
    %c0_i32 = arith.constant 0 : i32
    %c0_i32_0 = arith.constant 0 : i32
    %c0_i32_1 = arith.constant 0 : i32
    return %c0_i32, %c0_i32_0 : i32, i32
  }
  func.func @transform_11(%arg0: i32) -> (i32, i32) {
    %c0_i32 = arith.constant 0 : i32
    %c0_i32_0 = arith.constant 0 : i32
    %c0_i32_1 = arith.constant 0 : i32
    return %c0_i32, %c0_i32_0 : i32, i32
  }
  func.func @transform_12(%arg0: i32) -> (i32, i32) {
    %c0_i32 = arith.constant 0 : i32
    %c0_i32_0 = arith.constant 0 : i32
    %c0_i32_1 = arith.constant 0 : i32
    return %c0_i32, %c0_i32_0 : i32, i32
  }
  func.func @transform_13(%arg0: i32) -> (i32, i32) {
    %c0_i32 = arith.constant 0 : i32
    %c0_i32_0 = arith.constant 0 : i32
    %c0_i32_1 = arith.constant 0 : i32
    return %c0_i32, %c0_i32_0 : i32, i32
  }
  func.func @transform_14(%arg0: i32) -> (i32, i32) {
    %c0_i32 = arith.constant 0 : i32
    %c0_i32_0 = arith.constant 0 : i32
    %c0_i32_1 = arith.constant 0 : i32
    return %c0_i32, %c0_i32_0 : i32, i32
  }
  func.func @transform_15(%arg0: i32) -> (i32, i32) {
    %c0_i32 = arith.constant 0 : i32
    %c0_i32_0 = arith.constant 0 : i32
    return %arg0, %c0_i32 : i32, i32
  }
}

</mosaic_0001>

<llo_original>
// kernel: tpu_custom_call.1
$region0: #{tpu_custom_call.1}
  #allocation0 [shape = 'u32[]', space=smem, size = 0x4, offset = 0x4, fixed_abs, tag = 'smem constant byte address 0x4 - core index']
  #allocation1 [shape = 'u32[72,128]{1,0:T(1,128)}', space=vmem, size = 0x9000, scoped, tag = 'internal scratch']
  %s0 = inlined_call_operand.hbm [shape: f32[3,16,128], index: 0, kind: input, shape index: {}]
  %s1 = inlined_call_operand.hbm [shape: bf16[128,384], index: 1, kind: input, shape index: {}]
  %s2 = inlined_call_operand.vmem [shape: f32[1,384], index: 2, kind: input, shape index: {}]
  %s3 = inlined_call_operand.vmem [shape: bf16[128,4], index: 3, kind: input, shape index: {}]
  %s4 = inlined_call_operand.vmem [shape: bf16[4,128], index: 4, kind: input, shape index: {}]
  %s5 = inlined_call_operand.vmem [shape: bf16[128,128], index: 5, kind: input, shape index: {}]
  %s6 = inlined_call_operand.hbm [shape: f32[1,128], index: 6, kind: input, shape index: {}]
  %s7 = inlined_call_operand.vmem [shape: f32[1,128], index: 7, kind: input, shape index: {}]
  %s8 = inlined_call_operand.vmem [shape: f32[1,128], index: 8, kind: input, shape index: {}]
  %s9 = inlined_call_operand.hbm [shape: bf16[3,128,256], index: 9, kind: input, shape index: {}]
  %s10 = inlined_call_operand.vmem [shape: f32[1,256], index: 10, kind: input, shape index: {}]
  %s11 = inlined_call_operand.hbm [shape: bf16[256,128], index: 11, kind: input, shape index: {}]
  %s12 = inlined_call_operand.vmem [shape: f32[1,128], index: 12, kind: input, shape index: {}]
  %s13 = inlined_call_operand.vmem [shape: f32[1,128], index: 13, kind: input, shape index: {}]
  %s14 = inlined_call_operand.vmem [shape: f32[1,128], index: 14, kind: input, shape index: {}]
  %s15 = inlined_call_operand.hbm [shape: f32[16,128], index: 15, kind: output, shape index: {}]
  %s16 = sld [smem:[#allocation0]]
  $region113: #{tpu_custom_call.1} parent=0
    _
  %s18 = ssub.s32 1, %s16
  %s19 = scalar_select 0, %s18, %s16
  $region1: #{tpu_custom_call.1} parent=0
    #allocation2 [shape = 'u8[24576]{0}', space=vmem, size = 0x6000, scoped, tag = 'input window, operand 0']
    #allocation3 [shape = 's32[2]{0}', space=sflag, size = 0x8, scoped, tag = 'scoped memory for tpu_custom_call.1']
    #allocation4 [shape = 's32[2]{0}', space=sflag, size = 0x8, scoped, tag = 'scoped memory for tpu_custom_call.1']
    #allocation5 [shape = 'u8[98304]{0}', space=vmem, size = 0x18000, scoped, tag = 'input window, operand 1, single buffered']
    #allocation6 [shape = 's32[1]{0}', space=sflag, size = 0x4, scoped, tag = 'scoped memory for tpu_custom_call.1']
    #allocation7 [shape = 'u8[512]{0}', space=vmem, size = 0x400, scoped, tag = 'input window, operand 6, single buffered']
    #allocation8 [shape = 'u8[196608]{0}', space=vmem, size = 0x30000, scoped, tag = 'input window, operand 9, single buffered']
    #allocation9 [shape = 's32[1]{0}', space=sflag, size = 0x4, scoped, tag = 'scoped memory for tpu_custom_call.1']
    #allocation10 [shape = 'u8[65536]{0}', space=vmem, size = 0x10000, scoped, tag = 'input window, operand 11, single buffered']
    #allocation11 [shape = 'u8[8192]{0}', space=vmem, size = 0x2000, scoped, tag = 'output window, operand 0']
    %20 = vsyncpa [#allocation3], 0
    %s21 = scalar_lea.sflag [#allocation3], 1
    %22 = vsyncpa %s21, 0
    %23 = vsyncpa [#allocation6], 0
    %24 = vsyncpa [#allocation9], 0
    %25 = vsyncpa [#allocation4], 0
    %s26 = scalar_lea.sflag [#allocation4], 1
    %27 = vsyncpa %s26, 0
    loop: start=0, step=1, limit=4
    $region2: #{tpu_custom_call.1} parent=1 // loop_pre_header
      _
    $region3: #{tpu_custom_call.1} parent=1 // loop_header
      %s29 = sphi 0, %s33
      %p30 = scmp.ge.s32.totalorder %s29, 4
      %s39 = sphi 0, %s41
      %s42 = sphi 0, %s39
      %s43 = sphi 0, %s42
      %s59 = sphi 0, %s43
      %s63 = sphi 0, %s63
      %s65 = sphi 0, %s63
      %s66 = sphi 0, %s65
      %s80 = sphi 0, %s66
      %s84 = sphi 0, %s84
      %s86 = sphi 0, %s84
      %s87 = sphi 0, %s86
      %s101 = sphi 0, %s87
      %s105 = sphi 0, %s105
      %s107 = sphi 0, %s105
      %s108 = sphi 0, %s107
      %s122 = sphi 0, %s108
      %s126 = sphi 0, %s126
      %s128 = sphi 0, %s126
      %s129 = sphi 0, %s128
      %s143 = sphi 0, %s129
      %s147 = sphi 0, %s147
      %s149 = sphi 0, %s147
      %s150 = sphi 0, %s149
      %s164 = sphi 0, %s150
      %s168 = sphi 0, %s168
      %s170 = sphi 0, %s168
      %s171 = sphi 0, %s170
      %s185 = sphi 0, %s171
      %s189 = sphi 0, %s189
      %s191 = sphi 0, %s189
      %s192 = sphi 0, %s191
      %s206 = sphi 0, %s192
      %s210 = sphi 0, %s210
      %s212 = sphi 0, %s210
      %s213 = sphi 0, %s212
      %s227 = sphi 0, %s213
      %s231 = sphi 0, %s231
      %s233 = sphi 0, %s231
      %s234 = sphi 0, %s233
      %s248 = sphi 0, %s234
      %s252 = sphi 0, %s252
      %s254 = sphi 0, %s252
      %s255 = sphi 0, %s254
      %s269 = sphi 0, %s255
      %s273 = sphi 0, %s273
      %s275 = sphi 0, %s273
      %s276 = sphi 0, %s275
      %s290 = sphi 0, %s276
      %s294 = sphi 0, %s294
      %s296 = sphi 0, %s294
      %s297 = sphi 0, %s296
      %s311 = sphi 0, %s297
      %s315 = sphi 0, %s315
      %s317 = sphi 0, %s315
      %s318 = sphi 0, %s317
      %s332 = sphi 0, %s318
      %s336 = sphi 0, %s336
      %s338 = sphi 0, %s336
      %s339 = sphi 0, %s338
      %s353 = sphi 0, %s339
      %s359 = sphi 0, %s361
      %s362 = sphi 0, %s359
      %s363 = sphi 0, %s362
      %s379 = sphi 0, %s363
    $region4: #{tpu_custom_call.1} parent=1 // loop_header_branch
      %32 = sbr.rel (%p30) target = $region8
    $region5: #{tpu_custom_call.1} parent=1 // loop_body
      %s34 = ssub.s32 %s29, 1
      %s35 = ssub.s32 %s29, 2
      %s36 = sadd.s32 %s29, 1
      %s37 = ssub.s32 %s29, %s36
      %p38 = scmp.eq.s32.totalorder %s37, 0
      %s40 = sadd.s32 %s39, 1
      %s41 = scalar_select %p38, %s39, %s40
      %p44 = pneg %p38
      %p45 = scmp.eq.s32.totalorder %s29, 1
      %p46 = por %p44, %p45
      %p47 = scmp.ne.s32.totalorder %s39, %s42
      %p48 = scmp.eq.s32.totalorder %s29, 0
      %p49 = por %p47, %p48
      %p50 = scmp.ne.s32.totalorder %s39, %s42
      %p51 = scmp.eq.s32.totalorder %s34, 1
      %p52 = por %p50, %p51
      %p53 = scmp.ne.s32.totalorder %s42, %s43
      %p54 = scmp.eq.s32.totalorder %s34, 0
      %p55 = por %p53, %p54
      %p56 = scmp.ne.s32.totalorder %s42, %s43
      %p57 = scmp.eq.s32.totalorder %s35, 1
      %p58 = por %p56, %p57
      %p60 = scmp.ne.s32.totalorder %s43, %s59
      %p61 = scmp.eq.s32.totalorder %s35, 0
      %p62 = por %p60, %p61
      %s64 = sadd.s32 %s63, 1
      %p67 = scmp.eq.s32.totalorder %s29, 1
      %p68 = scmp.ne.s32.totalorder %s63, %s65
      %p69 = scmp.eq.s32.totalorder %s29, 0
      %p70 = por %p68, %p69
      %p71 = scmp.ne.s32.totalorder %s63, %s65
      %p72 = scmp.eq.s32.totalorder %s34, 1
      %p73 = por %p71, %p72
      %p74 = scmp.ne.s32.totalorder %s65, %s66
      %p75 = scmp.eq.s32.totalorder %s34, 0
      %p76 = por %p74, %p75
      %p77 = scmp.ne.s32.totalorder %s65, %s66
      %p78 = scmp.eq.s32.totalorder %s35, 1
      %p79 = por %p77, %p78
      %p81 = scmp.ne.s32.totalorder %s66, %s80
      %p82 = scmp.eq.s32.totalorder %s35, 0
      %p83 = por %p81, %p82
      %s85 = sadd.s32 %s84, 1
      %p88 = scmp.eq.s32.totalorder %s29, 1
      %p89 = scmp.ne.s32.totalorder %s84, %s86
      %p90 = scmp.eq.s32.totalorder %s29, 0
      %p91 = por %p89, %p90
      %p92 = scmp.ne.s32.totalorder %s84, %s86
      %p93 = scmp.eq.s32.totalorder %s34, 1
      %p94 = por %p92, %p93
      %p95 = scmp.ne.s32.totalorder %s86, %s87
      %p96 = scmp.eq.s32.totalorder %s34, 0
      %p97 = por %p95, %p96
      %p98 = scmp.ne.s32.totalorder %s86, %s87
      %p99 = scmp.eq.s32.totalorder %s35, 1
      %p100 = por %p98, %p99
      %p102 = scmp.ne.s32.totalorder %s87, %s101
      %p103 = scmp.eq.s32.totalorder %s35, 0
      %p104 = por %p102, %p103
      %s106 = sadd.s32 %s105, 1
      %p109 = scmp.eq.s32.totalorder %s29, 1
      %p110 = scmp.ne.s32.totalorder %s105, %s107
      %p111 = scmp.eq.s32.totalorder %s29, 0
      %p112 = por %p110, %p111
      %p113 = scmp.ne.s32.totalorder %s105, %s107
      %p114 = scmp.eq.s32.totalorder %s34, 1
      %p115 = por %p113, %p114
      %p116 = scmp.ne.s32.totalorder %s107, %s108
      %p117 = scmp.eq.s32.totalorder %s34, 0
      %p118 = por %p116, %p117
      %p119 = scmp.ne.s32.totalorder %s107, %s108
      %p120 = scmp.eq.s32.totalorder %s35, 1
      %p121 = por %p119, %p120
      %p123 = scmp.ne.s32.totalorder %s108, %s122
      %p124 = scmp.eq.s32.totalorder %s35, 0
      %p125 = por %p123, %p124
      %s127 = sadd.s32 %s126, 1
      %p130 = scmp.eq.s32.totalorder %s29, 1
      %p131 = scmp.ne.s32.totalorder %s126, %s128
      %p132 = scmp.eq.s32.totalorder %s29, 0
      %p133 = por %p131, %p132
      %p134 = scmp.ne.s32.totalorder %s126, %s128
      %p135 = scmp.eq.s32.totalorder %s34, 1
      %p136 = por %p134, %p135
      %p137 = scmp.ne.s32.totalorder %s128, %s129
      %p138 = scmp.eq.s32.totalorder %s34, 0
      %p139 = por %p137, %p138
      %p140 = scmp.ne.s32.totalorder %s128, %s129
      %p141 = scmp.eq.s32.totalorder %s35, 1
      %p142 = por %p140, %p141
      %p144 = scmp.ne.s32.totalorder %s129, %s143
      %p145 = scmp.eq.s32.totalorder %s35, 0
      %p146 = por %p144, %p145
      %s148 = sadd.s32 %s147, 1
      %p151 = scmp.eq.s32.totalorder %s29, 1
      %p152 = scmp.ne.s32.totalorder %s147, %s149
      %p153 = scmp.eq.s32.totalorder %s29, 0
      %p154 = por %p152, %p153
      %p155 = scmp.ne.s32.totalorder %s147, %s149
      %p156 = scmp.eq.s32.totalorder %s34, 1
      %p157 = por %p155, %p156
      %p158 = scmp.ne.s32.totalorder %s149, %s150
      %p159 = scmp.eq.s32.totalorder %s34, 0
      %p160 = por %p158, %p159
      %p161 = scmp.ne.s32.totalorder %s149, %s150
      %p162 = scmp.eq.s32.totalorder %s35, 1
      %p163 = por %p161, %p162
      %p165 = scmp.ne.s32.totalorder %s150, %s164
      %p166 = scmp.eq.s32.totalorder %s35, 0
      %p167 = por %p165, %p166
      %s169 = sadd.s32 %s168, 1
      %p172 = scmp.eq.s32.totalorder %s29, 1
      %p173 = scmp.ne.s32.totalorder %s168, %s170
      %p174 = scmp.eq.s32.totalorder %s29, 0
      %p175 = por %p173, %p174
      %p176 = scmp.ne.s32.totalorder %s168, %s170
      %p177 = scmp.eq.s32.totalorder %s34, 1
      %p178 = por %p176, %p177
      %p179 = scmp.ne.s32.totalorder %s170, %s171
      %p180 = scmp.eq.s32.totalorder %s34, 0
      %p181 = por %p179, %p180
      %p182 = scmp.ne.s32.totalorder %s170, %s171
      %p183 = scmp.eq.s32.totalorder %s35, 1
      %p184 = por %p182, %p183
      %p186 = scmp.ne.s32.totalorder %s171, %s185
      %p187 = scmp.eq.s32.totalorder %s35, 0
      %p188 = por %p186, %p187
      %s190 = sadd.s32 %s189, 1
      %p193 = scmp.eq.s32.totalorder %s29, 1
      %p194 = scmp.ne.s32.totalorder %s189, %s191
      %p195 = scmp.eq.s32.totalorder %s29, 0
      %p196 = por %p194, %p195
      %p197 = scmp.ne.s32.totalorder %s189, %s191
      %p198 = scmp.eq.s32.totalorder %s34, 1
      %p199 = por %p197, %p198
      %p200 = scmp.ne.s32.totalorder %s191, %s192
      %p201 = scmp.eq.s32.totalorder %s34, 0
      %p202 = por %p200, %p201
      %p203 = scmp.ne.s32.totalorder %s191, %s192
      %p204 = scmp.eq.s32.totalorder %s35, 1
      %p205 = por %p203, %p204
      %p207 = scmp.ne.s32.totalorder %s192, %s206
      %p208 = scmp.eq.s32.totalorder %s35, 0
      %p209 = por %p207, %p208
      %s211 = sadd.s32 %s210, 1
      %p214 = scmp.eq.s32.totalorder %s29, 1
      %p215 = scmp.ne.s32.totalorder %s210, %s212
      %p216 = scmp.eq.s32.totalorder %s29, 0
      %p217 = por %p215, %p216
      %p218 = scmp.ne.s32.totalorder %s210, %s212
      %p219 = scmp.eq.s32.totalorder %s34, 1
      %p220 = por %p218, %p219
      %p221 = scmp.ne.s32.totalorder %s212, %s213
      %p222 = scmp.eq.s32.totalorder %s34, 0
      %p223 = por %p221, %p222
      %p224 = scmp.ne.s32.totalorder %s212, %s213
      %p225 = scmp.eq.s32.totalorder %s35, 1
      %p226 = por %p224, %p225
      %p228 = scmp.ne.s32.totalorder %s213, %s227
      %p229 = scmp.eq.s32.totalorder %s35, 0
      %p230 = por %p228, %p229
      %s232 = sadd.s32 %s231, 1
      %p235 = scmp.eq.s32.totalorder %s29, 1
      %p236 = scmp.ne.s32.totalorder %s231, %s233
      %p237 = scmp.eq.s32.totalorder %s29, 0
      %p238 = por %p236, %p237
      %p239 = scmp.ne.s32.totalorder %s231, %s233
      %p240 = scmp.eq.s32.totalorder %s34, 1
      %p241 = por %p239, %p240
      %p242 = scmp.ne.s32.totalorder %s233, %s234
      %p243 = scmp.eq.s32.totalorder %s34, 0
      %p244 = por %p242, %p243
      %p245 = scmp.ne.s32.totalorder %s233, %s234
      %p246 = scmp.eq.s32.totalorder %s35, 1
      %p247 = por %p245, %p246
      %p249 = scmp.ne.s32.totalorder %s234, %s248
      %p250 = scmp.eq.s32.totalorder %s35, 0
      %p251 = por %p249, %p250
      %s253 = sadd.s32 %s252, 1
      %p256 = scmp.eq.s32.totalorder %s29, 1
      %p257 = scmp.ne.s32.totalorder %s252, %s254
      %p258 = scmp.eq.s32.totalorder %s29, 0
      %p259 = por %p257, %p258
      %p260 = scmp.ne.s32.totalorder %s252, %s254
      %p261 = scmp.eq.s32.totalorder %s34, 1
      %p262 = por %p260, %p261
      %p263 = scmp.ne.s32.totalorder %s254, %s255
      %p264 = scmp.eq.s32.totalorder %s34, 0
      %p265 = por %p263, %p264
      %p266 = scmp.ne.s32.totalorder %s254, %s255
      %p267 = scmp.eq.s32.totalorder %s35, 1
      %p268 = por %p266, %p267
      %p270 = scmp.ne.s32.totalorder %s255, %s269
      %p271 = scmp.eq.s32.totalorder %s35, 0
      %p272 = por %p270, %p271
      %s274 = sadd.s32 %s273, 1
      %p277 = scmp.eq.s32.totalorder %s29, 1
      %p278 = scmp.ne.s32.totalorder %s273, %s275
      %p279 = scmp.eq.s32.totalorder %s29, 0
      %p280 = por %p278, %p279
      %p281 = scmp.ne.s32.totalorder %s273, %s275
      %p282 = scmp.eq.s32.totalorder %s34, 1
      %p283 = por %p281, %p282
      %p284 = scmp.ne.s32.totalorder %s275, %s276
      %p285 = scmp.eq.s32.totalorder %s34, 0
      %p286 = por %p284, %p285
      %p287 = scmp.ne.s32.totalorder %s275, %s276
      %p288 = scmp.eq.s32.totalorder %s35, 1
      %p289 = por %p287, %p288
      %p291 = scmp.ne.s32.totalorder %s276, %s290
      %p292 = scmp.eq.s32.totalorder %s35, 0
      %p293 = por %p291, %p292
      %s295 = sadd.s32 %s294, 1
      %p298 = scmp.eq.s32.totalorder %s29, 1
      %p299 = scmp.ne.s32.totalorder %s294, %s296
      %p300 = scmp.eq.s32.totalorder %s29, 0
      %p301 = por %p299, %p300
      %p302 = scmp.ne.s32.totalorder %s294, %s296
      %p303 = scmp.eq.s32.totalorder %s34, 1
      %p304 = por %p302, %p303
      %p305 = scmp.ne.s32.totalorder %s296, %s297
      %p306 = scmp.eq.s32.totalorder %s34, 0
      %p307 = por %p305, %p306
      %p308 = scmp.ne.s32.totalorder %s296, %s297
      %p309 = scmp.eq.s32.totalorder %s35, 1
      %p310 = por %p308, %p309
      %p312 = scmp.ne.s32.totalorder %s297, %s311
      %p313 = scmp.eq.s32.totalorder %s35, 0
      %p314 = por %p312, %p313
      %s316 = sadd.s32 %s315, 1
      %p319 = scmp.eq.s32.totalorder %s29, 1
      %p320 = scmp.ne.s32.totalorder %s315, %s317
      %p321 = scmp.eq.s32.totalorder %s29, 0
      %p322 = por %p320, %p321
      %p323 = scmp.ne.s32.totalorder %s315, %s317
      %p324 = scmp.eq.s32.totalorder %s34, 1
      %p325 = por %p323, %p324
      %p326 = scmp.ne.s32.totalorder %s317, %s318
      %p327 = scmp.eq.s32.totalorder %s34, 0
      %p328 = por %p326, %p327
      %p329 = scmp.ne.s32.totalorder %s317, %s318
      %p330 = scmp.eq.s32.totalorder %s35, 1
      %p331 = por %p329, %p330
      %p333 = scmp.ne.s32.totalorder %s318, %s332
      %p334 = scmp.eq.s32.totalorder %s35, 0
      %p335 = por %p333, %p334
      %s337 = sadd.s32 %s336, 1
      %p340 = scmp.eq.s32.totalorder %s29, 1
      %p341 = scmp.ne.s32.totalorder %s336, %s338
      %p342 = scmp.eq.s32.totalorder %s29, 0
      %p343 = por %p341, %p342
      %p344 = scmp.ne.s32.totalorder %s336, %s338
      %p345 = scmp.eq.s32.totalorder %s34, 1
      %p346 = por %p344, %p345
      %p347 = scmp.ne.s32.totalorder %s338, %s339
      %p348 = scmp.eq.s32.totalorder %s34, 0
      %p349 = por %p347, %p348
      %p350 = scmp.ne.s32.totalorder %s338, %s339
      %p351 = scmp.eq.s32.totalorder %s35, 1
      %p352 = por %p350, %p351
      %p354 = scmp.ne.s32.totalorder %s339, %s353
      %p355 = scmp.eq.s32.totalorder %s35, 0
      %p356 = por %p354, %p355
      %s357 = ssub.s32 %s29, %s36
      %p358 = scmp.eq.s32.totalorder %s357, 0
      %s360 = sadd.s32 %s359, 1
      %s361 = scalar_select %p358, %s359, %s360
      %p364 = pneg %p358
      %p365 = scmp.eq.s32.totalorder %s29, 1
      %p366 = por %p364, %p365
      %p367 = scmp.ne.s32.totalorder %s359, %s362
      %p368 = scmp.eq.s32.totalorder %s29, 0
      %p369 = por %p367, %p368
      %p370 = scmp.ne.s32.totalorder %s359, %s362
      %p371 = scmp.eq.s32.totalorder %s34, 1
      %p372 = por %p370, %p371
      %p373 = scmp.ne.s32.totalorder %s362, %s363
      %p374 = scmp.eq.s32.totalorder %s34, 0
      %p375 = por %p373, %p374
      %p376 = scmp.ne.s32.totalorder %s362, %s363
      %p377 = scmp.eq.s32.totalorder %s35, 1
      %p378 = por %p376, %p377
      %p380 = scmp.ne.s32.totalorder %s363, %s379
      %p381 = scmp.eq.s32.totalorder %s35, 0
      %p382 = por %p380, %p381
      %p383 = scmp.le.s32.totalorder 1, %s29
      %p384 = scmp.lt.s32.totalorder %s29, 3
      %p385 = pnand %p383, %p384
      %p386 = pneg %p385
      // Predicated region
      $region9: #{tpu_custom_call.1} parent=5 // pred_check
        _
      $region10: #{tpu_custom_call.1} parent=5 // pred_check_branch
        %388 = sbr.rel (%p385) target = $region12
      $region11: #{tpu_custom_call.1} parent=5 // pred_region
        %s389 = ssub.s32 %s29, 1
        // Predicated region
        $region13: #{tpu_custom_call.1} parent=11 // pred_check
          %p390 = pneg %p76
        $region14: #{tpu_custom_call.1} parent=11 // pred_check_branch
          %392 = sbr.rel (%p390) target = $region16
        $region15: #{tpu_custom_call.1} parent=11 // pred_region
          %394 = vsyncadd [#allocation6], 0
          %s395 = sshll.u32 %s1, 4
          %s396 = int_to_ptr.hbm [resolvable:$true] %s395
          %s397 = sshll.u32 [#allocation5], 4
          %s398 = int_to_ptr.vmem [resolvable:$true] %s397
          %403 = dma.hbm_to_vmem [thread:$0]  %s396, 3072, %s398, [#allocation6], 192, 192, 12
        $region16: #{tpu_custom_call.1} parent=11 // pred_fallthru
          _
        // Predicated region
        $region17: #{tpu_custom_call.1} parent=11 // pred_check
          %p404 = pneg %p97
        $region18: #{tpu_custom_call.1} parent=11 // pred_check_branch
          %406 = sbr.rel (%p404) target = $region20
        $region19: #{tpu_custom_call.1} parent=11 // pred_region
          _
        $region20: #{tpu_custom_call.1} parent=11 // pred_fallthru
          _
        // Predicated region
        $region21: #{tpu_custom_call.1} parent=11 // pred_check
          %p407 = pneg %p118
        $region22: #{tpu_custom_call.1} parent=11 // pred_check_branch
          %409 = sbr.rel (%p407) target = $region24
        $region23: #{tpu_custom_call.1} parent=11 // pred_region
          _
        $region24: #{tpu_custom_call.1} parent=11 // pred_fallthru
          _
        // Predicated region
        $region25: #{tpu_custom_call.1} parent=11 // pred_check
          %p410 = pneg %p139
        $region26: #{tpu_custom_call.1} parent=11 // pred_check_branch
          %412 = sbr.rel (%p410) target = $region28
        $region27: #{tpu_custom_call.1} parent=11 // pred_region
          _
        $region28: #{tpu_custom_call.1} parent=11 // pred_fallthru
          _
        // Predicated region
        $region29: #{tpu_custom_call.1} parent=11 // pred_check
          %p413 = pneg %p160
        $region30: #{tpu_custom_call.1} parent=11 // pred_check_branch
          %415 = sbr.rel (%p413) target = $region32
        $region31: #{tpu_custom_call.1} parent=11 // pred_region
          _
        $region32: #{tpu_custom_call.1} parent=11 // pred_fallthru
          _
        // Predicated region
        $region33: #{tpu_custom_call.1} parent=11 // pred_check
          %p416 = pneg %p181
        $region34: #{tpu_custom_call.1} parent=11 // pred_check_branch
          %418 = sbr.rel (%p416) target = $region36
        $region35: #{tpu_custom_call.1} parent=11 // pred_region
          %420 = vsyncadd [#allocation6], 0
          %s422 = sshll.u32 %s6, 4
          %s423 = int_to_ptr.hbm [resolvable:$true] %s422
          %s424 = sshll.u32 [#allocation7], 4
          %s425 = int_to_ptr.vmem [resolvable:$true] %s424
          %427 = dma.hbm_to_vmem [thread:$0]  %s423, 16, %s425, [#allocation6]
        $region36: #{tpu_custom_call.1} parent=11 // pred_fallthru
          _
        // Predicated region
        $region37: #{tpu_custom_call.1} parent=11 // pred_check
          %p428 = pneg %p202
        $region38: #{tpu_custom_call.1} parent=11 // pred_check_branch
          %430 = sbr.rel (%p428) target = $region40
        $region39: #{tpu_custom_call.1} parent=11 // pred_region
          _
        $region40: #{tpu_custom_call.1} parent=11 // pred_fallthru
          _
        // Predicated region
        $region41: #{tpu_custom_call.1} parent=11 // pred_check
          %p431 = pneg %p223
        $region42: #{tpu_custom_call.1} parent=11 // pred_check_branch
          %433 = sbr.rel (%p431) target = $region44
        $region43: #{tpu_custom_call.1} parent=11 // pred_region
          _
        $region44: #{tpu_custom_call.1} parent=11 // pred_fallthru
          _
        // Predicated region
        $region45: #{tpu_custom_call.1} parent=11 // pred_check
          %p434 = pneg %p244
        $region46: #{tpu_custom_call.1} parent=11 // pred_check_branch
          %436 = sbr.rel (%p434) target = $region48
        $region47: #{tpu_custom_call.1} parent=11 // pred_region
          %438 = vsyncadd [#allocation9], 0
          %s439 = sshll.u32 %s9, 4
          %s440 = int_to_ptr.hbm [resolvable:$true] %s439
          %s441 = sshll.u32 [#allocation8], 4
          %s442 = int_to_ptr.vmem [resolvable:$true] %s441
          %447 = dma.hbm_to_vmem [thread:$0]  %s440, 6144, %s442, [#allocation9], 128, 128, 8
        $region48: #{tpu_custom_call.1} parent=11 // pred_fallthru
          _
        // Predicated region
        $region49: #{tpu_custom_call.1} parent=11 // pred_check
          %p448 = pneg %p265
        $region50: #{tpu_custom_call.1} parent=11 // pred_check_branch
          %450 = sbr.rel (%p448) target = $region52
        $region51: #{tpu_custom_call.1} parent=11 // pred_region
          _
        $region52: #{tpu_custom_call.1} parent=11 // pred_fallthru
          _
        // Predicated region
        $region53: #{tpu_custom_call.1} parent=11 // pred_check
          %p451 = pneg %p286
        $region54: #{tpu_custom_call.1} parent=11 // pred_check_branch
          %453 = sbr.rel (%p451) target = $region56
        $region55: #{tpu_custom_call.1} parent=11 // pred_region
          %455 = vsyncadd [#allocation9], 0
          %s456 = sshll.u32 %s11, 4
          %s457 = int_to_ptr.hbm [resolvable:$true] %s456
          %s458 = sshll.u32 [#allocation10], 4
          %s459 = int_to_ptr.vmem [resolvable:$true] %s458
          %464 = dma.hbm_to_vmem [thread:$0]  %s457, 2048, %s459, [#allocation9], 64, 64, 4
        $region56: #{tpu_custom_call.1} parent=11 // pred_fallthru
          _
        // Predicated region
        $region57: #{tpu_custom_call.1} parent=11 // pred_check
          %p465 = pneg %p307
        $region58: #{tpu_custom_call.1} parent=11 // pred_check_branch
          %467 = sbr.rel (%p465) target = $region60
        $region59: #{tpu_custom_call.1} parent=11 // pred_region
          _
        $region60: #{tpu_custom_call.1} parent=11 // pred_fallthru
          _
        // Predicated region
        $region61: #{tpu_custom_call.1} parent=11 // pred_check
          %p468 = pneg %p328
        $region62: #{tpu_custom_call.1} parent=11 // pred_check_branch
          %470 = sbr.rel (%p468) target = $region64
        $region63: #{tpu_custom_call.1} parent=11 // pred_region
          _
        $region64: #{tpu_custom_call.1} parent=11 // pred_fallthru
          _
        // Predicated region
        $region65: #{tpu_custom_call.1} parent=11 // pred_check
          %p471 = pneg %p349
        $region66: #{tpu_custom_call.1} parent=11 // pred_check_branch
          %473 = sbr.rel (%p471) target = $region68
        $region67: #{tpu_custom_call.1} parent=11 // pred_region
          _
        $region68: #{tpu_custom_call.1} parent=11 // pred_fallthru
          _
      $region12: #{tpu_custom_call.1} parent=5 // pred_fallthru
        _
      %p474 = scmp.lt.s32.totalorder %s29, 2
      // Predicated region
      $region69: #{tpu_custom_call.1} parent=5 // pred_check
        %p475 = pneg %p474
      $region70: #{tpu_custom_call.1} parent=5 // pred_check_branch
        %477 = sbr.rel (%p475) target = $region72
      $region71: #{tpu_custom_call.1} parent=5 // pred_region
        // Predicated region
        $region73: #{tpu_custom_call.1} parent=71 // pred_check
          %p478 = pneg %p49
        $region74: #{tpu_custom_call.1} parent=71 // pred_check_branch
          %480 = sbr.rel (%p478) target = $region76
        $region75: #{tpu_custom_call.1} parent=71 // pred_region
          %s481 = sand.u32 %s39, 1
          %s482 = scalar_lea.sflag [#allocation3], %s481
          %s483 = sand.u32 %s39, 1
          %s484 = smul.addr %s483, 24
          %s485 = scalar_lea.vmem [#allocation2], %s484
          %487 = vsyncadd %s482, 0
          %s488 = smul.addr %s29, 8
          %s489 = scalar_lea.hbm %s0, %s488
          %s490 = sshll.u32 %s489, 4
          %s491 = int_to_ptr.hbm [resolvable:$true] %s490
          %s492 = sshll.u32 %s485, 4
          %s493 = int_to_ptr.vmem [resolvable:$true] %s492
          %498 = dma.hbm_to_vmem [thread:$0]  %s491, 384, %s493, %s482, 256, 128, 8
        $region76: #{tpu_custom_call.1} parent=71 // pred_fallthru
          _
      $region72: #{tpu_custom_call.1} parent=5 // pred_fallthru
        _
      %p499 = scmp.le.s32.totalorder 1, %s29
      %p500 = scmp.lt.s32.totalorder %s29, 3
      %p501 = pnand %p499, %p500
      %p502 = pneg %p501
      // Predicated region
      $region77: #{tpu_custom_call.1} parent=5 // pred_check
        _
      $region78: #{tpu_custom_call.1} parent=5 // pred_check_branch
        %504 = sbr.rel (%p501) target = $region80
      $region79: #{tpu_custom_call.1} parent=5 // pred_region
        %s505 = ssub.s32 %s29, 1
        %s506 = sand.u32 %s42, 1
        %s507 = scalar_lea.sflag [#allocation3], %s506
        %s508 = sand.u32 %s42, 1
        %s509 = smul.addr %s508, 24
        %s510 = scalar_lea.vmem [#allocation2], %s509
        // Predicated region
        $region81: #{tpu_custom_call.1} parent=79 // pred_check
          %p511 = pneg %p55
        $region82: #{tpu_custom_call.1} parent=79 // pred_check_branch
          %513 = sbr.rel (%p511) target = $region84
        $region83: #{tpu_custom_call.1} parent=79 // pred_region
          %515 = dma.done %s507, 384
        $region84: #{tpu_custom_call.1} parent=79 // pred_fallthru
          _
        // Predicated region
        $region85: #{tpu_custom_call.1} parent=79 // pred_check
          %p516 = pneg %p76
        $region86: #{tpu_custom_call.1} parent=79 // pred_check_branch
          %518 = sbr.rel (%p516) target = $region88
        $region87: #{tpu_custom_call.1} parent=79 // pred_region
          %520 = dma.done [#allocation6], 3072
        $region88: #{tpu_custom_call.1} parent=79 // pred_fallthru
          _
        // Predicated region
        $region89: #{tpu_custom_call.1} parent=79 // pred_check
          %p521 = pneg %p181
        $region90: #{tpu_custom_call.1} parent=79 // pred_check_branch
          %523 = sbr.rel (%p521) target = $region92
        $region91: #{tpu_custom_call.1} parent=79 // pred_region
          %525 = dma.done [#allocation6], 16
        $region92: #{tpu_custom_call.1} parent=79 // pred_fallthru
          _
        // Predicated region
        $region93: #{tpu_custom_call.1} parent=79 // pred_check
          %p526 = pneg %p244
        $region94: #{tpu_custom_call.1} parent=79 // pred_check_branch
          %528 = sbr.rel (%p526) target = $region96
        $region95: #{tpu_custom_call.1} parent=79 // pred_region
          %530 = dma.done [#allocation9], 6144
        $region96: #{tpu_custom_call.1} parent=79 // pred_fallthru
          _
        // Predicated region
        $region97: #{tpu_custom_call.1} parent=79 // pred_check
          %p531 = pneg %p286
        $region98: #{tpu_custom_call.1} parent=79 // pred_check_branch
          %533 = sbr.rel (%p531) target = $region100
        $region99: #{tpu_custom_call.1} parent=79 // pred_region
          %535 = dma.done [#allocation9], 2048
        $region100: #{tpu_custom_call.1} parent=79 // pred_fallthru
          _
        %s536 = sand.u32 %s42, 1
        %s537 = scalar_lea.sflag [#allocation3], %s536
        %s538 = sand.u32 %s42, 1
        %s539 = smul.addr %s538, 24
        %s540 = scalar_lea.vmem [#allocation2], %s539
        %p541 = pneg %p55
        %p542 = pneg %p52
        %p543 = pneg %p76
        %p544 = pneg %p73
        %p545 = pneg %p97
        %p546 = pneg %p94
        %p547 = pneg %p118
        %p548 = pneg %p115
        %p549 = pneg %p139
        %p550 = pneg %p136
        %p551 = pneg %p160
        %p552 = pneg %p157
        %p553 = pneg %p181
        %p554 = pneg %p178
        %p555 = pneg %p202
        %p556 = pneg %p199
        %p557 = pneg %p223
        %p558 = pneg %p220
        %p559 = pneg %p244
        %p560 = pneg %p241
        %p561 = pneg %p265
        %p562 = pneg %p262
        %p563 = pneg %p286
        %p564 = pneg %p283
        %p565 = pneg %p307
        %p566 = pneg %p304
        %p567 = pneg %p328
        %p568 = pneg %p325
        %p569 = pneg %p349
        %p570 = pneg %p346
        %p571 = pneg %p375
        %p572 = pneg %p372
        %s573 = sand.u32 %s362, 1
        %s574 = scalar_lea.sflag [#allocation4], %s573
        %s575 = sand.u32 %s362, 1
        %s576 = smul.addr %s575, 8
        %s577 = scalar_lea.vmem [#allocation11], %s576
        %v579 = vld [vmem:[%s510] sm:$0xff]
        %v580 = vld [vmem:[%s510 + $0x8] sm:$0xff]
        %v581 = vld [vmem:[%s510 + $0x10] sm:$0xff]
        %v582 = vpack.c.bf16 %v580, %v579
        %v583 = vpack.c.bf16 %v581, %v581
        %v584 = vld [vmem:[#allocation5] sm:$0xff]
        %v585 = vld [vmem:[#allocation5 + $0x8] sm:$0xf]
        %v586 = vld [vmem:[#allocation5 + $0xc] sm:$0xff]
        %v587 = vld [vmem:[#allocation5 + $0x14] sm:$0xf]
        %v588 = vld [vmem:[#allocation5 + $0x18] sm:$0xff]
        %v589 = vld [vmem:[#allocation5 + $0x20] sm:$0xf]
        %v590 = vld [vmem:[#allocation5 + $0x24] sm:$0xff]
        %v591 = vld [vmem:[#allocation5 + $0x2c] sm:$0xf]
        %v592 = vld [vmem:[#allocation5 + $0x30] sm:$0xff]
        %v593 = vld [vmem:[#allocation5 + $0x38] sm:$0xf]
        %v594 = vld [vmem:[#allocation5 + $0x3c] sm:$0xff]
        %v595 = vld [vmem:[#allocation5 + $0x44] sm:$0xf]
        %v596 = vld [vmem:[#allocation5 + $0x48] sm:$0xff]
        %v597 = vld [vmem:[#allocation5 + $0x50] sm:$0xf]
        %v598 = vld [vmem:[#allocation5 + $0x54] sm:$0xff]
        %v599 = vld [vmem:[#allocation5 + $0x5c] sm:$0xf]
        %v600 = vld [vmem:[#allocation5 + $0x60] sm:$0xff]
        %v601 = vld [vmem:[#allocation5 + $0x68] sm:$0xf]
        %v602 = vld [vmem:[#allocation5 + $0x6c] sm:$0xff]
        %v603 = vld [vmem:[#allocation5 + $0x74] sm:$0xf]
        %v604 = vld [vmem:[#allocation5 + $0x78] sm:$0xff]
        %v605 = vld [vmem:[#allocation5 + $0x80] sm:$0xf]
        %v606 = vld [vmem:[#allocation5 + $0x84] sm:$0xff]
        %v607 = vld [vmem:[#allocation5 + $0x8c] sm:$0xf]
        %v608 = vld [vmem:[#allocation5 + $0x90] sm:$0xff]
        %v609 = vld [vmem:[#allocation5 + $0x98] sm:$0xf]
        %v610 = vld [vmem:[#allocation5 + $0x9c] sm:$0xff]
        %v611 = vld [vmem:[#allocation5 + $0xa4] sm:$0xf]
        %v612 = vld [vmem:[#allocation5 + $0xa8] sm:$0xff]
        %v613 = vld [vmem:[#allocation5 + $0xb0] sm:$0xf]
        %v614 = vld [vmem:[#allocation5 + $0xb4] sm:$0xff]
        %v615 = vld [vmem:[#allocation5 + $0xbc] sm:$0xf]
        %v616 = vld [vmem:[%s2] sm:$0x7]
        %v618 = vperm.slane %v616, 0
        %v619 = vperm.slane %v616, 1
        %v620 = vperm.slane %v616, 2
        %v656 = vunpack.c.l.b16 %v584
        %v657 = vunpack.c.h.b16 %v584
        %v658 = vunpack.c.l.b16 %v585
        %v659 = vunpack.c.l.b16 %v586
        %v660 = vunpack.c.h.b16 %v586
        %v661 = vunpack.c.l.b16 %v587
        %v662 = vunpack.c.l.b16 %v588
        %v663 = vunpack.c.h.b16 %v588
        %v664 = vunpack.c.l.b16 %v589
        %v665 = vunpack.c.l.b16 %v590
        %v666 = vunpack.c.h.b16 %v590
        %v667 = vunpack.c.l.b16 %v591
        %v668 = vunpack.c.l.b16 %v592
        %v669 = vunpack.c.h.b16 %v592
        %v670 = vunpack.c.l.b16 %v593
        %v671 = vunpack.c.l.b16 %v594
        %v672 = vunpack.c.h.b16 %v594
        %v673 = vunpack.c.l.b16 %v595
        %v674 = vunpack.c.l.b16 %v596
        %v675 = vunpack.c.h.b16 %v596
        %v676 = vunpack.c.l.b16 %v597
        %v677 = vunpack.c.l.b16 %v598
        %v678 = vunpack.c.h.b16 %v598
        %v679 = vunpack.c.l.b16 %v599
        %v680 = vunpack.c.l.b16 %v600
        %v681 = vunpack.c.h.b16 %v600
        %v682 = vunpack.c.l.b16 %v601
        %v683 = vunpack.c.l.b16 %v602
        %v684 = vunpack.c.h.b16 %v602
        %v685 = vunpack.c.l.b16 %v603
        %v686 = vunpack.c.l.b16 %v604
        %v687 = vunpack.c.h.b16 %v604
        %v688 = vunpack.c.l.b16 %v605
        %v689 = vunpack.c.l.b16 %v606
        %v690 = vunpack.c.h.b16 %v606
        %v691 = vunpack.c.l.b16 %v607
        %v692 = vunpack.c.l.b16 %v608
        %v693 = vunpack.c.h.b16 %v608
        %v694 = vunpack.c.l.b16 %v609
        %v695 = vunpack.c.l.b16 %v610
        %v696 = vunpack.c.h.b16 %v610
        %v697 = vunpack.c.l.b16 %v611
        %v698 = vunpack.c.l.b16 %v612
        %v699 = vunpack.c.h.b16 %v612
        %v700 = vunpack.c.l.b16 %v613
        %v701 = vunpack.c.l.b16 %v614
        %v702 = vunpack.c.h.b16 %v614
        %v703 = vunpack.c.l.b16 %v615
        %v704 = vpack.c.b16 %v659, %v656
        %v705 = vpack.c.b16 %v660, %v657
        %v706 = vpack.c.b16 %v661, %v658
        %v707 = vpack.c.b16 %v665, %v662
        %v708 = vpack.c.b16 %v666, %v663
        %v709 = vpack.c.b16 %v667, %v664
        %v710 = vpack.c.b16 %v671, %v668
        %v711 = vpack.c.b16 %v672, %v669
        %v712 = vpack.c.b16 %v673, %v670
        %v713 = vpack.c.b16 %v677, %v674
        %v714 = vpack.c.b16 %v678, %v675
        %v715 = vpack.c.b16 %v679, %v676
        %v716 = vpack.c.b16 %v683, %v680
        %v717 = vpack.c.b16 %v684, %v681
        %v718 = vpack.c.b16 %v685, %v682
        %v719 = vpack.c.b16 %v689, %v686
        %v720 = vpack.c.b16 %v690, %v687
        %v721 = vpack.c.b16 %v691, %v688
        %v722 = vpack.c.b16 %v695, %v692
        %v723 = vpack.c.b16 %v696, %v693
        %v724 = vpack.c.b16 %v697, %v694
        %v725 = vpack.c.b16 %v701, %v698
        %v726 = vpack.c.b16 %v702, %v699
        %v727 = vpack.c.b16 %v703, %v700
        %752 = vmatpush.bf16.msra.mxu0 %v725
        %753 = vmatpush.bf16.msra.mxu0 %v722
        %754 = vmatpush.bf16.msra.mxu0 %v719
        %755 = vmatpush.bf16.msra.mxu0 %v716
        %756 = vmatpush.bf16.msra.mxu0 %v713
        %757 = vmatpush.bf16.msra.mxu0 %v710
        %758 = vmatpush.bf16.msra.mxu0 %v707
        %759 = vmatpush.bf16.msra.mxu0 %v704
        %760 = vmatmul.bf16.gmra.mxu0 %v582
        %v761 = vpop.f32.mrf.mxu0
        %v762 = vadd.f32 %v618, %v761
        %v763 = vpop.f32.mrf.mxu0
        %v764 = vadd.f32 %v618, %v763
        %765 = vmatmul.bf16.gmra.mxu0 %v583
        %v766 = vpop.f32.mrf.mxu0
        %v767 = vadd.f32 %v618, %v766
        %v768 = vpop.f32.mrf.mxu0
        %769 = vdwg.mxu0
        %770 = vmatpush.bf16.msra.mxu0 %v726
        %771 = vmatpush.bf16.msra.mxu0 %v723
        %772 = vmatpush.bf16.msra.mxu0 %v720
        %773 = vmatpush.bf16.msra.mxu0 %v717
        %774 = vmatpush.bf16.msra.mxu0 %v714
        %775 = vmatpush.bf16.msra.mxu0 %v711
        %776 = vmatpush.bf16.msra.mxu0 %v708
        %777 = vmatpush.bf16.msra.mxu0 %v705
        %778 = vmatmul.bf16.gmra.mxu0 %v582
        %v779 = vpop.f32.mrf.mxu0
        %v780 = vadd.f32 %v619, %v779
        %v781 = vpop.f32.mrf.mxu0
        %v782 = vadd.f32 %v619, %v781
        %783 = vmatmul.bf16.gmra.mxu0 %v583
        %v784 = vpop.f32.mrf.mxu0
        %v785 = vadd.f32 %v619, %v784
        %v786 = vpop.f32.mrf.mxu0
        %787 = vdwg.mxu0
        %788 = vmatpush.bf16.msra.mxu0 %v727
        %789 = vmatpush.bf16.msra.mxu0 %v724
        %790 = vmatpush.bf16.msra.mxu0 %v721
        %791 = vmatpush.bf16.msra.mxu0 %v718
        %792 = vmatpush.bf16.msra.mxu0 %v715
        %793 = vmatpush.bf16.msra.mxu0 %v712
        %794 = vmatpush.bf16.msra.mxu0 %v709
        %795 = vmatpush.bf16.msra.mxu0 %v706
        %796 = vmatmul.bf16.gmra.mxu0 %v582
        %v797 = vpop.f32.mrf.mxu0
        %v798 = vadd.f32 %v620, %v797
        %v799 = vpop.f32.mrf.mxu0
        %v800 = vadd.f32 %v620, %v799
        %801 = vmatmul.bf16.gmra.mxu0 %v583
        %v802 = vpop.f32.mrf.mxu0
        %v803 = vadd.f32 %v620, %v802
        %v804 = vpop.f32.mrf.mxu0
        %805 = vdwg.mxu0
        %v806 = vpack.c.bf16 %v762, %v762
        %v807 = vpack.c.bf16 %v764, %v764
        %v808 = vpack.c.bf16 %v767, %v767
        %v809 = vpack.c.bf16 %v780, %v780
        %v810 = vpack.c.bf16 %v782, %v782
        %v811 = vpack.c.bf16 %v785, %v785
        %v812 = vunpack.c.l.bf16 %v806
        %v813 = vunpack.c.l.bf16 %v807
        %v814 = vunpack.c.l.bf16 %v808
        %v815 = vunpack.c.l.bf16 %v809
        %v816 = vunpack.c.l.bf16 %v810
        %v817 = vunpack.c.l.bf16 %v811
        %v818 = vmul.f32 %v812, %v815
        %v819 = vmul.f32 %v812, %v816
        %v820 = vmul.f32 %v812, %v817
        %v821 = vmul.f32 %v813, %v815
        %v822 = vmul.f32 %v813, %v816
        %v823 = vmul.f32 %v813, %v817
        %v824 = vmul.f32 %v814, %v815
        %v825 = vmul.f32 %v814, %v816
        %v826 = vmul.f32 %v814, %v817
        %v827 = vpack.c.bf16 %v818, %v818
        %v828 = vpack.c.bf16 %v819, %v819
        %v829 = vpack.c.bf16 %v820, %v820
        %v830 = vpack.c.bf16 %v821, %v821
        %v831 = vpack.c.bf16 %v822, %v822
        %v832 = vpack.c.bf16 %v823, %v823
        %v833 = vpack.c.bf16 %v824, %v824
        %v834 = vpack.c.bf16 %v825, %v825
        %v835 = vpack.c.bf16 %v826, %v826
        %v836 = vld [vmem:[%s3] sm:$0xf]
        %v837 = vld [vmem:[%s3 + $0x4] sm:$0xf]
        %v838 = vld [vmem:[%s3 + $0x8] sm:$0xf]
        %v839 = vld [vmem:[%s3 + $0xc] sm:$0xf]
        %v840 = vld [vmem:[%s3 + $0x10] sm:$0xf]
        %v841 = vld [vmem:[%s3 + $0x14] sm:$0xf]
        %v842 = vld [vmem:[%s3 + $0x18] sm:$0xf]
        %v843 = vld [vmem:[%s3 + $0x1c] sm:$0xf]
        %v844 = vld [vmem:[%s3 + $0x20] sm:$0xf]
        %v845 = vld [vmem:[%s3 + $0x24] sm:$0xf]
        %v846 = vld [vmem:[%s3 + $0x28] sm:$0xf]
        %v847 = vld [vmem:[%s3 + $0x2c] sm:$0xf]
        %v848 = vld [vmem:[%s3 + $0x30] sm:$0xf]
        %v849 = vld [vmem:[%s3 + $0x34] sm:$0xf]
        %v850 = vld [vmem:[%s3 + $0x38] sm:$0xf]
        %v851 = vld [vmem:[%s3 + $0x3c] sm:$0xf]
        %v861 = vunpack.c.l.b16 %v827
        %v862 = vunpack.c.l.b16 %v828
        %v863 = vunpack.c.l.b16 %v829
        %v864 = vunpack.c.l.b16 %v830
        %v865 = vunpack.c.l.b16 %v831
        %v866 = vunpack.c.l.b16 %v832
        %v867 = vunpack.c.l.b16 %v833
        %v868 = vunpack.c.l.b16 %v834
        %v869 = vunpack.c.l.b16 %v835
        %v870 = vpack.c.b16 %v862, %v861
        %v871 = vpack.c.b16 %v864, %v863
        %v872 = vpack.c.b16 %v866, %v865
        %v873 = vpack.c.b16 %v868, %v867
        %v874 = vpack.c.b16 %v869, %v869
        %v896 = vunpack.c.l.b16 %v836
        %v897 = vunpack.c.l.b16 %v837
        %v898 = vunpack.c.l.b16 %v838
        %v899 = vunpack.c.l.b16 %v839
        %v900 = vunpack.c.l.b16 %v840
        %v901 = vunpack.c.l.b16 %v841
        %v902 = vunpack.c.l.b16 %v842
        %v903 = vunpack.c.l.b16 %v843
        %v904 = vunpack.c.l.b16 %v844
        %v905 = vunpack.c.l.b16 %v845
        %v906 = vunpack.c.l.b16 %v846
        %v907 = vunpack.c.l.b16 %v847
        %v908 = vunpack.c.l.b16 %v848
        %v909 = vunpack.c.l.b16 %v849
        %v910 = vunpack.c.l.b16 %v850
        %v911 = vunpack.c.l.b16 %v851
        %v912 = vpack.c.b16 %v897, %v896
        %v913 = vpack.c.b16 %v899, %v898
        %v914 = vpack.c.b16 %v901, %v900
        %v915 = vpack.c.b16 %v903, %v902
        %v916 = vpack.c.b16 %v905, %v904
        %v917 = vpack.c.b16 %v907, %v906
        %v918 = vpack.c.b16 %v909, %v908
        %v919 = vpack.c.b16 %v911, %v910
        %928 = vmatpush.bf16.msra.mxu0 %v919
        %929 = vmatpush.bf16.msra.mxu0 %v918
        %930 = vmatpush.bf16.msra.mxu0 %v917
        %931 = vmatpush.bf16.msra.mxu0 %v916
        %932 = vmatpush.bf16.msra.mxu0 %v915
        %933 = vmatpush.bf16.msra.mxu0 %v914
        %934 = vmatpush.bf16.msra.mxu0 %v913
        %935 = vmatpush.bf16.msra.mxu0 %v912
        %936 = vmatmul.bf16.gmra.mxu0 %v870
        %v937 = vpop.f32.mrf.mxu0
        %v938 = vadd.f32 0.0, %v937
        %v939 = vpop.f32.mrf.mxu0
        %v940 = vadd.f32 0.0, %v939
        %941 = vmatmul.bf16.gmra.mxu0 %v871
        %v942 = vpop.f32.mrf.mxu0
        %v943 = vadd.f32 0.0, %v942
        %v944 = vpop.f32.mrf.mxu0
        %v945 = vadd.f32 0.0, %v944
        %946 = vmatmul.bf16.gmra.mxu0 %v872
        %v947 = vpop.f32.mrf.mxu0
        %v948 = vadd.f32 0.0, %v947
        %v949 = vpop.f32.mrf.mxu0
        %v950 = vadd.f32 0.0, %v949
        %951 = vmatmul.bf16.gmra.mxu0 %v873
        %v952 = vpop.f32.mrf.mxu0
        %v953 = vadd.f32 0.0, %v952
        %v954 = vpop.f32.mrf.mxu0
        %v955 = vadd.f32 0.0, %v954
        %956 = vmatmul.bf16.gmra.mxu0 %v874
        %v957 = vpop.f32.mrf.mxu0
        %v958 = vadd.f32 0.0, %v957
        %v959 = vpop.f32.mrf.mxu0
        %960 = vdwg.mxu0
        %vm961 = vcmask 31744
        %v962 = vsel %vm961, %v938, -inf
        %v963 = vsel %vm961, %v940, -inf
        %v964 = vsel %vm961, %v943, -inf
        %v965 = vmax.f32 %v962, %v964
        %v966 = vmax.f32 %v965, %v963
        %v967 = vsel %vm961, %v945, -inf
        %v968 = vsel %vm961, %v948, -inf
        %v969 = vsel %vm961, %v950, -inf
        %v970 = vmax.f32 %v967, %v969
        %v971 = vmax.f32 %v970, %v968
        %v972 = vsel %vm961, %v953, -inf
        %v973 = vsel %vm961, %v955, -inf
        %v974 = vsel %vm961, %v958, -inf
        %v975 = vmax.f32 %v972, %v974
        %v976 = vmax.f32 %v975, %v973
        %v977 = vsub.f32 %v938, %v966
        %v978 = vsub.f32 %v940, %v966
        %v979 = vsub.f32 %v943, %v966
        %v980 = vsub.f32 %v945, %v971
        %v981 = vsub.f32 %v948, %v971
        %v982 = vsub.f32 %v950, %v971
        %v983 = vsub.f32 %v953, %v976
        %v984 = vsub.f32 %v955, %v976
        %v985 = vsub.f32 %v958, %v976
        %v986 = vmul.f32 %v977, 1.442695
        %v987 = vpow.pop %v986
        %v988 = vmul.f32 %v978, 1.442695
        %v989 = vpow.pop %v988
        %v990 = vmul.f32 %v979, 1.442695
        %v991 = vpow.pop %v990
        %v992 = vmul.f32 %v980, 1.442695
        %v993 = vpow.pop %v992
        %v994 = vmul.f32 %v981, 1.442695
        %v995 = vpow.pop %v994
        %v996 = vmul.f32 %v982, 1.442695
        %v997 = vpow.pop %v996
        %v998 = vmul.f32 %v983, 1.442695
        %v999 = vpow.pop %v998
        %v1000 = vmul.f32 %v984, 1.442695
        %v1001 = vpow.pop %v1000
        %v1002 = vmul.f32 %v985, 1.442695
        %v1003 = vpow.pop %v1002
        %v1004 = vsel %vm961, %v987, 0.0
        %v1005 = vsel %vm961, %v989, 0.0
        %v1006 = vadd.f32 %v1004, %v1005
        %v1007 = vsel %vm961, %v991, 0.0
        %v1008 = vadd.f32 %v1006, %v1007
        %v1009 = vsel %vm961, %v993, 0.0
        %v1010 = vsel %vm961, %v995, 0.0
        %v1011 = vadd.f32 %v1009, %v1010
        %v1012 = vsel %vm961, %v997, 0.0
        %v1013 = vadd.f32 %v1011, %v1012
        %v1014 = vsel %vm961, %v999, 0.0
        %v1015 = vsel %vm961, %v1001, 0.0
        %v1016 = vadd.f32 %v1014, %v1015
        %v1017 = vsel %vm961, %v1003, 0.0
        %v1018 = vadd.f32 %v1016, %v1017
        %v1019 = vrcp.pop %v1008
        %v1020 = vrcp.pop %v1013
        %v1021 = vrcp.pop %v1018
        %v1022 = vmul.f32 %v987, %v1019
        %v1023 = vmul.f32 %v989, %v1019
        %v1024 = vmul.f32 %v991, %v1019
        %v1025 = vmul.f32 %v993, %v1020
        %v1026 = vmul.f32 %v995, %v1020
        %v1027 = vmul.f32 %v997, %v1020
        %v1028 = vmul.f32 %v999, %v1021
        %v1029 = vmul.f32 %v1001, %v1021
        %v1030 = vmul.f32 %v1003, %v1021
        %v1031 = vpack.c.bf16 %v1022, %v1022
        %v1032 = vpack.c.bf16 %v1023, %v1023
        %v1033 = vpack.c.bf16 %v1024, %v1024
        %v1034 = vpack.c.bf16 %v1025, %v1025
        %v1035 = vpack.c.bf16 %v1026, %v1026
        %v1036 = vpack.c.bf16 %v1027, %v1027
        %v1037 = vpack.c.bf16 %v1028, %v1028
        %v1038 = vpack.c.bf16 %v1029, %v1029
        %v1039 = vpack.c.bf16 %v1030, %v1030
        %v1040 = vld [vmem:[%s4] sm:$0x3]
        %v1044 = vunpack.c.l.b16 %v1031
        %v1045 = vunpack.c.l.b16 %v1034
        %v1046 = vunpack.c.l.b16 %v1037
        %v1047 = vpack.c.b16 %v1045, %v1044
        %v1048 = vpack.c.b16 %v1046, %v1046
        %v1050 = vsel %vm961, %v1047, 0
        %v1053 = vsel %vm961, %v1048, 0
        %vm1055 = vcmask 1041408
        %v1057 = vsel %vm1055, %v1040, 0
        %1059 = vmatpush.bf16.msra.mxu0 0
        %1060 = vmatpush.bf16.msra.mxu0 0
        %1061 = vmatpush.bf16.msra.mxu0 0
        %1062 = vmatpush.bf16.msra.mxu0 0
        %1063 = vmatpush.bf16.msra.mxu0 0
        %1064 = vmatpush.bf16.msra.mxu0 0
        %1065 = vmatpush.bf16.msra.mxu0 0
        %1066 = vmatpush.bf16.msra.mxu0 %v1057
        %1067 = vmatmul.bf16.gmra.mxu0 %v1050
        %v1068 = vpop.f32.mrf.mxu0
        %v1069 = vadd.f32 0.0, %v1068
        %v1070 = vpop.f32.mrf.mxu0
        %v1071 = vadd.f32 0.0, %v1070
        %1072 = vmatmul.bf16.gmra.mxu0 %v1053
        %v1073 = vpop.f32.mrf.mxu0
        %v1074 = vadd.f32 0.0, %v1073
        %v1075 = vpop.f32.mrf.mxu0
        %1076 = vdwg.mxu0
        %v1077 = vmul.f32 %v1069, %v798
        %v1078 = vmul.f32 %v1071, %v798
        %v1079 = vmul.f32 %v1074, %v798
        %v1080 = vadd.f32 %v1077, 0.0
        %v1081 = vadd.f32 %v1078, 0.0
        %v1082 = vadd.f32 %v1079, 0.0
        %v1086 = vunpack.c.l.b16 %v1032
        %v1087 = vunpack.c.l.b16 %v1035
        %v1088 = vunpack.c.l.b16 %v1038
        %v1089 = vpack.c.b16 %v1087, %v1086
        %v1090 = vpack.c.b16 %v1088, %v1088
        %v1092 = vsel %vm961, %v1089, 0
        %v1095 = vsel %vm961, %v1090, 0
        %1097 = vmatpush.bf16.msra.mxu0 0
        %1098 = vmatpush.bf16.msra.mxu0 0
        %1099 = vmatpush.bf16.msra.mxu0 0
        %1100 = vmatpush.bf16.msra.mxu0 0
        %1101 = vmatpush.bf16.msra.mxu0 0
        %1102 = vmatpush.bf16.msra.mxu0 0
        %1103 = vmatpush.bf16.msra.mxu0 0
        %1104 = vmatpush.bf16.msra.mxu0 %v1057
        %1105 = vmatmul.bf16.gmra.mxu0 %v1092
        %v1106 = vpop.f32.mrf.mxu0
        %v1107 = vadd.f32 0.0, %v1106
        %v1108 = vpop.f32.mrf.mxu0
        %v1109 = vadd.f32 0.0, %v1108
        %1110 = vmatmul.bf16.gmra.mxu0 %v1095
        %v1111 = vpop.f32.mrf.mxu0
        %v1112 = vadd.f32 0.0, %v1111
        %v1113 = vpop.f32.mrf.mxu0
        %1114 = vdwg.mxu0
        %v1115 = vmul.f32 %v1107, %v800
        %v1116 = vmul.f32 %v1109, %v800
        %v1117 = vmul.f32 %v1112, %v800
        %v1118 = vadd.f32 %v1080, %v1115
        %v1119 = vadd.f32 %v1081, %v1116
        %v1120 = vadd.f32 %v1082, %v1117
        %v1124 = vunpack.c.l.b16 %v1033
        %v1125 = vunpack.c.l.b16 %v1036
        %v1126 = vunpack.c.l.b16 %v1039
        %v1127 = vpack.c.b16 %v1125, %v1124
        %v1128 = vpack.c.b16 %v1126, %v1126
        %v1130 = vsel %vm961, %v1127, 0
        %v1133 = vsel %vm961, %v1128, 0
        %1135 = vmatpush.bf16.msra.mxu0 0
        %1136 = vmatpush.bf16.msra.mxu0 0
        %1137 = vmatpush.bf16.msra.mxu0 0
        %1138 = vmatpush.bf16.msra.mxu0 0
        %1139 = vmatpush.bf16.msra.mxu0 0
        %1140 = vmatpush.bf16.msra.mxu0 0
        %1141 = vmatpush.bf16.msra.mxu0 0
        %1142 = vmatpush.bf16.msra.mxu0 %v1057
        %1143 = vmatmul.bf16.gmra.mxu0 %v1130
        %v1144 = vpop.f32.mrf.mxu0
        %v1145 = vadd.f32 0.0, %v1144
        %v1146 = vpop.f32.mrf.mxu0
        %v1147 = vadd.f32 0.0, %v1146
        %1148 = vmatmul.bf16.gmra.mxu0 %v1133
        %v1149 = vpop.f32.mrf.mxu0
        %v1150 = vadd.f32 0.0, %v1149
        %v1151 = vpop.f32.mrf.mxu0
        %1152 = vdwg.mxu0
        %v1153 = vmul.f32 %v1145, %v803
        %v1154 = vmul.f32 %v1147, %v803
        %v1155 = vmul.f32 %v1150, %v803
        %v1156 = vadd.f32 %v1118, %v1153
        %v1157 = vadd.f32 %v1119, %v1154
        %v1158 = vadd.f32 %v1120, %v1155
        %v1159 = vpack.c.bf16 %v1157, %v1156
        %v1160 = vpack.c.bf16 %v1158, %v1158
        %v1161 = vld [vmem:[%s5] sm:$0xf]
        %v1162 = vld [vmem:[%s5 + $0x4] sm:$0xf]
        %v1163 = vld [vmem:[%s5 + $0x8] sm:$0xf]
        %v1164 = vld [vmem:[%s5 + $0xc] sm:$0xf]
        %v1165 = vld [vmem:[%s5 + $0x10] sm:$0xf]
        %v1166 = vld [vmem:[%s5 + $0x14] sm:$0xf]
        %v1167 = vld [vmem:[%s5 + $0x18] sm:$0xf]
        %v1168 = vld [vmem:[%s5 + $0x1c] sm:$0xf]
        %v1169 = vld [vmem:[%s5 + $0x20] sm:$0xf]
        %v1170 = vld [vmem:[%s5 + $0x24] sm:$0xf]
        %v1171 = vld [vmem:[%s5 + $0x28] sm:$0xf]
        %v1172 = vld [vmem:[%s5 + $0x2c] sm:$0xf]
        %v1173 = vld [vmem:[%s5 + $0x30] sm:$0xf]
        %v1174 = vld [vmem:[%s5 + $0x34] sm:$0xf]
        %v1175 = vld [vmem:[%s5 + $0x38] sm:$0xf]
        %v1176 = vld [vmem:[%s5 + $0x3c] sm:$0xf]
        %v1177 = vld [vmem:[#allocation7] sm:$0x1]
        %v1179 = vperm.slane %v1177, 0
        %v1197 = vunpack.c.l.b16 %v1161
        %v1198 = vunpack.c.l.b16 %v1162
        %v1199 = vunpack.c.l.b16 %v1163
        %v1200 = vunpack.c.l.b16 %v1164
        %v1201 = vunpack.c.l.b16 %v1165
        %v1202 = vunpack.c.l.b16 %v1166
        %v1203 = vunpack.c.l.b16 %v1167
        %v1204 = vunpack.c.l.b16 %v1168
        %v1205 = vunpack.c.l.b16 %v1169
        %v1206 = vunpack.c.l.b16 %v1170
        %v1207 = vunpack.c.l.b16 %v1171
        %v1208 = vunpack.c.l.b16 %v1172
        %v1209 = vunpack.c.l.b16 %v1173
        %v1210 = vunpack.c.l.b16 %v1174
        %v1211 = vunpack.c.l.b16 %v1175
        %v1212 = vunpack.c.l.b16 %v1176
        %v1213 = vpack.c.b16 %v1198, %v1197
        %v1214 = vpack.c.b16 %v1200, %v1199
        %v1215 = vpack.c.b16 %v1202, %v1201
        %v1216 = vpack.c.b16 %v1204, %v1203
        %v1217 = vpack.c.b16 %v1206, %v1205
        %v1218 = vpack.c.b16 %v1208, %v1207
        %v1219 = vpack.c.b16 %v1210, %v1209
        %v1220 = vpack.c.b16 %v1212, %v1211
        %1229 = vmatpush.bf16.msra.mxu0 %v1220
        %1230 = vmatpush.bf16.msra.mxu0 %v1219
        %1231 = vmatpush.bf16.msra.mxu0 %v1218
        %1232 = vmatpush.bf16.msra.mxu0 %v1217
        %1233 = vmatpush.bf16.msra.mxu0 %v1216
        %1234 = vmatpush.bf16.msra.mxu0 %v1215
        %1235 = vmatpush.bf16.msra.mxu0 %v1214
        %1236 = vmatpush.bf16.msra.mxu0 %v1213
        %1237 = vmatmul.bf16.gmra.mxu0 %v1159
        %v1238 = vpop.f32.mrf.mxu0
        %v1239 = vadd.f32 %v1179, %v1238
        %v1240 = vpop.f32.mrf.mxu0
        %v1241 = vadd.f32 %v1179, %v1240
        %1242 = vmatmul.bf16.gmra.mxu0 %v1160
        %v1243 = vpop.f32.mrf.mxu0
        %v1244 = vadd.f32 %v1179, %v1243
        %v1245 = vpop.f32.mrf.mxu0
        %1246 = vdwg.mxu0
        %v1247 = vadd.f32 %v579, %v1239
        %v1248 = vadd.f32 %v580, %v1241
        %v1249 = vadd.f32 %v581, %v1244
        %v1250 = vld [vmem:[%s7] sm:$0x1]
        %v1251 = vld [vmem:[%s8] sm:$0x1]
        %1252 = vadd.xlane.f32.xlu0 %v1247
        %v1253 = vpop.xlane.xlu0 %1252
        %1254 = vadd.xlane.f32.xlu0 %v1248
        %v1255 = vpop.xlane.xlu0 %1254
        %1256 = vadd.xlane.f32.xlu0 %v1249
        %v1257 = vpop.xlane.xlu0 %1256
        %v1258 = vrcp.pop 128.0
        %v1259 = vmul.f32 128.0, %v1258
        %v1260 = vsub.f32 1.0, %v1259
        %v1261 = vmul.f32 %v1258, %v1260
        %v1262 = vadd.f32 %v1258, %v1261
        %vm1263 = vweird.f32 %v1258
        %v1264 = vsel %vm1263, %v1258, %v1262
        %v1265 = vmul.f32 %v1253, %v1264
        %v1266 = vmul.f32 %v1255, %v1264
        %v1267 = vmul.f32 %v1257, %v1264
        %v1268 = vsub.f32 %v1247, %v1265
        %v1269 = vsub.f32 %v1248, %v1266
        %v1270 = vsub.f32 %v1249, %v1267
        %v1271 = vmul.f32 %v1268, %v1268
        %v1272 = vmul.f32 %v1269, %v1269
        %v1273 = vmul.f32 %v1270, %v1270
        %1274 = vadd.xlane.f32.xlu0 %v1271
        %v1275 = vpop.xlane.xlu0 %1274
        %1276 = vadd.xlane.f32.xlu0 %v1272
        %v1277 = vpop.xlane.xlu0 %1276
        %1278 = vadd.xlane.f32.xlu0 %v1273
        %v1279 = vpop.xlane.xlu0 %1278
        %v1280 = vmul.f32 %v1275, %v1264
        %v1281 = vmul.f32 %v1277, %v1264
        %v1282 = vmul.f32 %v1279, %v1264
        %v1283 = vadd.f32 %v1280, 1e-05
        %v1284 = vadd.f32 %v1281, 1e-05
        %v1285 = vadd.f32 %v1282, 1e-05
        %v1286 = vrsqrt.pop %v1283
        %v1287 = vmul.f32 %v1286, %v1283
        %v1288 = vmul.f32 %v1287, %v1286
        %v1289 = vmul.f32 0.5, %v1288
        %v1290 = vsub.f32 1.5, %v1289
        %v1291 = vmul.f32 %v1286, %v1290
        %vm1292 = vweird.f32 %v1283
        %vm1293 = vweird.f32 %v1286
        %vm1294 = vmor %vm1292, %vm1293
        %v1295 = vsel %vm1294, %v1286, %v1291
        %v1296 = vrsqrt.pop %v1284
        %v1297 = vmul.f32 %v1296, %v1284
        %v1298 = vmul.f32 %v1297, %v1296
        %v1299 = vmul.f32 0.5, %v1298
        %v1300 = vsub.f32 1.5, %v1299
        %v1301 = vmul.f32 %v1296, %v1300
        %vm1302 = vweird.f32 %v1284
        %vm1303 = vweird.f32 %v1296
        %vm1304 = vmor %vm1302, %vm1303
        %v1305 = vsel %vm1304, %v1296, %v1301
        %v1306 = vrsqrt.pop %v1285
        %v1307 = vmul.f32 %v1306, %v1285
        %v1308 = vmul.f32 %v1307, %v1306
        %v1309 = vmul.f32 0.5, %v1308
        %v1310 = vsub.f32 1.5, %v1309
        %v1311 = vmul.f32 %v1306, %v1310
        %vm1312 = vweird.f32 %v1285
        %vm1313 = vweird.f32 %v1306
        %vm1314 = vmor %vm1312, %vm1313
        %v1315 = vsel %vm1314, %v1306, %v1311
        %v1316 = vmul.f32 %v1268, %v1295
        %v1317 = vmul.f32 %v1269, %v1305
        %v1318 = vmul.f32 %v1270, %v1315
        %v1320 = vperm.slane %v1250, 0
        %v1322 = vmul.f32 %v1316, %v1320
        %v1323 = vmul.f32 %v1317, %v1320
        %v1324 = vmul.f32 %v1318, %v1320
        %v1326 = vperm.slane %v1251, 0
        %v1328 = vadd.f32 %v1322, %v1326
        %v1329 = vadd.f32 %v1323, %v1326
        %v1330 = vadd.f32 %v1324, %v1326
        %v1331 = vpack.c.bf16 %v1328, %v1328
        %v1332 = vpack.c.bf16 %v1329, %v1329
        %v1333 = vpack.c.bf16 %v1330, %v1330
        %v1334 = vld [vmem:[#allocation8] sm:$0xff]
        %v1335 = vld [vmem:[#allocation8 + $0x8] sm:$0xff]
        %v1336 = vld [vmem:[#allocation8 + $0x10] sm:$0xff]
        %v1337 = vld [vmem:[#allocation8 + $0x18] sm:$0xff]
        %v1338 = vld [vmem:[#allocation8 + $0x20] sm:$0xff]
        %v1339 = vld [vmem:[#allocation8 + $0x28] sm:$0xff]
        %v1340 = vld [vmem:[#allocation8 + $0x30] sm:$0xff]
        %v1341 = vld [vmem:[#allocation8 + $0x38] sm:$0xff]
        %v1342 = vld [vmem:[#allocation8 + $0x40] sm:$0xff]
        %v1343 = vld [vmem:[#allocation8 + $0x48] sm:$0xff]
        %v1344 = vld [vmem:[#allocation8 + $0x50] sm:$0xff]
        %v1345 = vld [vmem:[#allocation8 + $0x58] sm:$0xff]
        %v1346 = vld [vmem:[#allocation8 + $0x60] sm:$0xff]
        %v1347 = vld [vmem:[#allocation8 + $0x68] sm:$0xff]
        %v1348 = vld [vmem:[#allocation8 + $0x70] sm:$0xff]
        %v1349 = vld [vmem:[#allocation8 + $0x78] sm:$0xff]
        %s1350 = scalar_lea.vmem [#allocation8], 128
        %v1351 = vld [vmem:[%s1350] sm:$0xff]
        %v1352 = vld [vmem:[%s1350 + $0x8] sm:$0xff]
        %v1353 = vld [vmem:[%s1350 + $0x10] sm:$0xff]
        %v1354 = vld [vmem:[%s1350 + $0x18] sm:$0xff]
        %v1355 = vld [vmem:[%s1350 + $0x20] sm:$0xff]
        %v1356 = vld [vmem:[%s1350 + $0x28] sm:$0xff]
        %v1357 = vld [vmem:[%s1350 + $0x30] sm:$0xff]
        %v1358 = vld [vmem:[%s1350 + $0x38] sm:$0xff]
        %v1359 = vld [vmem:[%s1350 + $0x40] sm:$0xff]
        %v1360 = vld [vmem:[%s1350 + $0x48] sm:$0xff]
        %v1361 = vld [vmem:[%s1350 + $0x50] sm:$0xff]
        %v1362 = vld [vmem:[%s1350 + $0x58] sm:$0xff]
        %v1363 = vld [vmem:[%s1350 + $0x60] sm:$0xff]
        %v1364 = vld [vmem:[%s1350 + $0x68] sm:$0xff]
        %v1365 = vld [vmem:[%s1350 + $0x70] sm:$0xff]
        %v1366 = vld [vmem:[%s1350 + $0x78] sm:$0xff]
        %v1383 = vunpack.c.l.b16 %v1351
        %v1384 = vunpack.c.h.b16 %v1351
        %v1385 = vunpack.c.l.b16 %v1352
        %v1386 = vunpack.c.h.b16 %v1352
        %v1387 = vunpack.c.l.b16 %v1353
        %v1388 = vunpack.c.h.b16 %v1353
        %v1389 = vunpack.c.l.b16 %v1354
        %v1390 = vunpack.c.h.b16 %v1354
        %v1391 = vunpack.c.l.b16 %v1355
        %v1392 = vunpack.c.h.b16 %v1355
        %v1393 = vunpack.c.l.b16 %v1356
        %v1394 = vunpack.c.h.b16 %v1356
        %v1395 = vunpack.c.l.b16 %v1357
        %v1396 = vunpack.c.h.b16 %v1357
        %v1397 = vunpack.c.l.b16 %v1358
        %v1398 = vunpack.c.h.b16 %v1358
        %v1399 = vunpack.c.l.b16 %v1359
        %v1400 = vunpack.c.h.b16 %v1359
        %v1401 = vunpack.c.l.b16 %v1360
        %v1402 = vunpack.c.h.b16 %v1360
        %v1403 = vunpack.c.l.b16 %v1361
        %v1404 = vunpack.c.h.b16 %v1361
        %v1405 = vunpack.c.l.b16 %v1362
        %v1406 = vunpack.c.h.b16 %v1362
        %v1407 = vunpack.c.l.b16 %v1363
        %v1408 = vunpack.c.h.b16 %v1363
        %v1409 = vunpack.c.l.b16 %v1364
        %v1410 = vunpack.c.h.b16 %v1364
        %v1411 = vunpack.c.l.b16 %v1365
        %v1412 = vunpack.c.h.b16 %v1365
        %v1413 = vunpack.c.l.b16 %v1366
        %v1414 = vunpack.c.h.b16 %v1366
        %v1415 = vpack.c.b16 %v1385, %v1383
        %v1416 = vpack.c.b16 %v1386, %v1384
        %v1417 = vpack.c.b16 %v1389, %v1387
        %v1418 = vpack.c.b16 %v1390, %v1388
        %v1419 = vpack.c.b16 %v1393, %v1391
        %v1420 = vpack.c.b16 %v1394, %v1392
        %v1421 = vpack.c.b16 %v1397, %v1395
        %v1422 = vpack.c.b16 %v1398, %v1396
        %v1423 = vpack.c.b16 %v1401, %v1399
        %v1424 = vpack.c.b16 %v1402, %v1400
        %v1425 = vpack.c.b16 %v1405, %v1403
        %v1426 = vpack.c.b16 %v1406, %v1404
        %v1427 = vpack.c.b16 %v1409, %v1407
        %v1428 = vpack.c.b16 %v1410, %v1408
        %v1429 = vpack.c.b16 %v1413, %v1411
        %v1430 = vpack.c.b16 %v1414, %v1412
        %1447 = vmatpush.bf16.msra.mxu0 %v1429
        %1448 = vmatpush.bf16.msra.mxu0 %v1427
        %1449 = vmatpush.bf16.msra.mxu0 %v1425
        %1450 = vmatpush.bf16.msra.mxu0 %v1423
        %1451 = vmatpush.bf16.msra.mxu0 %v1421
        %1452 = vmatpush.bf16.msra.mxu0 %v1419
        %1453 = vmatpush.bf16.msra.mxu0 %v1417
        %1454 = vmatpush.bf16.msra.mxu0 %v1415
        %1455 = vmatmul.bf16.gmra.mxu0 %v1332
        %v1456 = vpop.f32.mrf.mxu0
        %v1457 = vadd.f32 0.0, %v1456
        %v1458 = vpop.f32.mrf.mxu0
        %1459 = vdwg.mxu0
        %1460 = vmatpush.bf16.msra.mxu0 %v1430
        %1461 = vmatpush.bf16.msra.mxu0 %v1428
        %1462 = vmatpush.bf16.msra.mxu0 %v1426
        %1463 = vmatpush.bf16.msra.mxu0 %v1424
        %1464 = vmatpush.bf16.msra.mxu0 %v1422
        %1465 = vmatpush.bf16.msra.mxu0 %v1420
        %1466 = vmatpush.bf16.msra.mxu0 %v1418
        %1467 = vmatpush.bf16.msra.mxu0 %v1416
        %1468 = vmatmul.bf16.gmra.mxu0 %v1332
        %v1469 = vpop.f32.mrf.mxu0
        %v1470 = vadd.f32 0.0, %v1469
        %v1471 = vpop.f32.mrf.mxu0
        %1472 = vdwg.mxu0
        %v1489 = vunpack.c.l.b16 %v1334
        %v1490 = vunpack.c.h.b16 %v1334
        %v1491 = vunpack.c.l.b16 %v1335
        %v1492 = vunpack.c.h.b16 %v1335
        %v1493 = vunpack.c.l.b16 %v1336
        %v1494 = vunpack.c.h.b16 %v1336
        %v1495 = vunpack.c.l.b16 %v1337
        %v1496 = vunpack.c.h.b16 %v1337
        %v1497 = vunpack.c.l.b16 %v1338
        %v1498 = vunpack.c.h.b16 %v1338
        %v1499 = vunpack.c.l.b16 %v1339
        %v1500 = vunpack.c.h.b16 %v1339
        %v1501 = vunpack.c.l.b16 %v1340
        %v1502 = vunpack.c.h.b16 %v1340
        %v1503 = vunpack.c.l.b16 %v1341
        %v1504 = vunpack.c.h.b16 %v1341
        %v1505 = vunpack.c.l.b16 %v1342
        %v1506 = vunpack.c.h.b16 %v1342
        %v1507 = vunpack.c.l.b16 %v1343
        %v1508 = vunpack.c.h.b16 %v1343
        %v1509 = vunpack.c.l.b16 %v1344
        %v1510 = vunpack.c.h.b16 %v1344
        %v1511 = vunpack.c.l.b16 %v1345
        %v1512 = vunpack.c.h.b16 %v1345
        %v1513 = vunpack.c.l.b16 %v1346
        %v1514 = vunpack.c.h.b16 %v1346
        %v1515 = vunpack.c.l.b16 %v1347
        %v1516 = vunpack.c.h.b16 %v1347
        %v1517 = vunpack.c.l.b16 %v1348
        %v1518 = vunpack.c.h.b16 %v1348
        %v1519 = vunpack.c.l.b16 %v1349
        %v1520 = vunpack.c.h.b16 %v1349
        %v1521 = vpack.c.b16 %v1491, %v1489
        %v1522 = vpack.c.b16 %v1492, %v1490
        %v1523 = vpack.c.b16 %v1495, %v1493
        %v1524 = vpack.c.b16 %v1496, %v1494
        %v1525 = vpack.c.b16 %v1499, %v1497
        %v1526 = vpack.c.b16 %v1500, %v1498
        %v1527 = vpack.c.b16 %v1503, %v1501
        %v1528 = vpack.c.b16 %v1504, %v1502
        %v1529 = vpack.c.b16 %v1507, %v1505
        %v1530 = vpack.c.b16 %v1508, %v1506
        %v1531 = vpack.c.b16 %v1511, %v1509
        %v1532 = vpack.c.b16 %v1512, %v1510
        %v1533 = vpack.c.b16 %v1515, %v1513
        %v1534 = vpack.c.b16 %v1516, %v1514
        %v1535 = vpack.c.b16 %v1519, %v1517
        %v1536 = vpack.c.b16 %v1520, %v1518
        %1553 = vmatpush.bf16.msra.mxu0 %v1535
        %1554 = vmatpush.bf16.msra.mxu0 %v1533
        %1555 = vmatpush.bf16.msra.mxu0 %v1531
        %1556 = vmatpush.bf16.msra.mxu0 %v1529
        %1557 = vmatpush.bf16.msra.mxu0 %v1527
        %1558 = vmatpush.bf16.msra.mxu0 %v1525
        %1559 = vmatpush.bf16.msra.mxu0 %v1523
        %1560 = vmatpush.bf16.msra.mxu0 %v1521
        %1561 = vmatmul.bf16.gmra.mxu0 %v1331
        %v1562 = vpop.f32.mrf.mxu0
        %v1563 = vadd.f32 %v1457, %v1562
        %v1564 = vpop.f32.mrf.mxu0
        %1565 = vdwg.mxu0
        %1566 = vmatpush.bf16.msra.mxu0 %v1536
        %1567 = vmatpush.bf16.msra.mxu0 %v1534
        %1568 = vmatpush.bf16.msra.mxu0 %v1532
        %1569 = vmatpush.bf16.msra.mxu0 %v1530
        %1570 = vmatpush.bf16.msra.mxu0 %v1528
        %1571 = vmatpush.bf16.msra.mxu0 %v1526
        %1572 = vmatpush.bf16.msra.mxu0 %v1524
        %1573 = vmatpush.bf16.msra.mxu0 %v1522
        %1574 = vmatmul.bf16.gmra.mxu0 %v1331
        %v1575 = vpop.f32.mrf.mxu0
        %v1576 = vadd.f32 %v1470, %v1575
        %v1577 = vpop.f32.mrf.mxu0
        %1578 = vdwg.mxu0
        %s1579 = scalar_lea.vmem [#allocation8], 256
        %v1580 = vld [vmem:[%s1579] sm:$0xff]
        %v1581 = vld [vmem:[%s1579 + $0x8] sm:$0xff]
        %v1582 = vld [vmem:[%s1579 + $0x10] sm:$0xff]
        %v1583 = vld [vmem:[%s1579 + $0x18] sm:$0xff]
        %v1584 = vld [vmem:[%s1579 + $0x20] sm:$0xff]
        %v1585 = vld [vmem:[%s1579 + $0x28] sm:$0xff]
        %v1586 = vld [vmem:[%s1579 + $0x30] sm:$0xff]
        %v1587 = vld [vmem:[%s1579 + $0x38] sm:$0xff]
        %v1588 = vld [vmem:[%s1579 + $0x40] sm:$0xff]
        %v1589 = vld [vmem:[%s1579 + $0x48] sm:$0xff]
        %v1590 = vld [vmem:[%s1579 + $0x50] sm:$0xff]
        %v1591 = vld [vmem:[%s1579 + $0x58] sm:$0xff]
        %v1592 = vld [vmem:[%s1579 + $0x60] sm:$0xff]
        %v1593 = vld [vmem:[%s1579 + $0x68] sm:$0xff]
        %v1594 = vld [vmem:[%s1579 + $0x70] sm:$0xff]
        %v1595 = vld [vmem:[%s1579 + $0x78] sm:$0xff]
        %v1612 = vunpack.c.l.b16 %v1580
        %v1613 = vunpack.c.h.b16 %v1580
        %v1614 = vunpack.c.l.b16 %v1581
        %v1615 = vunpack.c.h.b16 %v1581
        %v1616 = vunpack.c.l.b16 %v1582
        %v1617 = vunpack.c.h.b16 %v1582
        %v1618 = vunpack.c.l.b16 %v1583
        %v1619 = vunpack.c.h.b16 %v1583
        %v1620 = vunpack.c.l.b16 %v1584
        %v1621 = vunpack.c.h.b16 %v1584
        %v1622 = vunpack.c.l.b16 %v1585
        %v1623 = vunpack.c.h.b16 %v1585
        %v1624 = vunpack.c.l.b16 %v1586
        %v1625 = vunpack.c.h.b16 %v1586
        %v1626 = vunpack.c.l.b16 %v1587
        %v1627 = vunpack.c.h.b16 %v1587
        %v1628 = vunpack.c.l.b16 %v1588
        %v1629 = vunpack.c.h.b16 %v1588
        %v1630 = vunpack.c.l.b16 %v1589
        %v1631 = vunpack.c.h.b16 %v1589
        %v1632 = vunpack.c.l.b16 %v1590
        %v1633 = vunpack.c.h.b16 %v1590
        %v1634 = vunpack.c.l.b16 %v1591
        %v1635 = vunpack.c.h.b16 %v1591
        %v1636 = vunpack.c.l.b16 %v1592
        %v1637 = vunpack.c.h.b16 %v1592
        %v1638 = vunpack.c.l.b16 %v1593
        %v1639 = vunpack.c.h.b16 %v1593
        %v1640 = vunpack.c.l.b16 %v1594
        %v1641 = vunpack.c.h.b16 %v1594
        %v1642 = vunpack.c.l.b16 %v1595
        %v1643 = vunpack.c.h.b16 %v1595
        %v1644 = vpack.c.b16 %v1614, %v1612
        %v1645 = vpack.c.b16 %v1615, %v1613
        %v1646 = vpack.c.b16 %v1618, %v1616
        %v1647 = vpack.c.b16 %v1619, %v1617
        %v1648 = vpack.c.b16 %v1622, %v1620
        %v1649 = vpack.c.b16 %v1623, %v1621
        %v1650 = vpack.c.b16 %v1626, %v1624
        %v1651 = vpack.c.b16 %v1627, %v1625
        %v1652 = vpack.c.b16 %v1630, %v1628
        %v1653 = vpack.c.b16 %v1631, %v1629
        %v1654 = vpack.c.b16 %v1634, %v1632
        %v1655 = vpack.c.b16 %v1635, %v1633
        %v1656 = vpack.c.b16 %v1638, %v1636
        %v1657 = vpack.c.b16 %v1639, %v1637
        %v1658 = vpack.c.b16 %v1642, %v1640
        %v1659 = vpack.c.b16 %v1643, %v1641
        %1676 = vmatpush.bf16.msra.mxu0 %v1658
        %1677 = vmatpush.bf16.msra.mxu0 %v1656
        %1678 = vmatpush.bf16.msra.mxu0 %v1654
        %1679 = vmatpush.bf16.msra.mxu0 %v1652
        %1680 = vmatpush.bf16.msra.mxu0 %v1650
        %1681 = vmatpush.bf16.msra.mxu0 %v1648
        %1682 = vmatpush.bf16.msra.mxu0 %v1646
        %1683 = vmatpush.bf16.msra.mxu0 %v1644
        %1684 = vmatmul.bf16.gmra.mxu0 %v1333
        %v1685 = vpop.f32.mrf.mxu0
        %v1686 = vadd.f32 0.0, %v1685
        %v1687 = vpop.f32.mrf.mxu0
        %1688 = vdwg.mxu0
        %1689 = vmatpush.bf16.msra.mxu0 %v1659
        %1690 = vmatpush.bf16.msra.mxu0 %v1657
        %1691 = vmatpush.bf16.msra.mxu0 %v1655
        %1692 = vmatpush.bf16.msra.mxu0 %v1653
        %1693 = vmatpush.bf16.msra.mxu0 %v1651
        %1694 = vmatpush.bf16.msra.mxu0 %v1649
        %1695 = vmatpush.bf16.msra.mxu0 %v1647
        %1696 = vmatpush.bf16.msra.mxu0 %v1645
        %1697 = vmatmul.bf16.gmra.mxu0 %v1333
        %v1698 = vpop.f32.mrf.mxu0
        %v1699 = vadd.f32 0.0, %v1698
        %v1700 = vpop.f32.mrf.mxu0
        %1701 = vdwg.mxu0
        %v1702 = vadd.f32 %v1563, %v1686
        %v1703 = vadd.f32 %v1576, %v1699
        %v1704 = vld [vmem:[%s10] sm:$0x3]
        %v1706 = vperm.slane %v1704, 0
        %v1707 = vperm.slane %v1704, 1
        %v1710 = vadd.f32 %v1702, %v1706
        %v1711 = vadd.f32 %v1703, %v1707
        %v1712 = vmax.f32 %v1710, 0.0
        %v1713 = vmax.f32 %v1711, 0.0
        %v1714 = vpack.c.bf16 %v1712, %v1712
        %v1715 = vpack.c.bf16 %v1713, %v1713
        %v1716 = vld [vmem:[#allocation10] sm:$0xf]
        %v1717 = vld [vmem:[#allocation10 + $0x4] sm:$0xf]
        %v1718 = vld [vmem:[#allocation10 + $0x8] sm:$0xf]
        %v1719 = vld [vmem:[#allocation10 + $0xc] sm:$0xf]
        %v1720 = vld [vmem:[#allocation10 + $0x10] sm:$0xf]
        %v1721 = vld [vmem:[#allocation10 + $0x14] sm:$0xf]
        %v1722 = vld [vmem:[#allocation10 + $0x18] sm:$0xf]
        %v1723 = vld [vmem:[#allocation10 + $0x1c] sm:$0xf]
        %v1724 = vld [vmem:[#allocation10 + $0x20] sm:$0xf]
        %v1725 = vld [vmem:[#allocation10 + $0x24] sm:$0xf]
        %v1726 = vld [vmem:[#allocation10 + $0x28] sm:$0xf]
        %v1727 = vld [vmem:[#allocation10 + $0x2c] sm:$0xf]
        %v1728 = vld [vmem:[#allocation10 + $0x30] sm:$0xf]
        %v1729 = vld [vmem:[#allocation10 + $0x34] sm:$0xf]
        %v1730 = vld [vmem:[#allocation10 + $0x38] sm:$0xf]
        %v1731 = vld [vmem:[#allocation10 + $0x3c] sm:$0xf]
        %v1732 = vld [vmem:[#allocation10 + $0x40] sm:$0xf]
        %v1733 = vld [vmem:[#allocation10 + $0x44] sm:$0xf]
        %v1734 = vld [vmem:[#allocation10 + $0x48] sm:$0xf]
        %v1735 = vld [vmem:[#allocation10 + $0x4c] sm:$0xf]
        %v1736 = vld [vmem:[#allocation10 + $0x50] sm:$0xf]
        %v1737 = vld [vmem:[#allocation10 + $0x54] sm:$0xf]
        %v1738 = vld [vmem:[#allocation10 + $0x58] sm:$0xf]
        %v1739 = vld [vmem:[#allocation10 + $0x5c] sm:$0xf]
        %v1740 = vld [vmem:[#allocation10 + $0x60] sm:$0xf]
        %v1741 = vld [vmem:[#allocation10 + $0x64] sm:$0xf]
        %v1742 = vld [vmem:[#allocation10 + $0x68] sm:$0xf]
        %v1743 = vld [vmem:[#allocation10 + $0x6c] sm:$0xf]
        %v1744 = vld [vmem:[#allocation10 + $0x70] sm:$0xf]
        %v1745 = vld [vmem:[#allocation10 + $0x74] sm:$0xf]
        %v1746 = vld [vmem:[#allocation10 + $0x78] sm:$0xf]
        %v1747 = vld [vmem:[#allocation10 + $0x7c] sm:$0xf]
        %v1748 = vld [vmem:[%s12] sm:$0x1]
        %v1750 = vperm.slane %v1748, 0
        %v1784 = vunpack.c.l.b16 %v1716
        %v1785 = vunpack.c.l.b16 %v1717
        %v1786 = vunpack.c.l.b16 %v1718
        %v1787 = vunpack.c.l.b16 %v1719
        %v1788 = vunpack.c.l.b16 %v1720
        %v1789 = vunpack.c.l.b16 %v1721
        %v1790 = vunpack.c.l.b16 %v1722
        %v1791 = vunpack.c.l.b16 %v1723
        %v1792 = vunpack.c.l.b16 %v1724
        %v1793 = vunpack.c.l.b16 %v1725
        %v1794 = vunpack.c.l.b16 %v1726
        %v1795 = vunpack.c.l.b16 %v1727
        %v1796 = vunpack.c.l.b16 %v1728
        %v1797 = vunpack.c.l.b16 %v1729
        %v1798 = vunpack.c.l.b16 %v1730
        %v1799 = vunpack.c.l.b16 %v1731
        %v1800 = vunpack.c.l.b16 %v1732
        %v1801 = vunpack.c.l.b16 %v1733
        %v1802 = vunpack.c.l.b16 %v1734
        %v1803 = vunpack.c.l.b16 %v1735
        %v1804 = vunpack.c.l.b16 %v1736
        %v1805 = vunpack.c.l.b16 %v1737
        %v1806 = vunpack.c.l.b16 %v1738
        %v1807 = vunpack.c.l.b16 %v1739
        %v1808 = vunpack.c.l.b16 %v1740
        %v1809 = vunpack.c.l.b16 %v1741
        %v1810 = vunpack.c.l.b16 %v1742
        %v1811 = vunpack.c.l.b16 %v1743
        %v1812 = vunpack.c.l.b16 %v1744
        %v1813 = vunpack.c.l.b16 %v1745
        %v1814 = vunpack.c.l.b16 %v1746
        %v1815 = vunpack.c.l.b16 %v1747
        %v1816 = vpack.c.b16 %v1785, %v1784
        %v1817 = vpack.c.b16 %v1787, %v1786
        %v1818 = vpack.c.b16 %v1789, %v1788
        %v1819 = vpack.c.b16 %v1791, %v1790
        %v1820 = vpack.c.b16 %v1793, %v1792
        %v1821 = vpack.c.b16 %v1795, %v1794
        %v1822 = vpack.c.b16 %v1797, %v1796
        %v1823 = vpack.c.b16 %v1799, %v1798
        %v1824 = vpack.c.b16 %v1801, %v1800
        %v1825 = vpack.c.b16 %v1803, %v1802
        %v1826 = vpack.c.b16 %v1805, %v1804
        %v1827 = vpack.c.b16 %v1807, %v1806
        %v1828 = vpack.c.b16 %v1809, %v1808
        %v1829 = vpack.c.b16 %v1811, %v1810
        %v1830 = vpack.c.b16 %v1813, %v1812
        %v1831 = vpack.c.b16 %v1815, %v1814
        %1848 = vmatpush.bf16.msra.mxu0 %v1823
        %1849 = vmatpush.bf16.msra.mxu0 %v1822
        %1850 = vmatpush.bf16.msra.mxu0 %v1821
        %1851 = vmatpush.bf16.msra.mxu0 %v1820
        %1852 = vmatpush.bf16.msra.mxu0 %v1819
        %1853 = vmatpush.bf16.msra.mxu0 %v1818
        %1854 = vmatpush.bf16.msra.mxu0 %v1817
        %1855 = vmatpush.bf16.msra.mxu0 %v1816
        %1856 = vmatmul.bf16.gmra.mxu0 %v1714
        %v1857 = vpop.f32.mrf.mxu0
        %v1858 = vadd.f32 %v1750, %v1857
        %v1859 = vpop.f32.mrf.mxu0
        %1860 = vdwg.mxu0
        %1861 = vmatpush.bf16.msra.mxu0 %v1831
        %1862 = vmatpush.bf16.msra.mxu0 %v1830
        %1863 = vmatpush.bf16.msra.mxu0 %v1829
        %1864 = vmatpush.bf16.msra.mxu0 %v1828
        %1865 = vmatpush.bf16.msra.mxu0 %v1827
        %1866 = vmatpush.bf16.msra.mxu0 %v1826
        %1867 = vmatpush.bf16.msra.mxu0 %v1825
        %1868 = vmatpush.bf16.msra.mxu0 %v1824
        %1869 = vmatmul.bf16.gmra.mxu0 %v1715
        %v1870 = vpop.f32.mrf.mxu0
        %v1871 = vadd.f32 %v1858, %v1870
        %v1872 = vpop.f32.mrf.mxu0
        %1873 = vdwg.mxu0
        %v1874 = vld [vmem:[%s13] sm:$0x1]
        %v1875 = vld [vmem:[%s14] sm:$0x1]
        %1876 = vadd.xlane.f32.xlu0 %v1871
        %v1877 = vpop.xlane.xlu0 %1876
        %v1878 = vmul.f32 %v1877, %v1264
        %v1879 = vsub.f32 %v1871, %v1878
        %v1880 = vmul.f32 %v1879, %v1879
        %1881 = vadd.xlane.f32.xlu0 %v1880
        %v1882 = vpop.xlane.xlu0 %1881
        %v1883 = vmul.f32 %v1882, %v1264
        %v1884 = vadd.f32 %v1883, 1e-05
        %v1885 = vrsqrt.pop %v1884
        %v1886 = vmul.f32 %v1885, %v1884
        %v1887 = vmul.f32 %v1886, %v1885
        %v1888 = vmul.f32 0.5, %v1887
        %v1889 = vsub.f32 1.5, %v1888
        %v1890 = vmul.f32 %v1885, %v1889
        %vm1891 = vweird.f32 %v1884
        %vm1892 = vweird.f32 %v1885
        %vm1893 = vmor %vm1891, %vm1892
        %v1894 = vsel %vm1893, %v1885, %v1890
        %v1895 = vmul.f32 %v1879, %v1894
        %v1897 = vperm.slane %v1874, 0
        %v1899 = vmul.f32 %v1895, %v1897
        %v1901 = vperm.slane %v1875, 0
        %v1903 = vadd.f32 %v1899, %v1901
        %1904 = vst [vmem:[%s577] sm:$0xff] %v1903
        %s1905 = sand.u32 %s362, 1
        %s1906 = scalar_lea.sflag [#allocation4], %s1905
        %s1907 = sand.u32 %s362, 1
        %s1908 = smul.addr %s1907, 8
        %s1909 = scalar_lea.vmem [#allocation11], %s1908
        // Predicated region
        $region101: #{tpu_custom_call.1} parent=79 // pred_check
          %p1910 = pneg %p372
        $region102: #{tpu_custom_call.1} parent=79 // pred_check_branch
          %1912 = sbr.rel (%p1910) target = $region104
        $region103: #{tpu_custom_call.1} parent=79 // pred_region
          %1914 = vsyncadd %s1906, 0
          %s1915 = smul.addr %s34, 8
          %s1916 = scalar_lea.hbm %s15, %s1915
          %s1918 = sshll.u32 %s1909, 4
          %s1919 = int_to_ptr.vmem [resolvable:$true] %s1918
          %s1920 = sshll.u32 %s1916, 4
          %s1921 = int_to_ptr.hbm [resolvable:$true] %s1920
          %1923 = dma.vmem_to_hbm [thread:$0]  %s1919, 128, %s1921, %s1906
        $region104: #{tpu_custom_call.1} parent=79 // pred_fallthru
          _
      $region80: #{tpu_custom_call.1} parent=5 // pred_fallthru
        _
      %p1924 = scmp.le.s32.totalorder 2, %s29
      // Predicated region
      $region105: #{tpu_custom_call.1} parent=5 // pred_check
        %p1925 = pneg %p1924
      $region106: #{tpu_custom_call.1} parent=5 // pred_check_branch
        %1927 = sbr.rel (%p1925) target = $region108
      $region107: #{tpu_custom_call.1} parent=5 // pred_region
        %s1928 = ssub.s32 %s29, 2
        // Predicated region
        $region109: #{tpu_custom_call.1} parent=107 // pred_check
          %p1929 = pneg %p378
        $region110: #{tpu_custom_call.1} parent=107 // pred_check_branch
          %1931 = sbr.rel (%p1929) target = $region112
        $region111: #{tpu_custom_call.1} parent=107 // pred_region
          %s1932 = sand.u32 %s363, 1
          %s1933 = scalar_lea.sflag [#allocation4], %s1932
          %s1934 = sand.u32 %s363, 1
          %s1935 = smul.addr %s1934, 8
          %s1936 = scalar_lea.vmem [#allocation11], %s1935
          %1938 = dma.done %s1933, 128
        $region112: #{tpu_custom_call.1} parent=107 // pred_fallthru
          _
      $region108: #{tpu_custom_call.1} parent=5 // pred_fallthru
        _
    $region6: #{tpu_custom_call.1} parent=1 // loop_footer
      %s33 = sadd.s32 1, %s29
    $region7: #{tpu_custom_call.1} parent=1 // loop_footer_branch
      %28 = sbr.rel target = $region3
    $region8: #{tpu_custom_call.1} parent=1 // loop_exit
      _
    %1939 = vsyncpa [#allocation3], 1
    %s1940 = scalar_lea.sflag [#allocation3], 1
    %1941 = vsyncpa %s1940, 1
    %1942 = vsyncpa [#allocation6], 1
    %1943 = vsyncpa [#allocation9], 1
    %1944 = vsyncpa [#allocation4], 1
    %s1945 = scalar_lea.sflag [#allocation4], 1
    %1946 = vsyncpa %s1945, 1

// kernel: tpu_custom_call.1
$region0: #{tpu_custom_call.1}
  #allocation0 [shape = 'u32[]', space=smem, size = 0x4, offset = 0x4, fixed_abs, tag = 'smem constant byte address 0x4 - core index']
  #allocation1 [shape = 'u32[72,128]{1,0:T(1,128)}', space=vmem, size = 0x9000, scoped, tag = 'internal scratch']
  %s0 = inlined_call_operand.hbm [shape: f32[3,16,128], index: 0, kind: input, shape index: {}]
  %s1 = inlined_call_operand.hbm [shape: bf16[128,384], index: 1, kind: input, shape index: {}]
  %s2 = inlined_call_operand.vmem [shape: f32[1,384], index: 2, kind: input, shape index: {}]
  %s3 = inlined_call_operand.vmem [shape: bf16[128,4], index: 3, kind: input, shape index: {}]
  %s4 = inlined_call_operand.vmem [shape: bf16[4,128], index: 4, kind: input, shape index: {}]
  %s5 = inlined_call_operand.vmem [shape: bf16[128,128], index: 5, kind: input, shape index: {}]
  %s6 = inlined_call_operand.hbm [shape: f32[1,128], index: 6, kind: input, shape index: {}]
  %s7 = inlined_call_operand.vmem [shape: f32[1,128], index: 7, kind: input, shape index: {}]
  %s8 = inlined_call_operand.vmem [shape: f32[1,128], index: 8, kind: input, shape index: {}]
  %s9 = inlined_call_operand.hbm [shape: bf16[3,128,256], index: 9, kind: input, shape index: {}]
  %s10 = inlined_call_operand.vmem [shape: f32[1,256], index: 10, kind: input, shape index: {}]
  %s11 = inlined_call_operand.hbm [shape: bf16[256,128], index: 11, kind: input, shape index: {}]
  %s12 = inlined_call_operand.vmem [shape: f32[1,128], index: 12, kind: input, shape index: {}]
  %s13 = inlined_call_operand.vmem [shape: f32[1,128], index: 13, kind: input, shape index: {}]
  %s14 = inlined_call_operand.vmem [shape: f32[1,128], index: 14, kind: input, shape index: {}]
  %s15 = inlined_call_operand.hbm [shape: f32[16,128], index: 15, kind: output, shape index: {}]
  %s16 = sld [smem:[#allocation0]]
  $region113: #{tpu_custom_call.1} parent=0
    _
  %s18 = ssub.s32 1, %s16
  %s19 = scalar_select 0, %s18, %s16
  $region1: #{tpu_custom_call.1} parent=0
    #allocation2 [shape = 'u8[24576]{0}', space=vmem, size = 0x6000, scoped, tag = 'input window, operand 0']
    #allocation3 [shape = 's32[2]{0}', space=sflag, size = 0x8, scoped, tag = 'scoped memory for tpu_custom_call.1']
    #allocation4 [shape = 's32[2]{0}', space=sflag, size = 0x8, scoped, tag = 'scoped memory for tpu_custom_call.1']
    #allocation5 [shape = 'u8[98304]{0}', space=vmem, size = 0x18000, scoped, tag = 'input window, operand 1, single buffered']
    #allocation6 [shape = 's32[1]{0}', space=sflag, size = 0x4, scoped, tag = 'scoped memory for tpu_custom_call.1']
    #allocation7 [shape = 'u8[512]{0}', space=vmem, size = 0x400, scoped, tag = 'input window, operand 6, single buffered']
    #allocation8 [shape = 'u8[196608]{0}', space=vmem, size = 0x30000, scoped, tag = 'input window, operand 9, single buffered']
    #allocation9 [shape = 's32[1]{0}', space=sflag, size = 0x4, scoped, tag = 'scoped memory for tpu_custom_call.1']
    #allocation10 [shape = 'u8[65536]{0}', space=vmem, size = 0x10000, scoped, tag = 'input window, operand 11, single buffered']
    #allocation11 [shape = 'u8[8192]{0}', space=vmem, size = 0x2000, scoped, tag = 'output window, operand 0']
    %20 = vsyncpa [#allocation3], 0
    %s21 = scalar_lea.sflag [#allocation3], 1
    %22 = vsyncpa %s21, 0
    %23 = vsyncpa [#allocation6], 0
    %24 = vsyncpa [#allocation9], 0
    %25 = vsyncpa [#allocation4], 0
    %s26 = scalar_lea.sflag [#allocation4], 1
    %27 = vsyncpa %s26, 0
    loop: start=0, step=1, limit=4
    $region2: #{tpu_custom_call.1} parent=1 // loop_pre_header
      _
    $region3: #{tpu_custom_call.1} parent=1 // loop_header
      %s29 = sphi 0, %s33
      %p30 = scmp.ge.s32.totalorder %s29, 4
      %s39 = sphi 0, %s41
      %s42 = sphi 0, %s39
      %s43 = sphi 0, %s42
      %s59 = sphi 0, %s43
      %s63 = sphi 0, %s63
      %s65 = sphi 0, %s63
      %s66 = sphi 0, %s65
      %s80 = sphi 0, %s66
      %s84 = sphi 0, %s84
      %s86 = sphi 0, %s84
      %s87 = sphi 0, %s86
      %s101 = sphi 0, %s87
      %s105 = sphi 0, %s105
      %s107 = sphi 0, %s105
      %s108 = sphi 0, %s107
      %s122 = sphi 0, %s108
      %s126 = sphi 0, %s126
      %s128 = sphi 0, %s126
      %s129 = sphi 0, %s128
      %s143 = sphi 0, %s129
      %s147 = sphi 0, %s147
      %s149 = sphi 0, %s147
      %s150 = sphi 0, %s149
      %s164 = sphi 0, %s150
      %s168 = sphi 0, %s168
      %s170 = sphi 0, %s168
      %s171 = sphi 0, %s170
      %s185 = sphi 0, %s171
      %s189 = sphi 0, %s189
      %s191 = sphi 0, %s189
      %s192 = sphi 0, %s191
      %s206 = sphi 0, %s192
      %s210 = sphi 0, %s210
      %s212 = sphi 0, %s210
      %s213 = sphi 0, %s212
      %s227 = sphi 0, %s213
      %s231 = sphi 0, %s231
      %s233 = sphi 0, %s231
      %s234 = sphi 0, %s233
      %s248 = sphi 0, %s234
      %s252 = sphi 0, %s252
      %s254 = sphi 0, %s252
      %s255 = sphi 0, %s254
      %s269 = sphi 0, %s255
      %s273 = sphi 0, %s273
      %s275 = sphi 0, %s273
      %s276 = sphi 0, %s275
      %s290 = sphi 0, %s276
      %s294 = sphi 0, %s294
      %s296 = sphi 0, %s294
      %s297 = sphi 0, %s296
      %s311 = sphi 0, %s297
      %s315 = sphi 0, %s315
      %s317 = sphi 0, %s315
      %s318 = sphi 0, %s317
      %s332 = sphi 0, %s318
      %s336 = sphi 0, %s336
      %s338 = sphi 0, %s336
      %s339 = sphi 0, %s338
      %s353 = sphi 0, %s339
      %s359 = sphi 0, %s361
      %s362 = sphi 0, %s359
      %s363 = sphi 0, %s362
      %s379 = sphi 0, %s363
    $region4: #{tpu_custom_call.1} parent=1 // loop_header_branch
      %32 = sbr.rel (%p30) target = $region8
    $region5: #{tpu_custom_call.1} parent=1 // loop_body
      %s34 = ssub.s32 %s29, 1
      %s35 = ssub.s32 %s29, 2
      %s36 = sadd.s32 %s29, 1
      %s37 = ssub.s32 %s29, %s36
      %p38 = scmp.eq.s32.totalorder %s37, 0
      %s40 = sadd.s32 %s39, 1
      %s41 = scalar_select %p38, %s39, %s40
      %p44 = pneg %p38
      %p45 = scmp.eq.s32.totalorder %s29, 1
      %p46 = por %p44, %p45
      %p47 = scmp.ne.s32.totalorder %s39, %s42
      %p48 = scmp.eq.s32.totalorder %s29, 0
      %p49 = por %p47, %p48
      %p50 = scmp.ne.s32.totalorder %s39, %s42
      %p51 = scmp.eq.s32.totalorder %s34, 1
      %p52 = por %p50, %p51
      %p53 = scmp.ne.s32.totalorder %s42, %s43
      %p54 = scmp.eq.s32.totalorder %s34, 0
      %p55 = por %p53, %p54
      %p56 = scmp.ne.s32.totalorder %s42, %s43
      %p57 = scmp.eq.s32.totalorder %s35, 1
      %p58 = por %p56, %p57
      %p60 = scmp.ne.s32.totalorder %s43, %s59
      %p61 = scmp.eq.s32.totalorder %s35, 0
      %p62 = por %p60, %p61
      %s64 = sadd.s32 %s63, 1
      %p67 = scmp.eq.s32.totalorder %s29, 1
      %p68 = scmp.ne.s32.totalorder %s63, %s65
      %p69 = scmp.eq.s32.totalorder %s29, 0
      %p70 = por %p68, %p69
      %p71 = scmp.ne.s32.totalorder %s63, %s65
      %p72 = scmp.eq.s32.totalorder %s34, 1
      %p73 = por %p71, %p72
      %p74 = scmp.ne.s32.totalorder %s65, %s66
      %p75 = scmp.eq.s32.totalorder %s34, 0
      %p76 = por %p74, %p75
      %p77 = scmp.ne.s32.totalorder %s65, %s66
      %p78 = scmp.eq.s32.totalorder %s35, 1
      %p79 = por %p77, %p78
      %p81 = scmp.ne.s32.totalorder %s66, %s80
      %p82 = scmp.eq.s32.totalorder %s35, 0
      %p83 = por %p81, %p82
      %s85 = sadd.s32 %s84, 1
      %p88 = scmp.eq.s32.totalorder %s29, 1
      %p89 = scmp.ne.s32.totalorder %s84, %s86
      %p90 = scmp.eq.s32.totalorder %s29, 0
      %p91 = por %p89, %p90
      %p92 = scmp.ne.s32.totalorder %s84, %s86
      %p93 = scmp.eq.s32.totalorder %s34, 1
      %p94 = por %p92, %p93
      %p95 = scmp.ne.s32.totalorder %s86, %s87
      %p96 = scmp.eq.s32.totalorder %s34, 0
      %p97 = por %p95, %p96
      %p98 = scmp.ne.s32.totalorder %s86, %s87
      %p99 = scmp.eq.s32.totalorder %s35, 1
      %p100 = por %p98, %p99
      %p102 = scmp.ne.s32.totalorder %s87, %s101
      %p103 = scmp.eq.s32.totalorder %s35, 0
      %p104 = por %p102, %p103
      %s106 = sadd.s32 %s105, 1
      %p109 = scmp.eq.s32.totalorder %s29, 1
      %p110 = scmp.ne.s32.totalorder %s105, %s107
      %p111 = scmp.eq.s32.totalorder %s29, 0
      %p112 = por %p110, %p111
      %p113 = scmp.ne.s32.totalorder %s105, %s107
      %p114 = scmp.eq.s32.totalorder %s34, 1
      %p115 = por %p113, %p114
      %p116 = scmp.ne.s32.totalorder %s107, %s108
      %p117 = scmp.eq.s32.totalorder %s34, 0
      %p118 = por %p116, %p117
      %p119 = scmp.ne.s32.totalorder %s107, %s108
      %p120 = scmp.eq.s32.totalorder %s35, 1
      %p121 = por %p119, %p120
      %p123 = scmp.ne.s32.totalorder %s108, %s122
      %p124 = scmp.eq.s32.totalorder %s35, 0
      %p125 = por %p123, %p124
      %s127 = sadd.s32 %s126, 1
      %p130 = scmp.eq.s32.totalorder %s29, 1
      %p131 = scmp.ne.s32.totalorder %s126, %s128
      %p132 = scmp.eq.s32.totalorder %s29, 0
      %p133 = por %p131, %p132
      %p134 = scmp.ne.s32.totalorder %s126, %s128
      %p135 = scmp.eq.s32.totalorder %s34, 1
      %p136 = por %p134, %p135
      %p137 = scmp.ne.s32.totalorder %s128, %s129
      %p138 = scmp.eq.s32.totalorder %s34, 0
      %p139 = por %p137, %p138
      %p140 = scmp.ne.s32.totalorder %s128, %s129
      %p141 = scmp.eq.s32.totalorder %s35, 1
      %p142 = por %p140, %p141
      %p144 = scmp.ne.s32.totalorder %s129, %s143
      %p145 = scmp.eq.s32.totalorder %s35, 0
      %p146 = por %p144, %p145
      %s148 = sadd.s32 %s147, 1
      %p151 = scmp.eq.s32.totalorder %s29, 1
      %p152 = scmp.ne.s32.totalorder %s147, %s149
      %p153 = scmp.eq.s32.totalorder %s29, 0
      %p154 = por %p152, %p153
      %p155 = scmp.ne.s32.totalorder %s147, %s149
      %p156 = scmp.eq.s32.totalorder %s34, 1
      %p157 = por %p155, %p156
      %p158 = scmp.ne.s32.totalorder %s149, %s150
      %p159 = scmp.eq.s32.totalorder %s34, 0
      %p160 = por %p158, %p159
      %p161 = scmp.ne.s32.totalorder %s149, %s150
      %p162 = scmp.eq.s32.totalorder %s35, 1
      %p163 = por %p161, %p162
      %p165 = scmp.ne.s32.totalorder %s150, %s164
      %p166 = scmp.eq.s32.totalorder %s35, 0
      %p167 = por %p165, %p166
      %s169 = sadd.s32 %s168, 1
      %p172 = scmp.eq.s32.totalorder %s29, 1
      %p173 = scmp.ne.s32.totalorder %s168, %s170
      %p174 = scmp.eq.s32.totalorder %s29, 0
      %p175 = por %p173, %p174
      %p176 = scmp.ne.s32.totalorder %s168, %s170
      %p177 = scmp.eq.s32.totalorder %s34, 1
      %p178 = por %p176, %p177
      %p179 = scmp.ne.s32.totalorder %s170, %s171
      %p180 = scmp.eq.s32.totalorder %s34, 0
      %p181 = por %p179, %p180
      %p182 = scmp.ne.s32.totalorder %s170, %s171
      %p183 = scmp.eq.s32.totalorder %s35, 1
      %p184 = por %p182, %p183
      %p186 = scmp.ne.s32.totalorder %s171, %s185
      %p187 = scmp.eq.s32.totalorder %s35, 0
      %p188 = por %p186, %p187
      %s190 = sadd.s32 %s189, 1
      %p193 = scmp.eq.s32.totalorder %s29, 1
      %p194 = scmp.ne.s32.totalorder %s189, %s191
      %p195 = scmp.eq.s32.totalorder %s29, 0
      %p196 = por %p194, %p195
      %p197 = scmp.ne.s32.totalorder %s189, %s191
      %p198 = scmp.eq.s32.totalorder %s34, 1
      %p199 = por %p197, %p198
      %p200 = scmp.ne.s32.totalorder %s191, %s192
      %p201 = scmp.eq.s32.totalorder %s34, 0
      %p202 = por %p200, %p201
      %p203 = scmp.ne.s32.totalorder %s191, %s192
      %p204 = scmp.eq.s32.totalorder %s35, 1
      %p205 = por %p203, %p204
      %p207 = scmp.ne.s32.totalorder %s192, %s206
      %p208 = scmp.eq.s32.totalorder %s35, 0
      %p209 = por %p207, %p208
      %s211 = sadd.s32 %s210, 1
      %p214 = scmp.eq.s32.totalorder %s29, 1
      %p215 = scmp.ne.s32.totalorder %s210, %s212
      %p216 = scmp.eq.s32.totalorder %s29, 0
      %p217 = por %p215, %p216
      %p218 = scmp.ne.s32.totalorder %s210, %s212
      %p219 = scmp.eq.s32.totalorder %s34, 1
      %p220 = por %p218, %p219
      %p221 = scmp.ne.s32.totalorder %s212, %s213
      %p222 = scmp.eq.s32.totalorder %s34, 0
      %p223 = por %p221, %p222
      %p224 = scmp.ne.s32.totalorder %s212, %s213
      %p225 = scmp.eq.s32.totalorder %s35, 1
      %p226 = por %p224, %p225
      %p228 = scmp.ne.s32.totalorder %s213, %s227
      %p229 = scmp.eq.s32.totalorder %s35, 0
      %p230 = por %p228, %p229
      %s232 = sadd.s32 %s231, 1
      %p235 = scmp.eq.s32.totalorder %s29, 1
      %p236 = scmp.ne.s32.totalorder %s231, %s233
      %p237 = scmp.eq.s32.totalorder %s29, 0
      %p238 = por %p236, %p237
      %p239 = scmp.ne.s32.totalorder %s231, %s233
      %p240 = scmp.eq.s32.totalorder %s34, 1
      %p241 = por %p239, %p240
      %p242 = scmp.ne.s32.totalorder %s233, %s234
      %p243 = scmp.eq.s32.totalorder %s34, 0
      %p244 = por %p242, %p243
      %p245 = scmp.ne.s32.totalorder %s233, %s234
      %p246 = scmp.eq.s32.totalorder %s35, 1
      %p247 = por %p245, %p246
      %p249 = scmp.ne.s32.totalorder %s234, %s248
      %p250 = scmp.eq.s32.totalorder %s35, 0
      %p251 = por %p249, %p250
      %s253 = sadd.s32 %s252, 1
      %p256 = scmp.eq.s32.totalorder %s29, 1
      %p257 = scmp.ne.s32.totalorder %s252, %s254
      %p258 = scmp.eq.s32.totalorder %s29, 0
      %p259 = por %p257, %p258
      %p260 = scmp.ne.s32.totalorder %s252, %s254
      %p261 = scmp.eq.s32.totalorder %s34, 1
      %p262 = por %p260, %p261
      %p263 = scmp.ne.s32.totalorder %s254, %s255
      %p264 = scmp.eq.s32.totalorder %s34, 0
      %p265 = por %p263, %p264
      %p266 = scmp.ne.s32.totalorder %s254, %s255
      %p267 = scmp.eq.s32.totalorder %s35, 1
      %p268 = por %p266, %p267
      %p270 = scmp.ne.s32.totalorder %s255, %s269
      %p271 = scmp.eq.s32.totalorder %s35, 0
      %p272 = por %p270, %p271
      %s274 = sadd.s32 %s273, 1
      %p277 = scmp.eq.s32.totalorder %s29, 1
      %p278 = scmp.ne.s32.totalorder %s273, %s275
      %p279 = scmp.eq.s32.totalorder %s29, 0
      %p280 = por %p278, %p279
      %p281 = scmp.ne.s32.totalorder %s273, %s275
      %p282 = scmp.eq.s32.totalorder %s34, 1
      %p283 = por %p281, %p282
      %p284 = scmp.ne.s32.totalorder %s275, %s276
      %p285 = scmp.eq.s32.totalorder %s34, 0
      %p286 = por %p284, %p285
      %p287 = scmp.ne.s32.totalorder %s275, %s276
      %p288 = scmp.eq.s32.totalorder %s35, 1
      %p289 = por %p287, %p288
      %p291 = scmp.ne.s32.totalorder %s276, %s290
      %p292 = scmp.eq.s32.totalorder %s35, 0
      %p293 = por %p291, %p292
      %s295 = sadd.s32 %s294, 1
      %p298 = scmp.eq.s32.totalorder %s29, 1
      %p299 = scmp.ne.s32.totalorder %s294, %s296
      %p300 = scmp.eq.s32.totalorder %s29, 0
      %p301 = por %p299, %p300
      %p302 = scmp.ne.s32.totalorder %s294, %s296
      %p303 = scmp.eq.s32.totalorder %s34, 1
      %p304 = por %p302, %p303
      %p305 = scmp.ne.s32.totalorder %s296, %s297
      %p306 = scmp.eq.s32.totalorder %s34, 0
      %p307 = por %p305, %p306
      %p308 = scmp.ne.s32.totalorder %s296, %s297
      %p309 = scmp.eq.s32.totalorder %s35, 1
      %p310 = por %p308, %p309
      %p312 = scmp.ne.s32.totalorder %s297, %s311
      %p313 = scmp.eq.s32.totalorder %s35, 0
      %p314 = por %p312, %p313
      %s316 = sadd.s32 %s315, 1
      %p319 = scmp.eq.s32.totalorder %s29, 1
      %p320 = scmp.ne.s32.totalorder %s315, %s317
      %p321 = scmp.eq.s32.totalorder %s29, 0
      %p322 = por %p320, %p321
      %p323 = scmp.ne.s32.totalorder %s315, %s317
      %p324 = scmp.eq.s32.totalorder %s34, 1
      %p325 = por %p323, %p324
      %p326 = scmp.ne.s32.totalorder %s317, %s318
      %p327 = scmp.eq.s32.totalorder %s34, 0
      %p328 = por %p326, %p327
      %p329 = scmp.ne.s32.totalorder %s317, %s318
      %p330 = scmp.eq.s32.totalorder %s35, 1
      %p331 = por %p329, %p330
      %p333 = scmp.ne.s32.totalorder %s318, %s332
      %p334 = scmp.eq.s32.totalorder %s35, 0
      %p335 = por %p333, %p334
      %s337 = sadd.s32 %s336, 1
      %p340 = scmp.eq.s32.totalorder %s29, 1
      %p341 = scmp.ne.s32.totalorder %s336, %s338
      %p342 = scmp.eq.s32.totalorder %s29, 0
      %p343 = por %p341, %p342
      %p344 = scmp.ne.s32.totalorder %s336, %s338
      %p345 = scmp.eq.s32.totalorder %s34, 1
      %p346 = por %p344, %p345
      %p347 = scmp.ne.s32.totalorder %s338, %s339
      %p348 = scmp.eq.s32.totalorder %s34, 0
      %p349 = por %p347, %p348
      %p350 = scmp.ne.s32.totalorder %s338, %s339
      %p351 = scmp.eq.s32.totalorder %s35, 1
      %p352 = por %p350, %p351
      %p354 = scmp.ne.s32.totalorder %s339, %s353
      %p355 = scmp.eq.s32.totalorder %s35, 0
      %p356 = por %p354, %p355
      %s357 = ssub.s32 %s29, %s36
      %p358 = scmp.eq.s32.totalorder %s357, 0
      %s360 = sadd.s32 %s359, 1
      %s361 = scalar_select %p358, %s359, %s360
      %p364 = pneg %p358
      %p365 = scmp.eq.s32.totalorder %s29, 1
      %p366 = por %p364, %p365
      %p367 = scmp.ne.s32.totalorder %s359, %s362
      %p368 = scmp.eq.s32.totalorder %s29, 0
      %p369 = por %p367, %p368
      %p370 = scmp.ne.s32.totalorder %s359, %s362
      %p371 = scmp.eq.s32.totalorder %s34, 1
      %p372 = por %p370, %p371
      %p373 = scmp.ne.s32.totalorder %s362, %s363
      %p374 = scmp.eq.s32.totalorder %s34, 0
      %p375 = por %p373, %p374
      %p376 = scmp.ne.s32.totalorder %s362, %s363
      %p377 = scmp.eq.s32.totalorder %s35, 1
      %p378 = por %p376, %p377
      %p380 = scmp.ne.s32.totalorder %s363, %s379
      %p381 = scmp.eq.s32.totalorder %s35, 0
      %p382 = por %p380, %p381
      %p383 = scmp.le.s32.totalorder 1, %s29
      %p384 = scmp.lt.s32.totalorder %s29, 3
      %p385 = pnand %p383, %p384
      %p386 = pneg %p385
      // Predicated region
      $region9: #{tpu_custom_call.1} parent=5 // pred_check
        _
      $region10: #{tpu_custom_call.1} parent=5 // pred_check_branch
        %388 = sbr.rel (%p385) target = $region12
      $region11: #{tpu_custom_call.1} parent=5 // pred_region
        %s389 = ssub.s32 %s29, 1
        // Predicated region
        $region13: #{tpu_custom_call.1} parent=11 // pred_check
          %p390 = pneg %p76
        $region14: #{tpu_custom_call.1} parent=11 // pred_check_branch
          %392 = sbr.rel (%p390) target = $region16
        $region15: #{tpu_custom_call.1} parent=11 // pred_region
          %394 = vsyncadd [#allocation6], 0
          %s395 = sshll.u32 %s1, 4
          %s396 = int_to_ptr.hbm [resolvable:$true] %s395
          %s397 = sshll.u32 [#allocation5], 4
          %s398 = int_to_ptr.vmem [resolvable:$true] %s397
          %403 = dma.hbm_to_vmem [thread:$0]  %s396, 3072, %s398, [#allocation6], 192, 192, 12
        $region16: #{tpu_custom_call.1} parent=11 // pred_fallthru
          _
        // Predicated region
        $region17: #{tpu_custom_call.1} parent=11 // pred_check
          %p404 = pneg %p97
        $region18: #{tpu_custom_call.1} parent=11 // pred_check_branch
          %406 = sbr.rel (%p404) target = $region20
        $region19: #{tpu_custom_call.1} parent=11 // pred_region
          _
        $region20: #{tpu_custom_call.1} parent=11 // pred_fallthru
          _
        // Predicated region
        $region21: #{tpu_custom_call.1} parent=11 // pred_check
          %p407 = pneg %p118
        $region22: #{tpu_custom_call.1} parent=11 // pred_check_branch
          %409 = sbr.rel (%p407) target = $region24
        $region23: #{tpu_custom_call.1} parent=11 // pred_region
          _
        $region24: #{tpu_custom_call.1} parent=11 // pred_fallthru
          _
        // Predicated region
        $region25: #{tpu_custom_call.1} parent=11 // pred_check
          %p410 = pneg %p139
        $region26: #{tpu_custom_call.1} parent=11 // pred_check_branch
          %412 = sbr.rel (%p410) target = $region28
        $region27: #{tpu_custom_call.1} parent=11 // pred_region
          _
        $region28: #{tpu_custom_call.1} parent=11 // pred_fallthru
          _
        // Predicated region
        $region29: #{tpu_custom_call.1} parent=11 // pred_check
          %p413 = pneg %p160
        $region30: #{tpu_custom_call.1} parent=11 // pred_check_branch
          %415 = sbr.rel (%p413) target = $region32
        $region31: #{tpu_custom_call.1} parent=11 // pred_region
          _
        $region32: #{tpu_custom_call.1} parent=11 // pred_fallthru
          _
        // Predicated region
        $region33: #{tpu_custom_call.1} parent=11 // pred_check
          %p416 = pneg %p181
        $region34: #{tpu_custom_call.1} parent=11 // pred_check_branch
          %418 = sbr.rel (%p416) target = $region36
        $region35: #{tpu_custom_call.1} parent=11 // pred_region
          %420 = vsyncadd [#allocation6], 0
          %s422 = sshll.u32 %s6, 4
          %s423 = int_to_ptr.hbm [resolvable:$true] %s422
          %s424 = sshll.u32 [#allocation7], 4
          %s425 = int_to_ptr.vmem [resolvable:$true] %s424
          %427 = dma.hbm_to_vmem [thread:$0]  %s423, 16, %s425, [#allocation6]
        $region36: #{tpu_custom_call.1} parent=11 // pred_fallthru
          _
        // Predicated region
        $region37: #{tpu_custom_call.1} parent=11 // pred_check
          %p428 = pneg %p202
        $region38: #{tpu_custom_call.1} parent=11 // pred_check_branch
          %430 = sbr.rel (%p428) target = $region40
        $region39: #{tpu_custom_call.1} parent=11 // pred_region
          _
        $region40: #{tpu_custom_call.1} parent=11 // pred_fallthru
          _
        // Predicated region
        $region41: #{tpu_custom_call.1} parent=11 // pred_check
          %p431 = pneg %p223
        $region42: #{tpu_custom_call.1} parent=11 // pred_check_branch
          %433 = sbr.rel (%p431) target = $region44
        $region43: #{tpu_custom_call.1} parent=11 // pred_region
          _
        $region44: #{tpu_custom_call.1} parent=11 // pred_fallthru
          _
        // Predicated region
        $region45: #{tpu_custom_call.1} parent=11 // pred_check
          %p434 = pneg %p244
        $region46: #{tpu_custom_call.1} parent=11 // pred_check_branch
          %436 = sbr.rel (%p434) target = $region48
        $region47: #{tpu_custom_call.1} parent=11 // pred_region
          %438 = vsyncadd [#allocation9], 0
          %s439 = sshll.u32 %s9, 4
          %s440 = int_to_ptr.hbm [resolvable:$true] %s439
          %s441 = sshll.u32 [#allocation8], 4
          %s442 = int_to_ptr.vmem [resolvable:$true] %s441
          %447 = dma.hbm_to_vmem [thread:$0]  %s440, 6144, %s442, [#allocation9], 128, 128, 8
        $region48: #{tpu_custom_call.1} parent=11 // pred_fallthru
          _
        // Predicated region
        $region49: #{tpu_custom_call.1} parent=11 // pred_check
          %p448 = pneg %p265
        $region50: #{tpu_custom_call.1} parent=11 // pred_check_branch
          %450 = sbr.rel (%p448) target = $region52
        $region51: #{tpu_custom_call.1} parent=11 // pred_region
          _
        $region52: #{tpu_custom_call.1} parent=11 // pred_fallthru
          _
        // Predicated region
        $region53: #{tpu_custom_call.1} parent=11 // pred_check
          %p451 = pneg %p286
        $region54: #{tpu_custom_call.1} parent=11 // pred_check_branch
          %453 = sbr.rel (%p451) target = $region56
        $region55: #{tpu_custom_call.1} parent=11 // pred_region
          %455 = vsyncadd [#allocation9], 0
          %s456 = sshll.u32 %s11, 4
          %s457 = int_to_ptr.hbm [resolvable:$true] %s456
          %s458 = sshll.u32 [#allocation10], 4
          %s459 = int_to_ptr.vmem [resolvable:$true] %s458
          %464 = dma.hbm_to_vmem [thread:$0]  %s457, 2048, %s459, [#allocation9], 64, 64, 4
        $region56: #{tpu_custom_call.1} parent=11 // pred_fallthru
          _
        // Predicated region
        $region57: #{tpu_custom_call.1} parent=11 // pred_check
          %p465 = pneg %p307
        $region58: #{tpu_custom_call.1} parent=11 // pred_check_branch
          %467 = sbr.rel (%p465) target = $region60
        $region59: #{tpu_custom_call.1} parent=11 // pred_region
          _
        $region60: #{tpu_custom_call.1} parent=11 // pred_fallthru
          _
        // Predicated region
        $region61: #{tpu_custom_call.1} parent=11 // pred_check
          %p468 = pneg %p328
        $region62: #{tpu_custom_call.1} parent=11 // pred_check_branch
          %470 = sbr.rel (%p468) target = $region64
        $region63: #{tpu_custom_call.1} parent=11 // pred_region
          _
        $region64: #{tpu_custom_call.1} parent=11 // pred_fallthru
          _
        // Predicated region
        $region65: #{tpu_custom_call.1} parent=11 // pred_check
          %p471 = pneg %p349
        $region66: #{tpu_custom_call.1} parent=11 // pred_check_branch
          %473 = sbr.rel (%p471) target = $region68
        $region67: #{tpu_custom_call.1} parent=11 // pred_region
          _
        $region68: #{tpu_custom_call.1} parent=11 // pred_fallthru
          _
      $region12: #{tpu_custom_call.1} parent=5 // pred_fallthru
        _
      %p474 = scmp.lt.s32.totalorder %s29, 2
      // Predicated region
      $region69: #{tpu_custom_call.1} parent=5 // pred_check
        %p475 = pneg %p474
      $region70: #{tpu_custom_call.1} parent=5 // pred_check_branch
        %477 = sbr.rel (%p475) target = $region72
      $region71: #{tpu_custom_call.1} parent=5 // pred_region
        // Predicated region
        $region73: #{tpu_custom_call.1} parent=71 // pred_check
          %p478 = pneg %p49
        $region74: #{tpu_custom_call.1} parent=71 // pred_check_branch
          %480 = sbr.rel (%p478) target = $region76
        $region75: #{tpu_custom_call.1} parent=71 // pred_region
          %s481 = sand.u32 %s39, 1
          %s482 = scalar_lea.sflag [#allocation3], %s481
          %s483 = sand.u32 %s39, 1
          %s484 = smul.addr %s483, 24
          %s485 = scalar_lea.vmem [#allocation2], %s484
          %487 = vsyncadd %s482, 0
          %s488 = smul.addr %s29, 8
          %s489 = scalar_lea.hbm %s0, %s488
          %s490 = sshll.u32 %s489, 4
          %s491 = int_to_ptr.hbm [resolvable:$true] %s490
          %s492 = sshll.u32 %s485, 4
          %s493 = int_to_ptr.vmem [resolvable:$true] %s492
          %498 = dma.hbm_to_vmem [thread:$0]  %s491, 384, %s493, %s482, 256, 128, 8
        $region76: #{tpu_custom_call.1} parent=71 // pred_fallthru
          _
      $region72: #{tpu_custom_call.1} parent=5 // pred_fallthru
        _
      %p499 = scmp.le.s32.totalorder 1, %s29
      %p500 = scmp.lt.s32.totalorder %s29, 3
      %p501 = pnand %p499, %p500
      %p502 = pneg %p501
      // Predicated region
      $region77: #{tpu_custom_call.1} parent=5 // pred_check
        _
      $region78: #{tpu_custom_call.1} parent=5 // pred_check_branch
        %504 = sbr.rel (%p501) target = $region80
      $region79: #{tpu_custom_call.1} parent=5 // pred_region
        %s505 = ssub.s32 %s29, 1
        %s506 = sand.u32 %s42, 1
        %s507 = scalar_lea.sflag [#allocation3], %s506
        %s508 = sand.u32 %s42, 1
        %s509 = smul.addr %s508, 24
        %s510 = scalar_lea.vmem [#allocation2], %s509
        // Predicated region
        $region81: #{tpu_custom_call.1} parent=79 // pred_check
          %p511 = pneg %p55
        $region82: #{tpu_custom_call.1} parent=79 // pred_check_branch
          %513 = sbr.rel (%p511) target = $region84
        $region83: #{tpu_custom_call.1} parent=79 // pred_region
          %515 = dma.done %s507, 384
        $region84: #{tpu_custom_call.1} parent=79 // pred_fallthru
          _
        // Predicated region
        $region85: #{tpu_custom_call.1} parent=79 // pred_check
          %p516 = pneg %p76
        $region86: #{tpu_custom_call.1} parent=79 // pred_check_branch
          %518 = sbr.rel (%p516) target = $region88
        $region87: #{tpu_custom_call.1} parent=79 // pred_region
          %520 = dma.done [#allocation6], 3072
        $region88: #{tpu_custom_call.1} parent=79 // pred_fallthru
          _
        // Predicated region
        $region89: #{tpu_custom_call.1} parent=79 // pred_check
          %p521 = pneg %p181
        $region90: #{tpu_custom_call.1} parent=79 // pred_check_branch
          %523 = sbr.rel (%p521) target = $region92
        $region91: #{tpu_custom_call.1} parent=79 // pred_region
          %525 = dma.done [#allocation6], 16
        $region92: #{tpu_custom_call.1} parent=79 // pred_fallthru
          _
        // Predicated region
        $region93: #{tpu_custom_call.1} parent=79 // pred_check
          %p526 = pneg %p244
        $region94: #{tpu_custom_call.1} parent=79 // pred_check_branch
          %528 = sbr.rel (%p526) target = $region96
        $region95: #{tpu_custom_call.1} parent=79 // pred_region
          %530 = dma.done [#allocation9], 6144
        $region96: #{tpu_custom_call.1} parent=79 // pred_fallthru
          _
        // Predicated region
        $region97: #{tpu_custom_call.1} parent=79 // pred_check
          %p531 = pneg %p286
        $region98: #{tpu_custom_call.1} parent=79 // pred_check_branch
          %533 = sbr.rel (%p531) target = $region100
        $region99: #{tpu_custom_call.1} parent=79 // pred_region
          %535 = dma.done [#allocation9], 2048
        $region100: #{tpu_custom_call.1} parent=79 // pred_fallthru
          _
        %s536 = sand.u32 %s42, 1
        %s537 = scalar_lea.sflag [#allocation3], %s536
        %s538 = sand.u32 %s42, 1
        %s539 = smul.addr %s538, 24
        %s540 = scalar_lea.vmem [#allocation2], %s539
        %p541 = pneg %p55
        %p542 = pneg %p52
        %p543 = pneg %p76
        %p544 = pneg %p73
        %p545 = pneg %p97
        %p546 = pneg %p94
        %p547 = pneg %p118
        %p548 = pneg %p115
        %p549 = pneg %p139
        %p550 = pneg %p136
        %p551 = pneg %p160
        %p552 = pneg %p157
        %p553 = pneg %p181
        %p554 = pneg %p178
        %p555 = pneg %p202
        %p556 = pneg %p199
        %p557 = pneg %p223
        %p558 = pneg %p220
        %p559 = pneg %p244
        %p560 = pneg %p241
        %p561 = pneg %p265
        %p562 = pneg %p262
        %p563 = pneg %p286
        %p564 = pneg %p283
        %p565 = pneg %p307
        %p566 = pneg %p304
        %p567 = pneg %p328
        %p568 = pneg %p325
        %p569 = pneg %p349
        %p570 = pneg %p346
        %p571 = pneg %p375
        %p572 = pneg %p372
        %s573 = sand.u32 %s362, 1
        %s574 = scalar_lea.sflag [#allocation4], %s573
        %s575 = sand.u32 %s362, 1
        %s576 = smul.addr %s575, 8
        %s577 = scalar_lea.vmem [#allocation11], %s576
        %v579 = vld [vmem:[%s510] sm:$0xff]
        %v580 = vld [vmem:[%s510 + $0x8] sm:$0xff]
        %v581 = vld [vmem:[%s510 + $0x10] sm:$0xff]
        %v582 = vpack.c.bf16 %v580, %v579
        %v583 = vpack.c.bf16 %v581, %v581
        %v584 = vld [vmem:[#allocation5] sm:$0xff]
        %v585 = vld [vmem:[#allocation5 + $0x8] sm:$0xf]
        %v586 = vld [vmem:[#allocation5 + $0xc] sm:$0xff]
        %v587 = vld [vmem:[#allocation5 + $0x14] sm:$0xf]
        %v588 = vld [vmem:[#allocation5 + $0x18] sm:$0xff]
        %v589 = vld [vmem:[#allocation5 + $0x20] sm:$0xf]
        %v590 = vld [vmem:[#allocation5 + $0x24] sm:$0xff]
        %v591 = vld [vmem:[#allocation5 + $0x2c] sm:$0xf]
        %v592 = vld [vmem:[#allocation5 + $0x30] sm:$0xff]
        %v593 = vld [vmem:[#allocation5 + $0x38] sm:$0xf]
        %v594 = vld [vmem:[#allocation5 + $0x3c] sm:$0xff]
        %v595 = vld [vmem:[#allocation5 + $0x44] sm:$0xf]
        %v596 = vld [vmem:[#allocation5 + $0x48] sm:$0xff]
        %v597 = vld [vmem:[#allocation5 + $0x50] sm:$0xf]
        %v598 = vld [vmem:[#allocation5 + $0x54] sm:$0xff]
        %v599 = vld [vmem:[#allocation5 + $0x5c] sm:$0xf]
        %v600 = vld [vmem:[#allocation5 + $0x60] sm:$0xff]
        %v601 = vld [vmem:[#allocation5 + $0x68] sm:$0xf]
        %v602 = vld [vmem:[#allocation5 + $0x6c] sm:$0xff]
        %v603 = vld [vmem:[#allocation5 + $0x74] sm:$0xf]
        %v604 = vld [vmem:[#allocation5 + $0x78] sm:$0xff]
        %v605 = vld [vmem:[#allocation5 + $0x80] sm:$0xf]
        %v606 = vld [vmem:[#allocation5 + $0x84] sm:$0xff]
        %v607 = vld [vmem:[#allocation5 + $0x8c] sm:$0xf]
        %v608 = vld [vmem:[#allocation5 + $0x90] sm:$0xff]
        %v609 = vld [vmem:[#allocation5 + $0x98] sm:$0xf]
        %v610 = vld [vmem:[#allocation5 + $0x9c] sm:$0xff]
        %v611 = vld [vmem:[#allocation5 + $0xa4] sm:$0xf]
        %v612 = vld [vmem:[#allocation5 + $0xa8] sm:$0xff]
        %v613 = vld [vmem:[#allocation5 + $0xb0] sm:$0xf]
        %v614 = vld [vmem:[#allocation5 + $0xb4] sm:$0xff]
        %v615 = vld [vmem:[#allocation5 + $0xbc] sm:$0xf]
        %v616 = vld [vmem:[%s2] sm:$0x7]
        %v618 = vperm.slane %v616, 0
        %v619 = vperm.slane %v616, 1
        %v620 = vperm.slane %v616, 2
        %v656 = vunpack.c.l.b16 %v584
        %v657 = vunpack.c.h.b16 %v584
        %v658 = vunpack.c.l.b16 %v585
        %v659 = vunpack.c.l.b16 %v586
        %v660 = vunpack.c.h.b16 %v586
        %v661 = vunpack.c.l.b16 %v587
        %v662 = vunpack.c.l.b16 %v588
        %v663 = vunpack.c.h.b16 %v588
        %v664 = vunpack.c.l.b16 %v589
        %v665 = vunpack.c.l.b16 %v590
        %v666 = vunpack.c.h.b16 %v590
        %v667 = vunpack.c.l.b16 %v591
        %v668 = vunpack.c.l.b16 %v592
        %v669 = vunpack.c.h.b16 %v592
        %v670 = vunpack.c.l.b16 %v593
        %v671 = vunpack.c.l.b16 %v594
        %v672 = vunpack.c.h.b16 %v594
        %v673 = vunpack.c.l.b16 %v595
        %v674 = vunpack.c.l.b16 %v596
        %v675 = vunpack.c.h.b16 %v596
        %v676 = vunpack.c.l.b16 %v597
        %v677 = vunpack.c.l.b16 %v598
        %v678 = vunpack.c.h.b16 %v598
        %v679 = vunpack.c.l.b16 %v599
        %v680 = vunpack.c.l.b16 %v600
        %v681 = vunpack.c.h.b16 %v600
        %v682 = vunpack.c.l.b16 %v601
        %v683 = vunpack.c.l.b16 %v602
        %v684 = vunpack.c.h.b16 %v602
        %v685 = vunpack.c.l.b16 %v603
        %v686 = vunpack.c.l.b16 %v604
        %v687 = vunpack.c.h.b16 %v604
        %v688 = vunpack.c.l.b16 %v605
        %v689 = vunpack.c.l.b16 %v606
        %v690 = vunpack.c.h.b16 %v606
        %v691 = vunpack.c.l.b16 %v607
        %v692 = vunpack.c.l.b16 %v608
        %v693 = vunpack.c.h.b16 %v608
        %v694 = vunpack.c.l.b16 %v609
        %v695 = vunpack.c.l.b16 %v610
        %v696 = vunpack.c.h.b16 %v610
        %v697 = vunpack.c.l.b16 %v611
        %v698 = vunpack.c.l.b16 %v612
        %v699 = vunpack.c.h.b16 %v612
        %v700 = vunpack.c.l.b16 %v613
        %v701 = vunpack.c.l.b16 %v614
        %v702 = vunpack.c.h.b16 %v614
        %v703 = vunpack.c.l.b16 %v615
        %v704 = vpack.c.b16 %v659, %v656
        %v705 = vpack.c.b16 %v660, %v657
        %v706 = vpack.c.b16 %v661, %v658
        %v707 = vpack.c.b16 %v665, %v662
        %v708 = vpack.c.b16 %v666, %v663
        %v709 = vpack.c.b16 %v667, %v664
        %v710 = vpack.c.b16 %v671, %v668
        %v711 = vpack.c.b16 %v672, %v669
        %v712 = vpack.c.b16 %v673, %v670
        %v713 = vpack.c.b16 %v677, %v674
        %v714 = vpack.c.b16 %v678, %v675
        %v715 = vpack.c.b16 %v679, %v676
        %v716 = vpack.c.b16 %v683, %v680
        %v717 = vpack.c.b16 %v684, %v681
        %v718 = vpack.c.b16 %v685, %v682
        %v719 = vpack.c.b16 %v689, %v686
        %v720 = vpack.c.b16 %v690, %v687
        %v721 = vpack.c.b16 %v691, %v688
        %v722 = vpack.c.b16 %v695, %v692
        %v723 = vpack.c.b16 %v696, %v693
        %v724 = vpack.c.b16 %v697, %v694
        %v725 = vpack.c.b16 %v701, %v698
        %v726 = vpack.c.b16 %v702, %v699
        %v727 = vpack.c.b16 %v703, %v700
        %752 = vmatpush.bf16.msra.mxu0 %v725
        %753 = vmatpush.bf16.msra.mxu0 %v722
        %754 = vmatpush.bf16.msra.mxu0 %v719
        %755 = vmatpush.bf16.msra.mxu0 %v716
        %756 = vmatpush.bf16.msra.mxu0 %v713
        %757 = vmatpush.bf16.msra.mxu0 %v710
        %758 = vmatpush.bf16.msra.mxu0 %v707
        %759 = vmatpush.bf16.msra.mxu0 %v704
        %760 = vmatmul.bf16.gmra.mxu0 %v582
        %v761 = vpop.f32.mrf.mxu0
        %v762 = vadd.f32 %v618, %v761
        %v763 = vpop.f32.mrf.mxu0
        %v764 = vadd.f32 %v618, %v763
        %765 = vmatmul.bf16.gmra.mxu0 %v583
        %v766 = vpop.f32.mrf.mxu0
        %v767 = vadd.f32 %v618, %v766
        %v768 = vpop.f32.mrf.mxu0
        %769 = vdwg.mxu0
        %770 = vmatpush.bf16.msra.mxu0 %v726
        %771 = vmatpush.bf16.msra.mxu0 %v723
        %772 = vmatpush.bf16.msra.mxu0 %v720
        %773 = vmatpush.bf16.msra.mxu0 %v717
        %774 = vmatpush.bf16.msra.mxu0 %v714
        %775 = vmatpush.bf16.msra.mxu0 %v711
        %776 = vmatpush.bf16.msra.mxu0 %v708
        %777 = vmatpush.bf16.msra.mxu0 %v705
        %778 = vmatmul.bf16.gmra.mxu0 %v582
        %v779 = vpop.f32.mrf.mxu0
        %v780 = vadd.f32 %v619, %v779
        %v781 = vpop.f32.mrf.mxu0
        %v782 = vadd.f32 %v619, %v781
        %783 = vmatmul.bf16.gmra.mxu0 %v583
        %v784 = vpop.f32.mrf.mxu0
        %v785 = vadd.f32 %v619, %v784
        %v786 = vpop.f32.mrf.mxu0
        %787 = vdwg.mxu0
        %788 = vmatpush.bf16.msra.mxu0 %v727
        %789 = vmatpush.bf16.msra.mxu0 %v724
        %790 = vmatpush.bf16.msra.mxu0 %v721
        %791 = vmatpush.bf16.msra.mxu0 %v718
        %792 = vmatpush.bf16.msra.mxu0 %v715
        %793 = vmatpush.bf16.msra.mxu0 %v712
        %794 = vmatpush.bf16.msra.mxu0 %v709
        %795 = vmatpush.bf16.msra.mxu0 %v706
        %796 = vmatmul.bf16.gmra.mxu0 %v582
        %v797 = vpop.f32.mrf.mxu0
        %v798 = vadd.f32 %v620, %v797
        %v799 = vpop.f32.mrf.mxu0
        %v800 = vadd.f32 %v620, %v799
        %801 = vmatmul.bf16.gmra.mxu0 %v583
        %v802 = vpop.f32.mrf.mxu0
        %v803 = vadd.f32 %v620, %v802
        %v804 = vpop.f32.mrf.mxu0
        %805 = vdwg.mxu0
        %v806 = vpack.c.bf16 %v762, %v762
        %v807 = vpack.c.bf16 %v764, %v764
        %v808 = vpack.c.bf16 %v767, %v767
        %v809 = vpack.c.bf16 %v780, %v780
        %v810 = vpack.c.bf16 %v782, %v782
        %v811 = vpack.c.bf16 %v785, %v785
        %v812 = vunpack.c.l.bf16 %v806
        %v813 = vunpack.c.l.bf16 %v807
        %v814 = vunpack.c.l.bf16 %v808
        %v815 = vunpack.c.l.bf16 %v809
        %v816 = vunpack.c.l.bf16 %v810
        %v817 = vunpack.c.l.bf16 %v811
        %v818 = vmul.f32 %v812, %v815
        %v819 = vmul.f32 %v812, %v816
        %v820 = vmul.f32 %v812, %v817
        %v821 = vmul.f32 %v813, %v815
        %v822 = vmul.f32 %v813, %v816
        %v823 = vmul.f32 %v813, %v817
        %v824 = vmul.f32 %v814, %v815
        %v825 = vmul.f32 %v814, %v816
        %v826 = vmul.f32 %v814, %v817
        %v827 = vpack.c.bf16 %v818, %v818
        %v828 = vpack.c.bf16 %v819, %v819
        %v829 = vpack.c.bf16 %v820, %v820
        %v830 = vpack.c.bf16 %v821, %v821
        %v831 = vpack.c.bf16 %v822, %v822
        %v832 = vpack.c.bf16 %v823, %v823
        %v833 = vpack.c.bf16 %v824, %v824
        %v834 = vpack.c.bf16 %v825, %v825
        %v835 = vpack.c.bf16 %v826, %v826
        %v836 = vld [vmem:[%s3] sm:$0xf]
        %v837 = vld [vmem:[%s3 + $0x4] sm:$0xf]
        %v838 = vld [vmem:[%s3 + $0x8] sm:$0xf]
        %v839 = vld [vmem:[%s3 + $0xc] sm:$0xf]
        %v840 = vld [vmem:[%s3 + $0x10] sm:$0xf]
        %v841 = vld [vmem:[%s3 + $0x14] sm:$0xf]
        %v842 = vld [vmem:[%s3 + $0x18] sm:$0xf]
        %v843 = vld [vmem:[%s3 + $0x1c] sm:$0xf]
        %v844 = vld [vmem:[%s3 + $0x20] sm:$0xf]
        %v845 = vld [vmem:[%s3 + $0x24] sm:$0xf]
        %v846 = vld [vmem:[%s3 + $0x28] sm:$0xf]
        %v847 = vld [vmem:[%s3 + $0x2c] sm:$0xf]
        %v848 = vld [vmem:[%s3 + $0x30] sm:$0xf]
        %v849 = vld [vmem:[%s3 + $0x34] sm:$0xf]
        %v850 = vld [vmem:[%s3 + $0x38] sm:$0xf]
        %v851 = vld [vmem:[%s3 + $0x3c] sm:$0xf]
        %v861 = vunpack.c.l.b16 %v827
        %v862 = vunpack.c.l.b16 %v828
        %v863 = vunpack.c.l.b16 %v829
        %v864 = vunpack.c.l.b16 %v830
        %v865 = vunpack.c.l.b16 %v831
        %v866 = vunpack.c.l.b16 %v832
        %v867 = vunpack.c.l.b16 %v833
        %v868 = vunpack.c.l.b16 %v834
        %v869 = vunpack.c.l.b16 %v835
        %v870 = vpack.c.b16 %v862, %v861
        %v871 = vpack.c.b16 %v864, %v863
        %v872 = vpack.c.b16 %v866, %v865
        %v873 = vpack.c.b16 %v868, %v867
        %v874 = vpack.c.b16 %v869, %v869
        %v896 = vunpack.c.l.b16 %v836
        %v897 = vunpack.c.l.b16 %v837
        %v898 = vunpack.c.l.b16 %v838
        %v899 = vunpack.c.l.b16 %v839
        %v900 = vunpack.c.l.b16 %v840
        %v901 = vunpack.c.l.b16 %v841
        %v902 = vunpack.c.l.b16 %v842
        %v903 = vunpack.c.l.b16 %v843
        %v904 = vunpack.c.l.b16 %v844
        %v905 = vunpack.c.l.b16 %v845
        %v906 = vunpack.c.l.b16 %v846
        %v907 = vunpack.c.l.b16 %v847
        %v908 = vunpack.c.l.b16 %v848
        %v909 = vunpack.c.l.b16 %v849
        %v910 = vunpack.c.l.b16 %v850
        %v911 = vunpack.c.l.b16 %v851
        %v912 = vpack.c.b16 %v897, %v896
        %v913 = vpack.c.b16 %v899, %v898
        %v914 = vpack.c.b16 %v901, %v900
        %v915 = vpack.c.b16 %v903, %v902
        %v916 = vpack.c.b16 %v905, %v904
        %v917 = vpack.c.b16 %v907, %v906
        %v918 = vpack.c.b16 %v909, %v908
        %v919 = vpack.c.b16 %v911, %v910
        %928 = vmatpush.bf16.msra.mxu0 %v919
        %929 = vmatpush.bf16.msra.mxu0 %v918
        %930 = vmatpush.bf16.msra.mxu0 %v917
        %931 = vmatpush.bf16.msra.mxu0 %v916
        %932 = vmatpush.bf16.msra.mxu0 %v915
        %933 = vmatpush.bf16.msra.mxu0 %v914
        %934 = vmatpush.bf16.msra.mxu0 %v913
        %935 = vmatpush.bf16.msra.mxu0 %v912
        %936 = vmatmul.bf16.gmra.mxu0 %v870
        %v937 = vpop.f32.mrf.mxu0
        %v938 = vadd.f32 0.0, %v937
        %v939 = vpop.f32.mrf.mxu0
        %v940 = vadd.f32 0.0, %v939
        %941 = vmatmul.bf16.gmra.mxu0 %v871
        %v942 = vpop.f32.mrf.mxu0
        %v943 = vadd.f32 0.0, %v942
        %v944 = vpop.f32.mrf.mxu0
        %v945 = vadd.f32 0.0, %v944
        %946 = vmatmul.bf16.gmra.mxu0 %v872
        %v947 = vpop.f32.mrf.mxu0
        %v948 = vadd.f32 0.0, %v947
        %v949 = vpop.f32.mrf.mxu0
        %v950 = vadd.f32 0.0, %v949
        %951 = vmatmul.bf16.gmra.mxu0 %v873
        %v952 = vpop.f32.mrf.mxu0
        %v953 = vadd.f32 0.0, %v952
        %v954 = vpop.f32.mrf.mxu0
        %v955 = vadd.f32 0.0, %v954
        %956 = vmatmul.bf16.gmra.mxu0 %v874
        %v957 = vpop.f32.mrf.mxu0
        %v958 = vadd.f32 0.0, %v957
        %v959 = vpop.f32.mrf.mxu0
        %960 = vdwg.mxu0
        %vm961 = vcmask 31744
        %v962 = vsel %vm961, %v938, -inf
        %v963 = vsel %vm961, %v940, -inf
        %v964 = vsel %vm961, %v943, -inf
        %v965 = vmax.f32 %v962, %v964
        %v966 = vmax.f32 %v965, %v963
        %v967 = vsel %vm961, %v945, -inf
        %v968 = vsel %vm961, %v948, -inf
        %v969 = vsel %vm961, %v950, -inf
        %v970 = vmax.f32 %v967, %v969
        %v971 = vmax.f32 %v970, %v968
        %v972 = vsel %vm961, %v953, -inf
        %v973 = vsel %vm961, %v955, -inf
        %v974 = vsel %vm961, %v958, -inf
        %v975 = vmax.f32 %v972, %v974
        %v976 = vmax.f32 %v975, %v973
        %v977 = vsub.f32 %v938, %v966
        %v978 = vsub.f32 %v940, %v966
        %v979 = vsub.f32 %v943, %v966
        %v980 = vsub.f32 %v945, %v971
        %v981 = vsub.f32 %v948, %v971
        %v982 = vsub.f32 %v950, %v971
        %v983 = vsub.f32 %v953, %v976
        %v984 = vsub.f32 %v955, %v976
        %v985 = vsub.f32 %v958, %v976
        %v986 = vmul.f32 %v977, 1.442695
        %v987 = vpow.pop %v986
        %v988 = vmul.f32 %v978, 1.442695
        %v989 = vpow.pop %v988
        %v990 = vmul.f32 %v979, 1.442695
        %v991 = vpow.pop %v990
        %v992 = vmul.f32 %v980, 1.442695
        %v993 = vpow.pop %v992
        %v994 = vmul.f32 %v981, 1.442695
        %v995 = vpow.pop %v994
        %v996 = vmul.f32 %v982, 1.442695
        %v997 = vpow.pop %v996
        %v998 = vmul.f32 %v983, 1.442695
        %v999 = vpow.pop %v998
        %v1000 = vmul.f32 %v984, 1.442695
        %v1001 = vpow.pop %v1000
        %v1002 = vmul.f32 %v985, 1.442695
        %v1003 = vpow.pop %v1002
        %v1004 = vsel %vm961, %v987, 0.0
        %v1005 = vsel %vm961, %v989, 0.0
        %v1006 = vadd.f32 %v1004, %v1005
        %v1007 = vsel %vm961, %v991, 0.0
        %v1008 = vadd.f32 %v1006, %v1007
        %v1009 = vsel %vm961, %v993, 0.0
        %v1010 = vsel %vm961, %v995, 0.0
        %v1011 = vadd.f32 %v1009, %v1010
        %v1012 = vsel %vm961, %v997, 0.0
        %v1013 = vadd.f32 %v1011, %v1012
        %v1014 = vsel %vm961, %v999, 0.0
        %v1015 = vsel %vm961, %v1001, 0.0
        %v1016 = vadd.f32 %v1014, %v1015
        %v1017 = vsel %vm961, %v1003, 0.0
        %v1018 = vadd.f32 %v1016, %v1017
        %v1019 = vrcp.pop %v1008
        %v1020 = vrcp.pop %v1013
        %v1021 = vrcp.pop %v1018
        %v1022 = vmul.f32 %v987, %v1019
        %v1023 = vmul.f32 %v989, %v1019
        %v1024 = vmul.f32 %v991, %v1019
        %v1025 = vmul.f32 %v993, %v1020
        %v1026 = vmul.f32 %v995, %v1020
        %v1027 = vmul.f32 %v997, %v1020
        %v1028 = vmul.f32 %v999, %v1021
        %v1029 = vmul.f32 %v1001, %v1021
        %v1030 = vmul.f32 %v1003, %v1021
        %v1031 = vpack.c.bf16 %v1022, %v1022
        %v1032 = vpack.c.bf16 %v1023, %v1023
        %v1033 = vpack.c.bf16 %v1024, %v1024
        %v1034 = vpack.c.bf16 %v1025, %v1025
        %v1035 = vpack.c.bf16 %v1026, %v1026
        %v1036 = vpack.c.bf16 %v1027, %v1027
        %v1037 = vpack.c.bf16 %v1028, %v1028
        %v1038 = vpack.c.bf16 %v1029, %v1029
        %v1039 = vpack.c.bf16 %v1030, %v1030
        %v1040 = vld [vmem:[%s4] sm:$0x3]
        %v1044 = vunpack.c.l.b16 %v1031
        %v1045 = vunpack.c.l.b16 %v1034
        %v1046 = vunpack.c.l.b16 %v1037
        %v1047 = vpack.c.b16 %v1045, %v1044
        %v1048 = vpack.c.b16 %v1046, %v1046
        %v1050 = vsel %vm961, %v1047, 0
        %v1053 = vsel %vm961, %v1048, 0
        %vm1055 = vcmask 1041408
        %v1057 = vsel %vm1055, %v1040, 0
        %1059 = vmatpush.bf16.msra.mxu0 0
        %1060 = vmatpush.bf16.msra.mxu0 0
        %1061 = vmatpush.bf16.msra.mxu0 0
        %1062 = vmatpush.bf16.msra.mxu0 0
        %1063 = vmatpush.bf16.msra.mxu0 0
        %1064 = vmatpush.bf16.msra.mxu0 0
        %1065 = vmatpush.bf16.msra.mxu0 0
        %1066 = vmatpush.bf16.msra.mxu0 %v1057
        %1067 = vmatmul.bf16.gmra.mxu0 %v1050
        %v1068 = vpop.f32.mrf.mxu0
        %v1069 = vadd.f32 0.0, %v1068
        %v1070 = vpop.f32.mrf.mxu0
        %v1071 = vadd.f32 0.0, %v1070
        %1072 = vmatmul.bf16.gmra.mxu0 %v1053
        %v1073 = vpop.f32.mrf.mxu0
        %v1074 = vadd.f32 0.0, %v1073
        %v1075 = vpop.f32.mrf.mxu0
        %1076 = vdwg.mxu0
        %v1077 = vmul.f32 %v1069, %v798
        %v1078 = vmul.f32 %v1071, %v798
        %v1079 = vmul.f32 %v1074, %v798
        %v1080 = vadd.f32 %v1077, 0.0
        %v1081 = vadd.f32 %v1078, 0.0
        %v1082 = vadd.f32 %v1079, 0.0
        %v1086 = vunpack.c.l.b16 %v1032
        %v1087 = vunpack.c.l.b16 %v1035
        %v1088 = vunpack.c.l.b16 %v1038
        %v1089 = vpack.c.b16 %v1087, %v1086
        %v1090 = vpack.c.b16 %v1088, %v1088
        %v1092 = vsel %vm961, %v1089, 0
        %v1095 = vsel %vm961, %v1090, 0
        %1097 = vmatpush.bf16.msra.mxu0 0
        %1098 = vmatpush.bf16.msra.mxu0 0
        %1099 = vmatpush.bf16.msra.mxu0 0
        %1100 = vmatpush.bf16.msra.mxu0 0
        %1101 = vmatpush.bf16.msra.mxu0 0
        %1102 = vmatpush.bf16.msra.mxu0 0
        %1103 = vmatpush.bf16.msra.mxu0 0
        %1104 = vmatpush.bf16.msra.mxu0 %v1057
        %1105 = vmatmul.bf16.gmra.mxu0 %v1092
        %v1106 = vpop.f32.mrf.mxu0
        %v1107 = vadd.f32 0.0, %v1106
        %v1108 = vpop.f32.mrf.mxu0
        %v1109 = vadd.f32 0.0, %v1108
        %1110 = vmatmul.bf16.gmra.mxu0 %v1095
        %v1111 = vpop.f32.mrf.mxu0
        %v1112 = vadd.f32 0.0, %v1111
        %v1113 = vpop.f32.mrf.mxu0
        %1114 = vdwg.mxu0
        %v1115 = vmul.f32 %v1107, %v800
        %v1116 = vmul.f32 %v1109, %v800
        %v1117 = vmul.f32 %v1112, %v800
        %v1118 = vadd.f32 %v1080, %v1115
        %v1119 = vadd.f32 %v1081, %v1116
        %v1120 = vadd.f32 %v1082, %v1117
        %v1124 = vunpack.c.l.b16 %v1033
        %v1125 = vunpack.c.l.b16 %v1036
        %v1126 = vunpack.c.l.b16 %v1039
        %v1127 = vpack.c.b16 %v1125, %v1124
        %v1128 = vpack.c.b16 %v1126, %v1126
        %v1130 = vsel %vm961, %v1127, 0
        %v1133 = vsel %vm961, %v1128, 0
        %1135 = vmatpush.bf16.msra.mxu0 0
        %1136 = vmatpush.bf16.msra.mxu0 0
        %1137 = vmatpush.bf16.msra.mxu0 0
        %1138 = vmatpush.bf16.msra.mxu0 0
        %1139 = vmatpush.bf16.msra.mxu0 0
        %1140 = vmatpush.bf16.msra.mxu0 0
        %1141 = vmatpush.bf16.msra.mxu0 0
        %1142 = vmatpush.bf16.msra.mxu0 %v1057
        %1143 = vmatmul.bf16.gmra.mxu0 %v1130
        %v1144 = vpop.f32.mrf.mxu0
        %v1145 = vadd.f32 0.0, %v1144
        %v1146 = vpop.f32.mrf.mxu0
        %v1147 = vadd.f32 0.0, %v1146
        %1148 = vmatmul.bf16.gmra.mxu0 %v1133
        %v1149 = vpop.f32.mrf.mxu0
        %v1150 = vadd.f32 0.0, %v1149
        %v1151 = vpop.f32.mrf.mxu0
        %1152 = vdwg.mxu0
        %v1153 = vmul.f32 %v1145, %v803
        %v1154 = vmul.f32 %v1147, %v803
        %v1155 = vmul.f32 %v1150, %v803
        %v1156 = vadd.f32 %v1118, %v1153
        %v1157 = vadd.f32 %v1119, %v1154
        %v1158 = vadd.f32 %v1120, %v1155
        %v1159 = vpack.c.bf16 %v1157, %v1156
        %v1160 = vpack.c.bf16 %v1158, %v1158
        %v1161 = vld [vmem:[%s5] sm:$0xf]
        %v1162 = vld [vmem:[%s5 + $0x4] sm:$0xf]
        %v1163 = vld [vmem:[%s5 + $0x8] sm:$0xf]
        %v1164 = vld [vmem:[%s5 + $0xc] sm:$0xf]
        %v1165 = vld [vmem:[%s5 + $0x10] sm:$0xf]
        %v1166 = vld [vmem:[%s5 + $0x14] sm:$0xf]
        %v1167 = vld [vmem:[%s5 + $0x18] sm:$0xf]
        %v1168 = vld [vmem:[%s5 + $0x1c] sm:$0xf]
        %v1169 = vld [vmem:[%s5 + $0x20] sm:$0xf]
        %v1170 = vld [vmem:[%s5 + $0x24] sm:$0xf]
        %v1171 = vld [vmem:[%s5 + $0x28] sm:$0xf]
        %v1172 = vld [vmem:[%s5 + $0x2c] sm:$0xf]
        %v1173 = vld [vmem:[%s5 + $0x30] sm:$0xf]
        %v1174 = vld [vmem:[%s5 + $0x34] sm:$0xf]
        %v1175 = vld [vmem:[%s5 + $0x38] sm:$0xf]
        %v1176 = vld [vmem:[%s5 + $0x3c] sm:$0xf]
        %v1177 = vld [vmem:[#allocation7] sm:$0x1]
        %v1179 = vperm.slane %v1177, 0
        %v1197 = vunpack.c.l.b16 %v1161
        %v1198 = vunpack.c.l.b16 %v1162
        %v1199 = vunpack.c.l.b16 %v1163
        %v1200 = vunpack.c.l.b16 %v1164
        %v1201 = vunpack.c.l.b16 %v1165
        %v1202 = vunpack.c.l.b16 %v1166
        %v1203 = vunpack.c.l.b16 %v1167
        %v1204 = vunpack.c.l.b16 %v1168
        %v1205 = vunpack.c.l.b16 %v1169
        %v1206 = vunpack.c.l.b16 %v1170
        %v1207 = vunpack.c.l.b16 %v1171
        %v1208 = vunpack.c.l.b16 %v1172
        %v1209 = vunpack.c.l.b16 %v1173
        %v1210 = vunpack.c.l.b16 %v1174
        %v1211 = vunpack.c.l.b16 %v1175
        %v1212 = vunpack.c.l.b16 %v1176
        %v1213 = vpack.c.b16 %v1198, %v1197
        %v1214 = vpack.c.b16 %v1200, %v1199
        %v1215 = vpack.c.b16 %v1202, %v1201
        %v1216 = vpack.c.b16 %v1204, %v1203
        %v1217 = vpack.c.b16 %v1206, %v1205
        %v1218 = vpack.c.b16 %v1208, %v1207
        %v1219 = vpack.c.b16 %v1210, %v1209
        %v1220 = vpack.c.b16 %v1212, %v1211
        %1229 = vmatpush.bf16.msra.mxu0 %v1220
        %1230 = vmatpush.bf16.msra.mxu0 %v1219
        %1231 = vmatpush.bf16.msra.mxu0 %v1218
        %1232 = vmatpush.bf16.msra.mxu0 %v1217
        %1233 = vmatpush.bf16.msra.mxu0 %v1216
        %1234 = vmatpush.bf16.msra.mxu0 %v1215
        %1235 = vmatpush.bf16.msra.mxu0 %v1214
        %1236 = vmatpush.bf16.msra.mxu0 %v1213
        %1237 = vmatmul.bf16.gmra.mxu0 %v1159
        %v1238 = vpop.f32.mrf.mxu0
        %v1239 = vadd.f32 %v1179, %v1238
        %v1240 = vpop.f32.mrf.mxu0
        %v1241 = vadd.f32 %v1179, %v1240
        %1242 = vmatmul.bf16.gmra.mxu0 %v1160
        %v1243 = vpop.f32.mrf.mxu0
        %v1244 = vadd.f32 %v1179, %v1243
        %v1245 = vpop.f32.mrf.mxu0
        %1246 = vdwg.mxu0
        %v1247 = vadd.f32 %v579, %v1239
        %v1248 = vadd.f32 %v580, %v1241
        %v1249 = vadd.f32 %v581, %v1244
        %v1250 = vld [vmem:[%s7] sm:$0x1]
        %v1251 = vld [vmem:[%s8] sm:$0x1]
        %1252 = vadd.xlane.f32.xlu0 %v1247
        %v1253 = vpop.xlane.xlu0 %1252
        %1254 = vadd.xlane.f32.xlu0 %v1248
        %v1255 = vpop.xlane.xlu0 %1254
        %1256 = vadd.xlane.f32.xlu0 %v1249
        %v1257 = vpop.xlane.xlu0 %1256
        %v1258 = vrcp.pop 128.0
        %v1259 = vmul.f32 128.0, %v1258
        %v1260 = vsub.f32 1.0, %v1259
        %v1261 = vmul.f32 %v1258, %v1260
        %v1262 = vadd.f32 %v1258, %v1261
        %vm1263 = vweird.f32 %v1258
        %v1264 = vsel %vm1263, %v1258, %v1262
        %v1265 = vmul.f32 %v1253, %v1264
        %v1266 = vmul.f32 %v1255, %v1264
        %v1267 = vmul.f32 %v1257, %v1264
        %v1268 = vsub.f32 %v1247, %v1265
        %v1269 = vsub.f32 %v1248, %v1266
        %v1270 = vsub.f32 %v1249, %v1267
        %v1271 = vmul.f32 %v1268, %v1268
        %v1272 = vmul.f32 %v1269, %v1269
        %v1273 = vmul.f32 %v1270, %v1270
        %1274 = vadd.xlane.f32.xlu0 %v1271
        %v1275 = vpop.xlane.xlu0 %1274
        %1276 = vadd.xlane.f32.xlu0 %v1272
        %v1277 = vpop.xlane.xlu0 %1276
        %1278 = vadd.xlane.f32.xlu0 %v1273
        %v1279 = vpop.xlane.xlu0 %1278
        %v1280 = vmul.f32 %v1275, %v1264
        %v1281 = vmul.f32 %v1277, %v1264
        %v1282 = vmul.f32 %v1279, %v1264
        %v1283 = vadd.f32 %v1280, 1e-05
        %v1284 = vadd.f32 %v1281, 1e-05
        %v1285 = vadd.f32 %v1282, 1e-05
        %v1286 = vrsqrt.pop %v1283
        %v1287 = vmul.f32 %v1286, %v1283
        %v1288 = vmul.f32 %v1287, %v1286
        %v1289 = vmul.f32 0.5, %v1288
        %v1290 = vsub.f32 1.5, %v1289
        %v1291 = vmul.f32 %v1286, %v1290
        %vm1292 = vweird.f32 %v1283
        %vm1293 = vweird.f32 %v1286
        %vm1294 = vmor %vm1292, %vm1293
        %v1295 = vsel %vm1294, %v1286, %v1291
        %v1296 = vrsqrt.pop %v1284
        %v1297 = vmul.f32 %v1296, %v1284
        %v1298 = vmul.f32 %v1297, %v1296
        %v1299 = vmul.f32 0.5, %v1298
        %v1300 = vsub.f32 1.5, %v1299
        %v1301 = vmul.f32 %v1296, %v1300
        %vm1302 = vweird.f32 %v1284
        %vm1303 = vweird.f32 %v1296
        %vm1304 = vmor %vm1302, %vm1303
        %v1305 = vsel %vm1304, %v1296, %v1301
        %v1306 = vrsqrt.pop %v1285
        %v1307 = vmul.f32 %v1306, %v1285
        %v1308 = vmul.f32 %v1307, %v1306
        %v1309 = vmul.f32 0.5, %v1308
        %v1310 = vsub.f32 1.5, %v1309
        %v1311 = vmul.f32 %v1306, %v1310
        %vm1312 = vweird.f32 %v1285
        %vm1313 = vweird.f32 %v1306
        %vm1314 = vmor %vm1312, %vm1313
        %v1315 = vsel %vm1314, %v1306, %v1311
        %v1316 = vmul.f32 %v1268, %v1295
        %v1317 = vmul.f32 %v1269, %v1305
        %v1318 = vmul.f32 %v1270, %v1315
        %v1320 = vperm.slane %v1250, 0
        %v1322 = vmul.f32 %v1316, %v1320
        %v1323 = vmul.f32 %v1317, %v1320
        %v1324 = vmul.f32 %v1318, %v1320
        %v1326 = vperm.slane %v1251, 0
        %v1328 = vadd.f32 %v1322, %v1326
        %v1329 = vadd.f32 %v1323, %v1326
        %v1330 = vadd.f32 %v1324, %v1326
        %v1331 = vpack.c.bf16 %v1328, %v1328
        %v1332 = vpack.c.bf16 %v1329, %v1329
        %v1333 = vpack.c.bf16 %v1330, %v1330
        %v1334 = vld [vmem:[#allocation8] sm:$0xff]
        %v1335 = vld [vmem:[#allocation8 + $0x8] sm:$0xff]
        %v1336 = vld [vmem:[#allocation8 + $0x10] sm:$0xff]
        %v1337 = vld [vmem:[#allocation8 + $0x18] sm:$0xff]
        %v1338 = vld [vmem:[#allocation8 + $0x20] sm:$0xff]
        %v1339 = vld [vmem:[#allocation8 + $0x28] sm:$0xff]
        %v1340 = vld [vmem:[#allocation8 + $0x30] sm:$0xff]
        %v1341 = vld [vmem:[#allocation8 + $0x38] sm:$0xff]
        %v1342 = vld [vmem:[#allocation8 + $0x40] sm:$0xff]
        %v1343 = vld [vmem:[#allocation8 + $0x48] sm:$0xff]
        %v1344 = vld [vmem:[#allocation8 + $0x50] sm:$0xff]
        %v1345 = vld [vmem:[#allocation8 + $0x58] sm:$0xff]
        %v1346 = vld [vmem:[#allocation8 + $0x60] sm:$0xff]
        %v1347 = vld [vmem:[#allocation8 + $0x68] sm:$0xff]
        %v1348 = vld [vmem:[#allocation8 + $0x70] sm:$0xff]
        %v1349 = vld [vmem:[#allocation8 + $0x78] sm:$0xff]
        %s1350 = scalar_lea.vmem [#allocation8], 128
        %v1351 = vld [vmem:[%s1350] sm:$0xff]
        %v1352 = vld [vmem:[%s1350 + $0x8] sm:$0xff]
        %v1353 = vld [vmem:[%s1350 + $0x10] sm:$0xff]
        %v1354 = vld [vmem:[%s1350 + $0x18] sm:$0xff]
        %v1355 = vld [vmem:[%s1350 + $0x20] sm:$0xff]
        %v1356 = vld [vmem:[%s1350 + $0x28] sm:$0xff]
        %v1357 = vld [vmem:[%s1350 + $0x30] sm:$0xff]
        %v1358 = vld [vmem:[%s1350 + $0x38] sm:$0xff]
        %v1359 = vld [vmem:[%s1350 + $0x40] sm:$0xff]
        %v1360 = vld [vmem:[%s1350 + $0x48] sm:$0xff]
        %v1361 = vld [vmem:[%s1350 + $0x50] sm:$0xff]
        %v1362 = vld [vmem:[%s1350 + $0x58] sm:$0xff]
        %v1363 = vld [vmem:[%s1350 + $0x60] sm:$0xff]
        %v1364 = vld [vmem:[%s1350 + $0x68] sm:$0xff]
        %v1365 = vld [vmem:[%s1350 + $0x70] sm:$0xff]
        %v1366 = vld [vmem:[%s1350 + $0x78] sm:$0xff]
        %v1383 = vunpack.c.l.b16 %v1351
        %v1384 = vunpack.c.h.b16 %v1351
        %v1385 = vunpack.c.l.b16 %v1352
        %v1386 = vunpack.c.h.b16 %v1352
        %v1387 = vunpack.c.l.b16 %v1353
        %v1388 = vunpack.c.h.b16 %v1353
        %v1389 = vunpack.c.l.b16 %v1354
        %v1390 = vunpack.c.h.b16 %v1354
        %v1391 = vunpack.c.l.b16 %v1355
        %v1392 = vunpack.c.h.b16 %v1355
        %v1393 = vunpack.c.l.b16 %v1356
        %v1394 = vunpack.c.h.b16 %v1356
        %v1395 = vunpack.c.l.b16 %v1357
        %v1396 = vunpack.c.h.b16 %v1357
        %v1397 = vunpack.c.l.b16 %v1358
        %v1398 = vunpack.c.h.b16 %v1358
        %v1399 = vunpack.c.l.b16 %v1359
        %v1400 = vunpack.c.h.b16 %v1359
        %v1401 = vunpack.c.l.b16 %v1360
        %v1402 = vunpack.c.h.b16 %v1360
        %v1403 = vunpack.c.l.b16 %v1361
        %v1404 = vunpack.c.h.b16 %v1361
        %v1405 = vunpack.c.l.b16 %v1362
        %v1406 = vunpack.c.h.b16 %v1362
        %v1407 = vunpack.c.l.b16 %v1363
        %v1408 = vunpack.c.h.b16 %v1363
        %v1409 = vunpack.c.l.b16 %v1364
        %v1410 = vunpack.c.h.b16 %v1364
        %v1411 = vunpack.c.l.b16 %v1365
        %v1412 = vunpack.c.h.b16 %v1365
        %v1413 = vunpack.c.l.b16 %v1366
        %v1414 = vunpack.c.h.b16 %v1366
        %v1415 = vpack.c.b16 %v1385, %v1383
        %v1416 = vpack.c.b16 %v1386, %v1384
        %v1417 = vpack.c.b16 %v1389, %v1387
        %v1418 = vpack.c.b16 %v1390, %v1388
        %v1419 = vpack.c.b16 %v1393, %v1391
        %v1420 = vpack.c.b16 %v1394, %v1392
        %v1421 = vpack.c.b16 %v1397, %v1395
        %v1422 = vpack.c.b16 %v1398, %v1396
        %v1423 = vpack.c.b16 %v1401, %v1399
        %v1424 = vpack.c.b16 %v1402, %v1400
        %v1425 = vpack.c.b16 %v1405, %v1403
        %v1426 = vpack.c.b16 %v1406, %v1404
        %v1427 = vpack.c.b16 %v1409, %v1407
        %v1428 = vpack.c.b16 %v1410, %v1408
        %v1429 = vpack.c.b16 %v1413, %v1411
        %v1430 = vpack.c.b16 %v1414, %v1412
        %1447 = vmatpush.bf16.msra.mxu0 %v1429
        %1448 = vmatpush.bf16.msra.mxu0 %v1427
        %1449 = vmatpush.bf16.msra.mxu0 %v1425
        %1450 = vmatpush.bf16.msra.mxu0 %v1423
        %1451 = vmatpush.bf16.msra.mxu0 %v1421
        %1452 = vmatpush.bf16.msra.mxu0 %v1419
        %1453 = vmatpush.bf16.msra.mxu0 %v1417
        %1454 = vmatpush.bf16.msra.mxu0 %v1415
        %1455 = vmatmul.bf16.gmra.mxu0 %v1332
        %v1456 = vpop.f32.mrf.mxu0
        %v1457 = vadd.f32 0.0, %v1456
        %v1458 = vpop.f32.mrf.mxu0
        %1459 = vdwg.mxu0
        %1460 = vmatpush.bf16.msra.mxu0 %v1430
        %1461 = vmatpush.bf16.msra.mxu0 %v1428
        %1462 = vmatpush.bf16.msra.mxu0 %v1426
        %1463 = vmatpush.bf16.msra.mxu0 %v1424
        %1464 = vmatpush.bf16.msra.mxu0 %v1422
        %1465 = vmatpush.bf16.msra.mxu0 %v1420
        %1466 = vmatpush.bf16.msra.mxu0 %v1418
        %1467 = vmatpush.bf16.msra.mxu0 %v1416
        %1468 = vmatmul.bf16.gmra.mxu0 %v1332
        %v1469 = vpop.f32.mrf.mxu0
        %v1470 = vadd.f32 0.0, %v1469
        %v1471 = vpop.f32.mrf.mxu0
        %1472 = vdwg.mxu0
        %v1489 = vunpack.c.l.b16 %v1334
        %v1490 = vunpack.c.h.b16 %v1334
        %v1491 = vunpack.c.l.b16 %v1335
        %v1492 = vunpack.c.h.b16 %v1335
        %v1493 = vunpack.c.l.b16 %v1336
        %v1494 = vunpack.c.h.b16 %v1336
        %v1495 = vunpack.c.l.b16 %v1337
        %v1496 = vunpack.c.h.b16 %v1337
        %v1497 = vunpack.c.l.b16 %v1338
        %v1498 = vunpack.c.h.b16 %v1338
        %v1499 = vunpack.c.l.b16 %v1339
        %v1500 = vunpack.c.h.b16 %v1339
        %v1501 = vunpack.c.l.b16 %v1340
        %v1502 = vunpack.c.h.b16 %v1340
        %v1503 = vunpack.c.l.b16 %v1341
        %v1504 = vunpack.c.h.b16 %v1341
        %v1505 = vunpack.c.l.b16 %v1342
        %v1506 = vunpack.c.h.b16 %v1342
        %v1507 = vunpack.c.l.b16 %v1343
        %v1508 = vunpack.c.h.b16 %v1343
        %v1509 = vunpack.c.l.b16 %v1344
        %v1510 = vunpack.c.h.b16 %v1344
        %v1511 = vunpack.c.l.b16 %v1345
        %v1512 = vunpack.c.h.b16 %v1345
        %v1513 = vunpack.c.l.b16 %v1346
        %v1514 = vunpack.c.h.b16 %v1346
        %v1515 = vunpack.c.l.b16 %v1347
        %v1516 = vunpack.c.h.b16 %v1347
        %v1517 = vunpack.c.l.b16 %v1348
        %v1518 = vunpack.c.h.b16 %v1348
        %v1519 = vunpack.c.l.b16 %v1349
        %v1520 = vunpack.c.h.b16 %v1349
        %v1521 = vpack.c.b16 %v1491, %v1489
        %v1522 = vpack.c.b16 %v1492, %v1490
        %v1523 = vpack.c.b16 %v1495, %v1493
        %v1524 = vpack.c.b16 %v1496, %v1494
        %v1525 = vpack.c.b16 %v1499, %v1497
        %v1526 = vpack.c.b16 %v1500, %v1498
        %v1527 = vpack.c.b16 %v1503, %v1501
        %v1528 = vpack.c.b16 %v1504, %v1502
        %v1529 = vpack.c.b16 %v1507, %v1505
        %v1530 = vpack.c.b16 %v1508, %v1506
        %v1531 = vpack.c.b16 %v1511, %v1509
        %v1532 = vpack.c.b16 %v1512, %v1510
        %v1533 = vpack.c.b16 %v1515, %v1513
        %v1534 = vpack.c.b16 %v1516, %v1514
        %v1535 = vpack.c.b16 %v1519, %v1517
        %v1536 = vpack.c.b16 %v1520, %v1518
        %1553 = vmatpush.bf16.msra.mxu0 %v1535
        %1554 = vmatpush.bf16.msra.mxu0 %v1533
        %1555 = vmatpush.bf16.msra.mxu0 %v1531
        %1556 = vmatpush.bf16.msra.mxu0 %v1529
        %1557 = vmatpush.bf16.msra.mxu0 %v1527
        %1558 = vmatpush.bf16.msra.mxu0 %v1525
        %1559 = vmatpush.bf16.msra.mxu0 %v1523
        %1560 = vmatpush.bf16.msra.mxu0 %v1521
        %1561 = vmatmul.bf16.gmra.mxu0 %v1331
        %v1562 = vpop.f32.mrf.mxu0
        %v1563 = vadd.f32 %v1457, %v1562
        %v1564 = vpop.f32.mrf.mxu0
        %1565 = vdwg.mxu0
        %1566 = vmatpush.bf16.msra.mxu0 %v1536
        %1567 = vmatpush.bf16.msra.mxu0 %v1534
        %1568 = vmatpush.bf16.msra.mxu0 %v1532
        %1569 = vmatpush.bf16.msra.mxu0 %v1530
        %1570 = vmatpush.bf16.msra.mxu0 %v1528
        %1571 = vmatpush.bf16.msra.mxu0 %v1526
        %1572 = vmatpush.bf16.msra.mxu0 %v1524
        %1573 = vmatpush.bf16.msra.mxu0 %v1522
        %1574 = vmatmul.bf16.gmra.mxu0 %v1331
        %v1575 = vpop.f32.mrf.mxu0
        %v1576 = vadd.f32 %v1470, %v1575
        %v1577 = vpop.f32.mrf.mxu0
        %1578 = vdwg.mxu0
        %s1579 = scalar_lea.vmem [#allocation8], 256
        %v1580 = vld [vmem:[%s1579] sm:$0xff]
        %v1581 = vld [vmem:[%s1579 + $0x8] sm:$0xff]
        %v1582 = vld [vmem:[%s1579 + $0x10] sm:$0xff]
        %v1583 = vld [vmem:[%s1579 + $0x18] sm:$0xff]
        %v1584 = vld [vmem:[%s1579 + $0x20] sm:$0xff]
        %v1585 = vld [vmem:[%s1579 + $0x28] sm:$0xff]
        %v1586 = vld [vmem:[%s1579 + $0x30] sm:$0xff]
        %v1587 = vld [vmem:[%s1579 + $0x38] sm:$0xff]
        %v1588 = vld [vmem:[%s1579 + $0x40] sm:$0xff]
        %v1589 = vld [vmem:[%s1579 + $0x48] sm:$0xff]
        %v1590 = vld [vmem:[%s1579 + $0x50] sm:$0xff]
        %v1591 = vld [vmem:[%s1579 + $0x58] sm:$0xff]
        %v1592 = vld [vmem:[%s1579 + $0x60] sm:$0xff]
        %v1593 = vld [vmem:[%s1579 + $0x68] sm:$0xff]
        %v1594 = vld [vmem:[%s1579 + $0x70] sm:$0xff]
        %v1595 = vld [vmem:[%s1579 + $0x78] sm:$0xff]
        %v1612 = vunpack.c.l.b16 %v1580
        %v1613 = vunpack.c.h.b16 %v1580
        %v1614 = vunpack.c.l.b16 %v1581
        %v1615 = vunpack.c.h.b16 %v1581
        %v1616 = vunpack.c.l.b16 %v1582
        %v1617 = vunpack.c.h.b16 %v1582
        %v1618 = vunpack.c.l.b16 %v1583
        %v1619 = vunpack.c.h.b16 %v1583
        %v1620 = vunpack.c.l.b16 %v1584
        %v1621 = vunpack.c.h.b16 %v1584
        %v1622 = vunpack.c.l.b16 %v1585
        %v1623 = vunpack.c.h.b16 %v1585
        %v1624 = vunpack.c.l.b16 %v1586
        %v1625 = vunpack.c.h.b16 %v1586
        %v1626 = vunpack.c.l.b16 %v1587
        %v1627 = vunpack.c.h.b16 %v1587
        %v1628 = vunpack.c.l.b16 %v1588
        %v1629 = vunpack.c.h.b16 %v1588
        %v1630 = vunpack.c.l.b16 %v1589
        %v1631 = vunpack.c.h.b16 %v1589
        %v1632 = vunpack.c.l.b16 %v1590
        %v1633 = vunpack.c.h.b16 %v1590
        %v1634 = vunpack.c.l.b16 %v1591
        %v1635 = vunpack.c.h.b16 %v1591
        %v1636 = vunpack.c.l.b16 %v1592
        %v1637 = vunpack.c.h.b16 %v1592
        %v1638 = vunpack.c.l.b16 %v1593
        %v1639 = vunpack.c.h.b16 %v1593
        %v1640 = vunpack.c.l.b16 %v1594
        %v1641 = vunpack.c.h.b16 %v1594
        %v1642 = vunpack.c.l.b16 %v1595
        %v1643 = vunpack.c.h.b16 %v1595
        %v1644 = vpack.c.b16 %v1614, %v1612
        %v1645 = vpack.c.b16 %v1615, %v1613
        %v1646 = vpack.c.b16 %v1618, %v1616
        %v1647 = vpack.c.b16 %v1619, %v1617
        %v1648 = vpack.c.b16 %v1622, %v1620
        %v1649 = vpack.c.b16 %v1623, %v1621
        %v1650 = vpack.c.b16 %v1626, %v1624
        %v1651 = vpack.c.b16 %v1627, %v1625
        %v1652 = vpack.c.b16 %v1630, %v1628
        %v1653 = vpack.c.b16 %v1631, %v1629
        %v1654 = vpack.c.b16 %v1634, %v1632
        %v1655 = vpack.c.b16 %v1635, %v1633
        %v1656 = vpack.c.b16 %v1638, %v1636
        %v1657 = vpack.c.b16 %v1639, %v1637
        %v1658 = vpack.c.b16 %v1642, %v1640
        %v1659 = vpack.c.b16 %v1643, %v1641
        %1676 = vmatpush.bf16.msra.mxu0 %v1658
        %1677 = vmatpush.bf16.msra.mxu0 %v1656
        %1678 = vmatpush.bf16.msra.mxu0 %v1654
        %1679 = vmatpush.bf16.msra.mxu0 %v1652
        %1680 = vmatpush.bf16.msra.mxu0 %v1650
        %1681 = vmatpush.bf16.msra.mxu0 %v1648
        %1682 = vmatpush.bf16.msra.mxu0 %v1646
        %1683 = vmatpush.bf16.msra.mxu0 %v1644
        %1684 = vmatmul.bf16.gmra.mxu0 %v1333
        %v1685 = vpop.f32.mrf.mxu0
        %v1686 = vadd.f32 0.0, %v1685
        %v1687 = vpop.f32.mrf.mxu0
        %1688 = vdwg.mxu0
        %1689 = vmatpush.bf16.msra.mxu0 %v1659
        %1690 = vmatpush.bf16.msra.mxu0 %v1657
        %1691 = vmatpush.bf16.msra.mxu0 %v1655
        %1692 = vmatpush.bf16.msra.mxu0 %v1653
        %1693 = vmatpush.bf16.msra.mxu0 %v1651
        %1694 = vmatpush.bf16.msra.mxu0 %v1649
        %1695 = vmatpush.bf16.msra.mxu0 %v1647
        %1696 = vmatpush.bf16.msra.mxu0 %v1645
        %1697 = vmatmul.bf16.gmra.mxu0 %v1333
        %v1698 = vpop.f32.mrf.mxu0
        %v1699 = vadd.f32 0.0, %v1698
        %v1700 = vpop.f32.mrf.mxu0
        %1701 = vdwg.mxu0
        %v1702 = vadd.f32 %v1563, %v1686
        %v1703 = vadd.f32 %v1576, %v1699
        %v1704 = vld [vmem:[%s10] sm:$0x3]
        %v1706 = vperm.slane %v1704, 0
        %v1707 = vperm.slane %v1704, 1
        %v1710 = vadd.f32 %v1702, %v1706
        %v1711 = vadd.f32 %v1703, %v1707
        %v1712 = vmax.f32 %v1710, 0.0
        %v1713 = vmax.f32 %v1711, 0.0
        %v1714 = vpack.c.bf16 %v1712, %v1712
        %v1715 = vpack.c.bf16 %v1713, %v1713
        %v1716 = vld [vmem:[#allocation10] sm:$0xf]
        %v1717 = vld [vmem:[#allocation10 + $0x4] sm:$0xf]
        %v1718 = vld [vmem:[#allocation10 + $0x8] sm:$0xf]
        %v1719 = vld [vmem:[#allocation10 + $0xc] sm:$0xf]
        %v1720 = vld [vmem:[#allocation10 + $0x10] sm:$0xf]
        %v1721 = vld [vmem:[#allocation10 + $0x14] sm:$0xf]
        %v1722 = vld [vmem:[#allocation10 + $0x18] sm:$0xf]
        %v1723 = vld [vmem:[#allocation10 + $0x1c] sm:$0xf]
        %v1724 = vld [vmem:[#allocation10 + $0x20] sm:$0xf]
        %v1725 = vld [vmem:[#allocation10 + $0x24] sm:$0xf]
        %v1726 = vld [vmem:[#allocation10 + $0x28] sm:$0xf]
        %v1727 = vld [vmem:[#allocation10 + $0x2c] sm:$0xf]
        %v1728 = vld [vmem:[#allocation10 + $0x30] sm:$0xf]
        %v1729 = vld [vmem:[#allocation10 + $0x34] sm:$0xf]
        %v1730 = vld [vmem:[#allocation10 + $0x38] sm:$0xf]
        %v1731 = vld [vmem:[#allocation10 + $0x3c] sm:$0xf]
        %v1732 = vld [vmem:[#allocation10 + $0x40] sm:$0xf]
        %v1733 = vld [vmem:[#allocation10 + $0x44] sm:$0xf]
        %v1734 = vld [vmem:[#allocation10 + $0x48] sm:$0xf]
        %v1735 = vld [vmem:[#allocation10 + $0x4c] sm:$0xf]
        %v1736 = vld [vmem:[#allocation10 + $0x50] sm:$0xf]
        %v1737 = vld [vmem:[#allocation10 + $0x54] sm:$0xf]
        %v1738 = vld [vmem:[#allocation10 + $0x58] sm:$0xf]
        %v1739 = vld [vmem:[#allocation10 + $0x5c] sm:$0xf]
        %v1740 = vld [vmem:[#allocation10 + $0x60] sm:$0xf]
        %v1741 = vld [vmem:[#allocation10 + $0x64] sm:$0xf]
        %v1742 = vld [vmem:[#allocation10 + $0x68] sm:$0xf]
        %v1743 = vld [vmem:[#allocation10 + $0x6c] sm:$0xf]
        %v1744 = vld [vmem:[#allocation10 + $0x70] sm:$0xf]
        %v1745 = vld [vmem:[#allocation10 + $0x74] sm:$0xf]
        %v1746 = vld [vmem:[#allocation10 + $0x78] sm:$0xf]
        %v1747 = vld [vmem:[#allocation10 + $0x7c] sm:$0xf]
        %v1748 = vld [vmem:[%s12] sm:$0x1]
        %v1750 = vperm.slane %v1748, 0
        %v1784 = vunpack.c.l.b16 %v1716
        %v1785 = vunpack.c.l.b16 %v1717
        %v1786 = vunpack.c.l.b16 %v1718
        %v1787 = vunpack.c.l.b16 %v1719
        %v1788 = vunpack.c.l.b16 %v1720
        %v1789 = vunpack.c.l.b16 %v1721
        %v1790 = vunpack.c.l.b16 %v1722
        %v1791 = vunpack.c.l.b16 %v1723
        %v1792 = vunpack.c.l.b16 %v1724
        %v1793 = vunpack.c.l.b16 %v1725
        %v1794 = vunpack.c.l.b16 %v1726
        %v1795 = vunpack.c.l.b16 %v1727
        %v1796 = vunpack.c.l.b16 %v1728
        %v1797 = vunpack.c.l.b16 %v1729
        %v1798 = vunpack.c.l.b16 %v1730
        %v1799 = vunpack.c.l.b16 %v1731
        %v1800 = vunpack.c.l.b16 %v1732
        %v1801 = vunpack.c.l.b16 %v1733
        %v1802 = vunpack.c.l.b16 %v1734
        %v1803 = vunpack.c.l.b16 %v1735
        %v1804 = vunpack.c.l.b16 %v1736
        %v1805 = vunpack.c.l.b16 %v1737
        %v1806 = vunpack.c.l.b16 %v1738
        %v1807 = vunpack.c.l.b16 %v1739
        %v1808 = vunpack.c.l.b16 %v1740
        %v1809 = vunpack.c.l.b16 %v1741
        %v1810 = vunpack.c.l.b16 %v1742
        %v1811 = vunpack.c.l.b16 %v1743
        %v1812 = vunpack.c.l.b16 %v1744
        %v1813 = vunpack.c.l.b16 %v1745
        %v1814 = vunpack.c.l.b16 %v1746
        %v1815 = vunpack.c.l.b16 %v1747
        %v1816 = vpack.c.b16 %v1785, %v1784
        %v1817 = vpack.c.b16 %v1787, %v1786
        %v1818 = vpack.c.b16 %v1789, %v1788
        %v1819 = vpack.c.b16 %v1791, %v1790
        %v1820 = vpack.c.b16 %v1793, %v1792
        %v1821 = vpack.c.b16 %v1795, %v1794
        %v1822 = vpack.c.b16 %v1797, %v1796
        %v1823 = vpack.c.b16 %v1799, %v1798
        %v1824 = vpack.c.b16 %v1801, %v1800
        %v1825 = vpack.c.b16 %v1803, %v1802
        %v1826 = vpack.c.b16 %v1805, %v1804
        %v1827 = vpack.c.b16 %v1807, %v1806
        %v1828 = vpack.c.b16 %v1809, %v1808
        %v1829 = vpack.c.b16 %v1811, %v1810
        %v1830 = vpack.c.b16 %v1813, %v1812
        %v1831 = vpack.c.b16 %v1815, %v1814
        %1848 = vmatpush.bf16.msra.mxu0 %v1823
        %1849 = vmatpush.bf16.msra.mxu0 %v1822
        %1850 = vmatpush.bf16.msra.mxu0 %v1821
        %1851 = vmatpush.bf16.msra.mxu0 %v1820
        %1852 = vmatpush.bf16.msra.mxu0 %v1819
        %1853 = vmatpush.bf16.msra.mxu0 %v1818
        %1854 = vmatpush.bf16.msra.mxu0 %v1817
        %1855 = vmatpush.bf16.msra.mxu0 %v1816
        %1856 = vmatmul.bf16.gmra.mxu0 %v1714
        %v1857 = vpop.f32.mrf.mxu0
        %v1858 = vadd.f32 %v1750, %v1857
        %v1859 = vpop.f32.mrf.mxu0
        %1860 = vdwg.mxu0
        %1861 = vmatpush.bf16.msra.mxu0 %v1831
        %1862 = vmatpush.bf16.msra.mxu0 %v1830
        %1863 = vmatpush.bf16.msra.mxu0 %v1829
        %1864 = vmatpush.bf16.msra.mxu0 %v1828
        %1865 = vmatpush.bf16.msra.mxu0 %v1827
        %1866 = vmatpush.bf16.msra.mxu0 %v1826
        %1867 = vmatpush.bf16.msra.mxu0 %v1825
        %1868 = vmatpush.bf16.msra.mxu0 %v1824
        %1869 = vmatmul.bf16.gmra.mxu0 %v1715
        %v1870 = vpop.f32.mrf.mxu0
        %v1871 = vadd.f32 %v1858, %v1870
        %v1872 = vpop.f32.mrf.mxu0
        %1873 = vdwg.mxu0
        %v1874 = vld [vmem:[%s13] sm:$0x1]
        %v1875 = vld [vmem:[%s14] sm:$0x1]
        %1876 = vadd.xlane.f32.xlu0 %v1871
        %v1877 = vpop.xlane.xlu0 %1876
        %v1878 = vmul.f32 %v1877, %v1264
        %v1879 = vsub.f32 %v1871, %v1878
        %v1880 = vmul.f32 %v1879, %v1879
        %1881 = vadd.xlane.f32.xlu0 %v1880
        %v1882 = vpop.xlane.xlu0 %1881
        %v1883 = vmul.f32 %v1882, %v1264
        %v1884 = vadd.f32 %v1883, 1e-05
        %v1885 = vrsqrt.pop %v1884
        %v1886 = vmul.f32 %v1885, %v1884
        %v1887 = vmul.f32 %v1886, %v1885
        %v1888 = vmul.f32 0.5, %v1887
        %v1889 = vsub.f32 1.5, %v1888
        %v1890 = vmul.f32 %v1885, %v1889
        %vm1891 = vweird.f32 %v1884
        %vm1892 = vweird.f32 %v1885
        %vm1893 = vmor %vm1891, %vm1892
        %v1894 = vsel %vm1893, %v1885, %v1890
        %v1895 = vmul.f32 %v1879, %v1894
        %v1897 = vperm.slane %v1874, 0
        %v1899 = vmul.f32 %v1895, %v1897
        %v1901 = vperm.slane %v1875, 0
        %v1903 = vadd.f32 %v1899, %v1901
        %1904 = vst [vmem:[%s577] sm:$0xff] %v1903
        %s1905 = sand.u32 %s362, 1
        %s1906 = scalar_lea.sflag [#allocation4], %s1905
        %s1907 = sand.u32 %s362, 1
        %s1908 = smul.addr %s1907, 8
        %s1909 = scalar_lea.vmem [#allocation11], %s1908
        // Predicated region
        $region101: #{tpu_custom_call.1} parent=79 // pred_check
          %p1910 = pneg %p372
        $region102: #{tpu_custom_call.1} parent=79 // pred_check_branch
          %1912 = sbr.rel (%p1910) target = $region104
        $region103: #{tpu_custom_call.1} parent=79 // pred_region
          %1914 = vsyncadd %s1906, 0
          %s1915 = smul.addr %s34, 8
          %s1916 = scalar_lea.hbm %s15, %s1915
          %s1918 = sshll.u32 %s1909, 4
          %s1919 = int_to_ptr.vmem [resolvable:$true] %s1918
          %s1920 = sshll.u32 %s1916, 4
          %s1921 = int_to_ptr.hbm [resolvable:$true] %s1920
          %1923 = dma.vmem_to_hbm [thread:$0]  %s1919, 128, %s1921, %s1906
        $region104: #{tpu_custom_call.1} parent=79 // pred_fallthru
          _
      $region80: #{tpu_custom_call.1} parent=5 // pred_fallthru
        _
      %p1924 = scmp.le.s32.totalorder 2, %s29
      // Predicated region
      $region105: #{tpu_custom_call.1} parent=5 // pred_check
        %p1925 = pneg %p1924
      $region106: #{tpu_custom_call.1} parent=5 // pred_check_branch
        %1927 = sbr.rel (%p1925) target = $region108
      $region107: #{tpu_custom_call.1} parent=5 // pred_region
        %s1928 = ssub.s32 %s29, 2
        // Predicated region
        $region109: #{tpu_custom_call.1} parent=107 // pred_check
          %p1929 = pneg %p378
        $region110: #{tpu_custom_call.1} parent=107 // pred_check_branch
          %1931 = sbr.rel (%p1929) target = $region112
        $region111: #{tpu_custom_call.1} parent=107 // pred_region
          %s1932 = sand.u32 %s363, 1
          %s1933 = scalar_lea.sflag [#allocation4], %s1932
          %s1934 = sand.u32 %s363, 1
          %s1935 = smul.addr %s1934, 8
          %s1936 = scalar_lea.vmem [#allocation11], %s1935
          %1938 = dma.done %s1933, 128
        $region112: #{tpu_custom_call.1} parent=107 // pred_fallthru
          _
      $region108: #{tpu_custom_call.1} parent=5 // pred_fallthru
        _
    $region6: #{tpu_custom_call.1} parent=1 // loop_footer
      %s33 = sadd.s32 1, %s29
    $region7: #{tpu_custom_call.1} parent=1 // loop_footer_branch
      %28 = sbr.rel target = $region3
    $region8: #{tpu_custom_call.1} parent=1 // loop_exit
      _
    %1939 = vsyncpa [#allocation3], 1
    %s1940 = scalar_lea.sflag [#allocation3], 1
    %1941 = vsyncpa %s1940, 1
    %1942 = vsyncpa [#allocation6], 1
    %1943 = vsyncpa [#allocation9], 1
    %1944 = vsyncpa [#allocation4], 1
    %s1945 = scalar_lea.sflag [#allocation4], 1
    %1946 = vsyncpa %s1945, 1

</llo_original>
